<compile_context>
chip_gen: v7x
topology: tpu7x:2x2x1
jax: 0.10.0
libtpu: 0.0.40
codegen_flags: <defaults>
</compile_context>

<pallas_src>
import math

import jax
import jax.numpy as jnp
from jax import lax
from jax.experimental import pallas as pl
from jax.experimental.pallas import tpu as pltpu

EPS = 1e-10


# ---------------------------------------------------------------------------
# Pallas kernel: PatchAffineShapeEstimator hot path
# ---------------------------------------------------------------------------
def _affine_shape_kernel(patch_ref, w_ref, out_ref):
    # patch_ref: (PS, PS, TB)  layout [H, W, patch] -- patch index in lanes
    # w_ref:     (PS, PS, TB)  gaussian weighting * 1/8 (Sobel norm), lane-broadcast
    # out_ref:   (3, TB)       [gx^2, gx*gy, gy^2] per patch, lane-dense
    x = patch_ref[...].astype(jnp.float32)
    w = w_ref[...].astype(jnp.float32)
    PS = x.shape[0]

    # Sobel gradients (kornia SpatialGradient('sobel', 1), normalized by 1/8),
    # replicate padding, cross-correlation. Separable: [-1,0,1] x [1,2,1].
    # W-direction neighbours via XLU roll + replicate-pad boundary fix.
    j = lax.broadcasted_iota(jnp.int32, x.shape, 1)
    xl = jnp.where(j == 0, x, pltpu.roll(x, shift=1, axis=1))            # x[:, j-1]
    xr = jnp.where(j == PS - 1, x, pltpu.roll(x, shift=PS - 1, axis=1))  # x[:, j+1]

    dx = xr - xl                     # [-1, 0, 1] along W
    sx = xl + 2.0 * x + xr           # [ 1, 2, 1] along W

    # H-direction neighbours: leading-dim slices (cheap vreg-tile selection).
    def up(a):      # row i-1 (replicate)
        return jnp.concatenate([a[:1], a[:-1]], axis=0)

    def down(a):    # row i+1 (replicate)
        return jnp.concatenate([a[1:], a[-1:]], axis=0)

    # 1/8 Sobel normalization is folded into w (wrapper) -> single multiply.
    gx = (up(dx) + 2.0 * dx + down(dx)) * w
    gy = (down(sx) - up(sx)) * w

    # Second-moment matrix components, mean over the patch.
    inv_hw = 1.0 / float(PS * PS)

    def moment(p):  # (PS, PS, TB) -> (1, TB)
        return jnp.sum(jnp.sum(p, axis=0), axis=0, keepdims=True)

    a = moment(gx * gx) * inv_hw
    b = moment(gx * gy) * inv_hw
    c = moment(gy * gy) * inv_hw

    # bad mask: >= 2 components below eps  ->  circular shape [1, 0, 1]
    cnt = ((a < EPS).astype(jnp.float32)
           + (b < EPS).astype(jnp.float32)
           + (c < EPS).astype(jnp.float32))
    bad = (cnt >= 2.0).astype(jnp.float32)
    good = 1.0 - bad
    a = a * good + bad
    b = b * good
    c = c * good + bad

    # normalize by max component: one reciprocal (EUP), three multiplies.
    mx = jnp.maximum(jnp.maximum(a, b), c)
    inv = pl.reciprocal(mx, approx=True)   # use approx=False if bit-parity needed
    out_ref[...] = jnp.concatenate([a * inv, b * inv, c * inv],
                                   axis=0).astype(out_ref.dtype)


def patch_affine_shape_estimator(patches, weighting, *, block=256,
                                 vmem_limit_bytes=48 * 1024 * 1024):
    """patches: (BN, PS, PS) f32, weighting: (PS, PS) f32 (sums to 1) -> (BN, 3)."""
    BN, PS, _ = patches.shape
    bn_pad = ((BN + block - 1) // block) * block

    # Lane-dense layout: patch index in the lane dimension; pad to a full block.
    x = jnp.transpose(patches, (1, 2, 0))                       # (PS, PS, BN)
    if bn_pad != BN:
        x = jnp.pad(x, ((0, 0), (0, 0), (0, bn_pad - BN)))

    # Fold the Sobel 1/8 normalization into the resident gaussian weighting and
    # pre-broadcast along lanes so the kernel does a pure elementwise multiply.
    w3 = jnp.broadcast_to((weighting.astype(patches.dtype) * 0.125)[:, :, None],
                          (PS, PS, block))

    out = pl.pallas_call(
        _affine_shape_kernel,
        out_shape=jax.ShapeDtypeStruct((3, bn_pad), patches.dtype),
        grid_spec=pltpu.PrefetchScalarGridSpec(
            num_scalar_prefetch=0,
            grid=(bn_pad // block,),
            in_specs=[
                pl.BlockSpec((PS, PS, block), lambda i: (0, 0, i)),
                pl.BlockSpec((PS, PS, block), lambda i: (0, 0, 0)),  # resident
            ],
            out_specs=pl.BlockSpec((3, block), lambda i: (0, i)),
        ),
        compiler_params=pltpu.CompilerParams(
            dimension_semantics=("parallel",),
            vmem_limit_bytes=vmem_limit_bytes),
    )(x, w3)
    return jnp.transpose(out[:, :BN])                            # (BN, 3)


# ---------------------------------------------------------------------------
# Plain-JAX glue reproducing the kornia helper functions
# ---------------------------------------------------------------------------
def _gaussian_kernel1d(ksize, sigma):
    x = jnp.arange(ksize, dtype=jnp.float32) - (ksize // 2)
    if ksize % 2 == 0:
        x = x + 0.5
    g = jnp.exp(-(x ** 2) / (2.0 * sigma ** 2))
    return g / jnp.sum(g)


def _gaussian_kernel2d(ksize, sigma):
    g = _gaussian_kernel1d(ksize, sigma)
    return jnp.outer(g, g)


def get_laf_scale(laf):
    det = (laf[..., 0:1, 0:1] * laf[..., 1:2, 1:2]
           - laf[..., 1:2, 0:1] * laf[..., 0:1, 1:2] + 1e-10)
    return jnp.sqrt(jnp.abs(det))


def scale_laf(laf, scale_coef):
    return jnp.concatenate([scale_coef * laf[..., :2, :2], laf[..., :2, 2:3]], axis=-1)


def make_upright(laf, eps=1e-9):
    det = get_laf_scale(laf)
    scale = det
    b2a2 = jnp.sqrt(laf[..., 0:1, 1:2] ** 2 + laf[..., 0:1, 0:1] ** 2) + eps
    laf1_ell = jnp.concatenate([b2a2 / det, jnp.zeros_like(det)], axis=-1)
    laf2_ell = jnp.concatenate(
        [(laf[..., 1:2, 1:2] * laf[..., 0:1, 1:2]
          + laf[..., 1:2, 0:1] * laf[..., 0:1, 0:1]) / (b2a2 * det),
         det / b2a2], axis=-1)
    laf_unit_scale = jnp.concatenate(
        [jnp.concatenate([laf1_ell, laf2_ell], axis=-2), laf[..., :, 2:3]], axis=-1)
    return scale_laf(laf_unit_scale, scale)


def extract_patches_level0(img, laf, PS):
    """extract_patches_from_pyramid at pyramid level 0 only.
    img: (B, 1, H, W); laf: (B, N, 2, 3) in pixel coords -> (B*N, PS, PS)."""
    # TODO(synk): image-pyramid level selection (pyrdown + pyr_idx) not implemented;
    # level 0 is exact for the small-scale LAFs used here (pyr_idx == 0).
    # TODO(synk): the bilinear grid_sample gather stays in plain JAX (XLA gather);
    # moving it into a Pallas kernel with scalar-prefetched coordinates is the
    # remaining end-to-end optimization.
    B, _, H, W = img.shape
    N = laf.shape[1]
    dt = img.dtype
    # F.affine_grid base coordinates with align_corners=False.
    xs = (2.0 * jnp.arange(PS, dtype=dt) + 1.0) / PS - 1.0
    ys = (2.0 * jnp.arange(PS, dtype=dt) + 1.0) / PS - 1.0
    gy, gx = jnp.meshgrid(ys, xs, indexing="ij")
    base = jnp.stack([gx, gy, jnp.ones_like(gx)], axis=-1)          # (PS, PS, 3)
    A = laf.reshape(B * N, 2, 3)
    pts = jnp.einsum("hwk,pjk->phwj", base, A)                      # (B*N, PS, PS, 2)
    # grid_sample(align_corners=False): pixel = coord - 0.5 ; padding_mode='border'
    px = jnp.clip(pts[..., 0] - 0.5, 0.0, float(W - 1))
    py = jnp.clip(pts[..., 1] - 0.5, 0.0, float(H - 1))
    x0 = jnp.floor(px)
    y0 = jnp.floor(py)
    wx1 = px - x0
    wy1 = py - y0
    wx0 = 1.0 - wx1
    wy0 = 1.0 - wy1
    x0i = jnp.clip(x0, 0, W - 1).astype(jnp.int32)
    x1i = jnp.clip(x0 + 1.0, 0, W - 1).astype(jnp.int32)
    y0i = jnp.clip(y0, 0, H - 1).astype(jnp.int32)
    y1i = jnp.clip(y0 + 1.0, 0, H - 1).astype(jnp.int32)
    imgs = jnp.repeat(img[:, 0], N, axis=0)                         # (B*N, H, W)

    def gather(yi, xi):
        return jax.vmap(lambda im, yy, xx: im[yy, xx])(imgs, yi, xi)

    v00 = gather(y0i, x0i)
    v01 = gather(y0i, x1i)
    v10 = gather(y1i, x0i)
    v11 = gather(y1i, x1i)
    return v00 * wy0 * wx0 + v01 * wy0 * wx1 + v10 * wy1 * wx0 + v11 * wy1 * wx1


def ellipse_to_laf(ells):
    """ells: (B, N, 5) = (x, y, a, b, c) -> LAF (B, N, 2, 3) via inv(cholesky_lower)."""
    B, N, _ = ells.shape
    a = ells[..., 2]
    b = ells[..., 3]
    c = ells[..., 4]
    l11 = jnp.sqrt(a)
    l21 = b / l11
    l22 = jnp.sqrt(c - l21 * l21)
    i11 = 1.0 / l11
    i22 = 1.0 / l22
    i21 = -l21 / (l11 * l22)
    A = jnp.stack([jnp.stack([i11, jnp.zeros_like(i11)], axis=-1),
                   jnp.stack([i21, i22], axis=-1)], axis=-2)        # (B, N, 2, 2)
    xy = ells[..., :2].reshape(B, N, 2, 1)
    return jnp.concatenate([A, xy], axis=-1)


# ---------------------------------------------------------------------------
# LAFAffineShapeEstimator.forward
# ---------------------------------------------------------------------------
def laf_affine_shape_estimator(laf, img, patch_size=32):
    assert laf.ndim == 4 and laf.shape[2:] == (2, 3), "laf must be (B, N, 2, 3)"
    assert img.ndim == 4 and img.shape[1] == 1, "img must be (B, 1, H, W)"
    assert laf.shape[0] == img.shape[0]
    B, N = laf.shape[:2]
    PS = patch_size

    upright = make_upright(laf)
    patches = extract_patches_level0(img, upright, PS)              # (B*N, PS, PS)

    sigma = float(PS) / math.sqrt(2.0)
    weighting = _gaussian_kernel2d(PS, sigma).astype(patches.dtype)  # sums to 1

    ell_shape = patch_affine_shape_estimator(patches, weighting)     # (B*N, 3)

    centers = laf.reshape(-1, 2, 3)[..., 2]                          # (B*N, 2)
    ellipses = jnp.concatenate([centers, ell_shape], axis=-1).reshape(B, N, 5)

    scale_orig = get_laf_scale(laf)
    laf_out = ellipse_to_laf(ellipses)
    ellipse_scale = get_laf_scale(laf_out)
    laf_out = scale_laf(laf_out, scale_orig / ellipse_scale)
    return laf_out


if __name__ == "__main__":
    key = jax.random.PRNGKey(0)
    B, N, H, W, PS = 2, 8, 64, 64, 32
    k_img, k_ang, k_cx, k_cy = jax.random.split(key, 4)

    img = jax.random.uniform(k_img, (B, 1, H, W), dtype=jnp.float32)

    # Small-scale rotated LAFs (scale 6 px => pyramid level 0), centers inside image.
    ang = jax.random.uniform(k_ang, (B, N), minval=0.0, maxval=2.0 * math.pi)
    ca, sa = jnp.cos(ang), jnp.sin(ang)
    A = jnp.stack([jnp.stack([ca, -sa], -1), jnp.stack([sa, ca], -1)], -2) * 6.0
    cx = jax.random.uniform(k_cx, (B, N), minval=16.0, maxval=float(W) - 16.0)
    cy = jax.random.uniform(k_cy, (B, N), minval=16.0, maxval=float(H) - 16.0)
    centers = jnp.stack([cx, cy], axis=-1)[..., None]                # (B, N, 2, 1)
    laf = jnp.concatenate([A, centers], axis=-1).astype(jnp.float32)  # (B, N, 2, 3)

    out = laf_affine_shape_estimator(laf, img, patch_size=PS)
    jax.block_until_ready(out)
    assert out.shape == (B, N, 2, 3)
    assert bool(jnp.all(jnp.isfinite(out)))
    print("KERNEL_OK")
</pallas_src>

<mosaic_0001>
module attributes {stable_mosaic.version = 11 : i64} {
  func.func @_affine_shape_kernel(%arg0: i32, %arg1: memref<32x32x256xf32, #tpu.memory_space<vmem>>, %arg2: memref<32x32x256xf32, #tpu.memory_space<vmem>>, %arg3: memref<3x256xf32, #tpu.memory_space<vmem>>) attributes {dimension_semantics = [#tpu.dimension_semantics<parallel>], iteration_bounds = array<i64: 1>, scalar_prefetch = 0 : i64, scratch_operands = 0 : i64, tpu.core_type = #tpu.core_type<tc>, window_params = [{transform_indices = @transform_0, window_bounds = array<i64: 32, 32, 256>}, {pipeline_mode = #tpu.pipeline_mode<synchronous>, transform_indices = @transform_1, window_bounds = array<i64: 32, 32, 256>}, {transform_indices = @transform_2, window_bounds = array<i64: 3, 256>}]} {
    %c0 = arith.constant 0 : index
    %c0_0 = arith.constant 0 : index
    %c0_1 = arith.constant 0 : index
    %0 = vector.load %arg1[%c0, %c0_0, %c0_1] : memref<32x32x256xf32, #tpu.memory_space<vmem>>, vector<32x32x256xf32>
    %c0_2 = arith.constant 0 : index
    %c0_3 = arith.constant 0 : index
    %c0_4 = arith.constant 0 : index
    %1 = vector.load %arg2[%c0_2, %c0_3, %c0_4] : memref<32x32x256xf32, #tpu.memory_space<vmem>>, vector<32x32x256xf32>
    %2 = tpu.iota {dimensions = array<i32: 1>} : vector<32x32x256xi32>
    %c0_i32 = arith.constant 0 : i32
    %3 = vector.broadcast %c0_i32 : i32 to vector<32x32x256xi32>
    %4 = arith.cmpi eq, %2, %3 : vector<32x32x256xi32>
    %c1_i32 = arith.constant 1 : i32
    %5 = tpu.dynamic_rotate %0 by %c1_i32 dim 1 : vector<32x32x256xf32>, i32 -> vector<32x32x256xf32>
    %6 = arith.select %4, %0, %5 : vector<32x32x256xi1>, vector<32x32x256xf32>
    %c31_i32 = arith.constant 31 : i32
    %7 = vector.broadcast %c31_i32 : i32 to vector<32x32x256xi32>
    %8 = arith.cmpi eq, %2, %7 : vector<32x32x256xi32>
    %c31_i32_5 = arith.constant 31 : i32
    %9 = tpu.dynamic_rotate %0 by %c31_i32_5 dim 1 : vector<32x32x256xf32>, i32 -> vector<32x32x256xf32>
    %10 = arith.select %8, %0, %9 : vector<32x32x256xi1>, vector<32x32x256xf32>
    %11 = arith.subf %10, %6 : vector<32x32x256xf32>
    %cst = arith.constant 2.000000e+00 : f32
    %12 = vector.broadcast %cst : f32 to vector<32x32x256xf32>
    %13 = arith.mulf %12, %0 : vector<32x32x256xf32>
    %14 = arith.addf %6, %13 : vector<32x32x256xf32>
    %15 = arith.addf %14, %10 : vector<32x32x256xf32>
    %16 = vector.extract_strided_slice %11 {offsets = [0, 0, 0], sizes = [1, 32, 256], strides = [1, 1, 1]} : vector<32x32x256xf32> to vector<1x32x256xf32>
    %17 = vector.extract_strided_slice %11 {offsets = [0, 0, 0], sizes = [31, 32, 256], strides = [1, 1, 1]} : vector<32x32x256xf32> to vector<31x32x256xf32>
    %18 = tpu.concatenate %16, %17 in 0 : vector<1x32x256xf32>, vector<31x32x256xf32> -> vector<32x32x256xf32>
    %cst_6 = arith.constant 2.000000e+00 : f32
    %19 = vector.broadcast %cst_6 : f32 to vector<32x32x256xf32>
    %20 = arith.mulf %19, %11 : vector<32x32x256xf32>
    %21 = arith.addf %18, %20 : vector<32x32x256xf32>
    %22 = vector.extract_strided_slice %11 {offsets = [1, 0, 0], sizes = [31, 32, 256], strides = [1, 1, 1]} : vector<32x32x256xf32> to vector<31x32x256xf32>
    %23 = vector.extract_strided_slice %11 {offsets = [31, 0, 0], sizes = [1, 32, 256], strides = [1, 1, 1]} : vector<32x32x256xf32> to vector<1x32x256xf32>
    %24 = tpu.concatenate %22, %23 in 0 : vector<31x32x256xf32>, vector<1x32x256xf32> -> vector<32x32x256xf32>
    %25 = arith.addf %21, %24 : vector<32x32x256xf32>
    %26 = arith.mulf %25, %1 : vector<32x32x256xf32>
    %27 = vector.extract_strided_slice %15 {offsets = [1, 0, 0], sizes = [31, 32, 256], strides = [1, 1, 1]} : vector<32x32x256xf32> to vector<31x32x256xf32>
    %28 = vector.extract_strided_slice %15 {offsets = [31, 0, 0], sizes = [1, 32, 256], strides = [1, 1, 1]} : vector<32x32x256xf32> to vector<1x32x256xf32>
    %29 = tpu.concatenate %27, %28 in 0 : vector<31x32x256xf32>, vector<1x32x256xf32> -> vector<32x32x256xf32>
    %30 = vector.extract_strided_slice %15 {offsets = [0, 0, 0], sizes = [1, 32, 256], strides = [1, 1, 1]} : vector<32x32x256xf32> to vector<1x32x256xf32>
    %31 = vector.extract_strided_slice %15 {offsets = [0, 0, 0], sizes = [31, 32, 256], strides = [1, 1, 1]} : vector<32x32x256xf32> to vector<31x32x256xf32>
    %32 = tpu.concatenate %30, %31 in 0 : vector<1x32x256xf32>, vector<31x32x256xf32> -> vector<32x32x256xf32>
    %33 = arith.subf %29, %32 : vector<32x32x256xf32>
    %34 = arith.mulf %33, %1 : vector<32x32x256xf32>
    %35 = arith.mulf %26, %26 : vector<32x32x256xf32>
    %cst_7 = arith.constant dense<0.000000e+00> : vector<32x256xf32>
    %36 = vector.multi_reduction <add>, %35, %cst_7 [0] : vector<32x32x256xf32> to vector<32x256xf32>
    %cst_8 = arith.constant dense<0.000000e+00> : vector<256xf32>
    %37 = vector.multi_reduction <add>, %36, %cst_8 [0] : vector<32x256xf32> to vector<256xf32>
    %38 = vector.shape_cast %37 : vector<256xf32> to vector<1x256xf32>
    %cst_9 = arith.constant 9.765625E-4 : f32
    %39 = vector.broadcast %cst_9 : f32 to vector<1x256xf32>
    %40 = arith.mulf %38, %39 : vector<1x256xf32>
    %41 = arith.mulf %26, %34 : vector<32x32x256xf32>
    %cst_10 = arith.constant dense<0.000000e+00> : vector<32x256xf32>
    %42 = vector.multi_reduction <add>, %41, %cst_10 [0] : vector<32x32x256xf32> to vector<32x256xf32>
    %cst_11 = arith.constant dense<0.000000e+00> : vector<256xf32>
    %43 = vector.multi_reduction <add>, %42, %cst_11 [0] : vector<32x256xf32> to vector<256xf32>
    %44 = vector.shape_cast %43 : vector<256xf32> to vector<1x256xf32>
    %cst_12 = arith.constant 9.765625E-4 : f32
    %45 = vector.broadcast %cst_12 : f32 to vector<1x256xf32>
    %46 = arith.mulf %44, %45 : vector<1x256xf32>
    %47 = arith.mulf %34, %34 : vector<32x32x256xf32>
    %cst_13 = arith.constant dense<0.000000e+00> : vector<32x256xf32>
    %48 = vector.multi_reduction <add>, %47, %cst_13 [0] : vector<32x32x256xf32> to vector<32x256xf32>
    %cst_14 = arith.constant dense<0.000000e+00> : vector<256xf32>
    %49 = vector.multi_reduction <add>, %48, %cst_14 [0] : vector<32x256xf32> to vector<256xf32>
    %50 = vector.shape_cast %49 : vector<256xf32> to vector<1x256xf32>
    %cst_15 = arith.constant 9.765625E-4 : f32
    %51 = vector.broadcast %cst_15 : f32 to vector<1x256xf32>
    %52 = arith.mulf %50, %51 : vector<1x256xf32>
    %cst_16 = arith.constant 1.000000e-10 : f32
    %53 = vector.broadcast %cst_16 : f32 to vector<1x256xf32>
    %54 = arith.cmpf olt, %40, %53 : vector<1x256xf32>
    %55 = arith.extui %54 : vector<1x256xi1> to vector<1x256xi32>
    %56 = arith.sitofp %55 : vector<1x256xi32> to vector<1x256xf32>
    %cst_17 = arith.constant 1.000000e-10 : f32
    %57 = vector.broadcast %cst_17 : f32 to vector<1x256xf32>
    %58 = arith.cmpf olt, %46, %57 : vector<1x256xf32>
    %59 = arith.extui %58 : vector<1x256xi1> to vector<1x256xi32>
    %60 = arith.sitofp %59 : vector<1x256xi32> to vector<1x256xf32>
    %61 = arith.addf %56, %60 : vector<1x256xf32>
    %cst_18 = arith.constant 1.000000e-10 : f32
    %62 = vector.broadcast %cst_18 : f32 to vector<1x256xf32>
    %63 = arith.cmpf olt, %52, %62 : vector<1x256xf32>
    %64 = arith.extui %63 : vector<1x256xi1> to vector<1x256xi32>
    %65 = arith.sitofp %64 : vector<1x256xi32> to vector<1x256xf32>
    %66 = arith.addf %61, %65 : vector<1x256xf32>
    %cst_19 = arith.constant 2.000000e+00 : f32
    %67 = vector.broadcast %cst_19 : f32 to vector<1x256xf32>
    %68 = arith.cmpf oge, %66, %67 : vector<1x256xf32>
    %69 = arith.extui %68 : vector<1x256xi1> to vector<1x256xi32>
    %70 = arith.sitofp %69 : vector<1x256xi32> to vector<1x256xf32>
    %cst_20 = arith.constant 1.000000e+00 : f32
    %71 = vector.broadcast %cst_20 : f32 to vector<1x256xf32>
    %72 = arith.subf %71, %70 : vector<1x256xf32>
    %73 = arith.mulf %40, %72 : vector<1x256xf32>
    %74 = arith.addf %73, %70 : vector<1x256xf32>
    %75 = arith.mulf %46, %72 : vector<1x256xf32>
    %76 = arith.mulf %52, %72 : vector<1x256xf32>
    %77 = arith.addf %76, %70 : vector<1x256xf32>
    %78 = arith.maximumf %74, %75 : vector<1x256xf32>
    %79 = arith.maximumf %78, %77 : vector<1x256xf32>
    %80 = tpu.reciprocal %79 {approx = true} : vector<1x256xf32> -> vector<1x256xf32>
    %81 = arith.mulf %74, %80 : vector<1x256xf32>
    %82 = arith.mulf %75, %80 : vector<1x256xf32>
    %83 = arith.mulf %77, %80 : vector<1x256xf32>
    %84 = tpu.concatenate %81, %82, %83 in 0 : vector<1x256xf32>, vector<1x256xf32>, vector<1x256xf32> -> vector<3x256xf32>
    %c0_21 = arith.constant 0 : index
    %c0_22 = arith.constant 0 : index
    %85 = vector.load %arg3[%c0_21, %c0_22] : memref<3x256xf32, #tpu.memory_space<vmem>>, vector<3x256xf32>
    tpu.vector_store %arg3[%c0_21, %c0_22], %84 {strides = array<i32>} : memref<3x256xf32, #tpu.memory_space<vmem>>, vector<3x256xf32>,
    return
  }
  func.func @transform_0(%arg0: i32) -> (i32, i32, i32) {
    %c0_i32 = arith.constant 0 : i32
    %c0_i32_0 = arith.constant 0 : i32
    %c0_i32_1 = arith.constant 0 : i32
    return %c0_i32, %c0_i32_0, %arg0 : i32, i32, i32
  }
  func.func @transform_1(%arg0: i32) -> (i32, i32, i32) {
    %c0_i32 = arith.constant 0 : i32
    %c0_i32_0 = arith.constant 0 : i32
    %c0_i32_1 = arith.constant 0 : i32
    %c0_i32_2 = arith.constant 0 : i32
    return %c0_i32, %c0_i32_0, %c0_i32_1 : i32, i32, i32
  }
  func.func @transform_2(%arg0: i32) -> (i32, i32) {
    %c0_i32 = arith.constant 0 : i32
    %c0_i32_0 = arith.constant 0 : i32
    return %c0_i32, %arg0 : i32, i32
  }
}

</mosaic_0001>

<llo_original>
// kernel: tpu_custom_call.1
$region0: #{tpu_custom_call.1}
  #allocation0 [shape = 'u32[]', space=smem, size = 0x4, offset = 0x4, fixed_abs, tag = 'smem constant byte address 0x4 - core index']
  #allocation1 [shape = 'u32[144,128]{1,0:T(1,128)}', space=vmem, size = 0x12000, scoped, tag = 'internal scratch']
  %s0 = inlined_call_operand.hbm [shape: f32[32,32,256], index: 0, kind: input, shape index: {}]
  %s1 = inlined_call_operand.hbm [shape: f32[32,32,256], index: 1, kind: input, shape index: {}]
  %s2 = inlined_call_operand.hbm [shape: f32[3,256], index: 2, kind: output, shape index: {}]
  %s3 = sld [smem:[#allocation0]]
  $region26: #{tpu_custom_call.1} parent=0
    _
  %s5 = ssub.s32 1, %s3
  %s6 = scalar_select 0, %s5, %s3
  $region1: #{tpu_custom_call.1} parent=0
    #allocation2 [shape = 'u8[1048576]{0}', space=vmem, size = 0x100000, scoped, tag = 'input window, operand 0, single buffered']
    #allocation3 [shape = 's32[1]{0}', space=sflag, size = 0x4, scoped, tag = 'scoped memory for tpu_custom_call.1']
    #allocation4 [shape = 's32[1]{0}', space=sflag, size = 0x4, scoped, tag = 'scoped memory for tpu_custom_call.1']
    #allocation5 [shape = 'u8[1048576]{0}', space=vmem, size = 0x100000, scoped, tag = 'input window, operand 1, single buffered']
    #allocation6 [shape = 's32[1]{0}', space=sflag, size = 0x4, scoped, tag = 'scoped memory for tpu_custom_call.1']
    #allocation7 [shape = 'u8[4096]{0}', space=vmem, size = 0x1000, scoped, tag = 'output window, operand 0, single buffered']
    %7 = vsyncpa [#allocation3], 0
    %8 = vsyncpa [#allocation6], 0
    %9 = vsyncpa [#allocation4], 0
    // Predicated region
    $region2: #{tpu_custom_call.1} parent=1 // pred_check
      _
    $region3: #{tpu_custom_call.1} parent=1 // pred_check_branch
      %11 = sbr.rel (0) target = $region5
    $region4: #{tpu_custom_call.1} parent=1 // pred_region
      %s13 = ssub.s32 32768, 32768
      %14 = vsyncadd [#allocation3], %s13
      %s15 = sshll.u32 [#allocation2], 4
      %s16 = int_to_ptr.vmem [resolvable:$true] %s15
      %21 = dma.hbm_to_vmem [thread:$0]  %s0, 32768, %s16, [#allocation3], 256, 256, 16
    $region5: #{tpu_custom_call.1} parent=1 // pred_fallthru
      _
    // Predicated region
    $region6: #{tpu_custom_call.1} parent=1 // pred_check
      _
    $region7: #{tpu_custom_call.1} parent=1 // pred_check_branch
      %23 = sbr.rel (0) target = $region9
    $region8: #{tpu_custom_call.1} parent=1 // pred_region
      %s25 = ssub.s32 32768, 32768
      %26 = vsyncadd [#allocation6], %s25
      %s27 = sshll.u32 [#allocation5], 4
      %s28 = int_to_ptr.vmem [resolvable:$true] %s27
      %33 = dma.hbm_to_vmem [thread:$0]  %s1, 32768, %s28, [#allocation6], 256, 256, 16
    $region9: #{tpu_custom_call.1} parent=1 // pred_fallthru
      _
    // Predicated region
    $region10: #{tpu_custom_call.1} parent=1 // pred_check
      _
    $region11: #{tpu_custom_call.1} parent=1 // pred_check_branch
      %35 = sbr.rel (0) target = $region13
    $region12: #{tpu_custom_call.1} parent=1 // pred_region
      %36 = dma.done [#allocation3], 32768
    $region13: #{tpu_custom_call.1} parent=1 // pred_fallthru
      _
    // Predicated region
    $region14: #{tpu_custom_call.1} parent=1 // pred_check
      _
    $region15: #{tpu_custom_call.1} parent=1 // pred_check_branch
      %38 = sbr.rel (0) target = $region17
    $region16: #{tpu_custom_call.1} parent=1 // pred_region
      %39 = dma.done [#allocation6], 32768
    $region17: #{tpu_custom_call.1} parent=1 // pred_fallthru
      _
    %v40 = vld [vmem:[#allocation2] sm:$0xff]
    %v41 = vld [vmem:[#allocation2 + $0x8] sm:$0xff]
    %v42 = vld [vmem:[#allocation2 + $0x10] sm:$0xff]
    %v43 = vld [vmem:[#allocation2 + $0x18] sm:$0xff]
    %v44 = vld [vmem:[#allocation2 + $0x20] sm:$0xff]
    %v45 = vld [vmem:[#allocation2 + $0x28] sm:$0xff]
    %v46 = vld [vmem:[#allocation2 + $0x30] sm:$0xff]
    %v47 = vld [vmem:[#allocation2 + $0x38] sm:$0xff]
    %v48 = vld [vmem:[#allocation2 + $0x40] sm:$0xff]
    %v49 = vld [vmem:[#allocation2 + $0x48] sm:$0xff]
    %v50 = vld [vmem:[#allocation2 + $0x50] sm:$0xff]
    %v51 = vld [vmem:[#allocation2 + $0x58] sm:$0xff]
    %v52 = vld [vmem:[#allocation2 + $0x60] sm:$0xff]
    %v53 = vld [vmem:[#allocation2 + $0x68] sm:$0xff]
    %v54 = vld [vmem:[#allocation2 + $0x70] sm:$0xff]
    %v55 = vld [vmem:[#allocation2 + $0x78] sm:$0xff]
    %v56 = vld [vmem:[#allocation2 + $0x80] sm:$0xff]
    %v57 = vld [vmem:[#allocation2 + $0x88] sm:$0xff]
    %v58 = vld [vmem:[#allocation2 + $0x90] sm:$0xff]
    %v59 = vld [vmem:[#allocation2 + $0x98] sm:$0xff]
    %v60 = vld [vmem:[#allocation2 + $0xa0] sm:$0xff]
    %v61 = vld [vmem:[#allocation2 + $0xa8] sm:$0xff]
    %v62 = vld [vmem:[#allocation2 + $0xb0] sm:$0xff]
    %v63 = vld [vmem:[#allocation2 + $0xb8] sm:$0xff]
    %v64 = vld [vmem:[#allocation2 + $0xc0] sm:$0xff]
    %v65 = vld [vmem:[#allocation2 + $0xc8] sm:$0xff]
    %v66 = vld [vmem:[#allocation2 + $0xd0] sm:$0xff]
    %v67 = vld [vmem:[#allocation2 + $0xd8] sm:$0xff]
    %v68 = vld [vmem:[#allocation2 + $0xe0] sm:$0xff]
    %v69 = vld [vmem:[#allocation2 + $0xe8] sm:$0xff]
    %v70 = vld [vmem:[#allocation2 + $0xf0] sm:$0xff]
    %v71 = vld [vmem:[#allocation2 + $0xf8] sm:$0xff]
    %v72 = vld [vmem:[#allocation2 + $0x100] sm:$0xff]
    %v73 = vld [vmem:[#allocation2 + $0x108] sm:$0xff]
    %v74 = vld [vmem:[#allocation2 + $0x110] sm:$0xff]
    %v75 = vld [vmem:[#allocation2 + $0x118] sm:$0xff]
    %v76 = vld [vmem:[#allocation2 + $0x120] sm:$0xff]
    %v77 = vld [vmem:[#allocation2 + $0x128] sm:$0xff]
    %v78 = vld [vmem:[#allocation2 + $0x130] sm:$0xff]
    %v79 = vld [vmem:[#allocation2 + $0x138] sm:$0xff]
    %v80 = vld [vmem:[#allocation2 + $0x140] sm:$0xff]
    %v81 = vld [vmem:[#allocation2 + $0x148] sm:$0xff]
    %v82 = vld [vmem:[#allocation2 + $0x150] sm:$0xff]
    %v83 = vld [vmem:[#allocation2 + $0x158] sm:$0xff]
    %v84 = vld [vmem:[#allocation2 + $0x160] sm:$0xff]
    %v85 = vld [vmem:[#allocation2 + $0x168] sm:$0xff]
    %v86 = vld [vmem:[#allocation2 + $0x170] sm:$0xff]
    %v87 = vld [vmem:[#allocation2 + $0x178] sm:$0xff]
    %v88 = vld [vmem:[#allocation2 + $0x180] sm:$0xff]
    %v89 = vld [vmem:[#allocation2 + $0x188] sm:$0xff]
    %v90 = vld [vmem:[#allocation2 + $0x190] sm:$0xff]
    %v91 = vld [vmem:[#allocation2 + $0x198] sm:$0xff]
    %v92 = vld [vmem:[#allocation2 + $0x1a0] sm:$0xff]
    %v93 = vld [vmem:[#allocation2 + $0x1a8] sm:$0xff]
    %v94 = vld [vmem:[#allocation2 + $0x1b0] sm:$0xff]
    %v95 = vld [vmem:[#allocation2 + $0x1b8] sm:$0xff]
    %v96 = vld [vmem:[#allocation2 + $0x1c0] sm:$0xff]
    %v97 = vld [vmem:[#allocation2 + $0x1c8] sm:$0xff]
    %v98 = vld [vmem:[#allocation2 + $0x1d0] sm:$0xff]
    %v99 = vld [vmem:[#allocation2 + $0x1d8] sm:$0xff]
    %v100 = vld [vmem:[#allocation2 + $0x1e0] sm:$0xff]
    %v101 = vld [vmem:[#allocation2 + $0x1e8] sm:$0xff]
    %v102 = vld [vmem:[#allocation2 + $0x1f0] sm:$0xff]
    %v103 = vld [vmem:[#allocation2 + $0x1f8] sm:$0xff]
    %v104 = vld [vmem:[#allocation2 + $0x200] sm:$0xff]
    %v105 = vld [vmem:[#allocation2 + $0x208] sm:$0xff]
    %v106 = vld [vmem:[#allocation2 + $0x210] sm:$0xff]
    %v107 = vld [vmem:[#allocation2 + $0x218] sm:$0xff]
    %v108 = vld [vmem:[#allocation2 + $0x220] sm:$0xff]
    %v109 = vld [vmem:[#allocation2 + $0x228] sm:$0xff]
    %v110 = vld [vmem:[#allocation2 + $0x230] sm:$0xff]
    %v111 = vld [vmem:[#allocation2 + $0x238] sm:$0xff]
    %v112 = vld [vmem:[#allocation2 + $0x240] sm:$0xff]
    %v113 = vld [vmem:[#allocation2 + $0x248] sm:$0xff]
    %v114 = vld [vmem:[#allocation2 + $0x250] sm:$0xff]
    %v115 = vld [vmem:[#allocation2 + $0x258] sm:$0xff]
    %v116 = vld [vmem:[#allocation2 + $0x260] sm:$0xff]
    %v117 = vld [vmem:[#allocation2 + $0x268] sm:$0xff]
    %v118 = vld [vmem:[#allocation2 + $0x270] sm:$0xff]
    %v119 = vld [vmem:[#allocation2 + $0x278] sm:$0xff]
    %v120 = vld [vmem:[#allocation2 + $0x280] sm:$0xff]
    %v121 = vld [vmem:[#allocation2 + $0x288] sm:$0xff]
    %v122 = vld [vmem:[#allocation2 + $0x290] sm:$0xff]
    %v123 = vld [vmem:[#allocation2 + $0x298] sm:$0xff]
    %v124 = vld [vmem:[#allocation2 + $0x2a0] sm:$0xff]
    %v125 = vld [vmem:[#allocation2 + $0x2a8] sm:$0xff]
    %v126 = vld [vmem:[#allocation2 + $0x2b0] sm:$0xff]
    %v127 = vld [vmem:[#allocation2 + $0x2b8] sm:$0xff]
    %v128 = vld [vmem:[#allocation2 + $0x2c0] sm:$0xff]
    %v129 = vld [vmem:[#allocation2 + $0x2c8] sm:$0xff]
    %v130 = vld [vmem:[#allocation2 + $0x2d0] sm:$0xff]
    %v131 = vld [vmem:[#allocation2 + $0x2d8] sm:$0xff]
    %v132 = vld [vmem:[#allocation2 + $0x2e0] sm:$0xff]
    %v133 = vld [vmem:[#allocation2 + $0x2e8] sm:$0xff]
    %v134 = vld [vmem:[#allocation2 + $0x2f0] sm:$0xff]
    %v135 = vld [vmem:[#allocation2 + $0x2f8] sm:$0xff]
    %v136 = vld [vmem:[#allocation2 + $0x300] sm:$0xff]
    %v137 = vld [vmem:[#allocation2 + $0x308] sm:$0xff]
    %v138 = vld [vmem:[#allocation2 + $0x310] sm:$0xff]
    %v139 = vld [vmem:[#allocation2 + $0x318] sm:$0xff]
    %v140 = vld [vmem:[#allocation2 + $0x320] sm:$0xff]
    %v141 = vld [vmem:[#allocation2 + $0x328] sm:$0xff]
    %v142 = vld [vmem:[#allocation2 + $0x330] sm:$0xff]
    %v143 = vld [vmem:[#allocation2 + $0x338] sm:$0xff]
    %v144 = vld [vmem:[#allocation2 + $0x340] sm:$0xff]
    %v145 = vld [vmem:[#allocation2 + $0x348] sm:$0xff]
    %v146 = vld [vmem:[#allocation2 + $0x350] sm:$0xff]
    %v147 = vld [vmem:[#allocation2 + $0x358] sm:$0xff]
    %v148 = vld [vmem:[#allocation2 + $0x360] sm:$0xff]
    %v149 = vld [vmem:[#allocation2 + $0x368] sm:$0xff]
    %v150 = vld [vmem:[#allocation2 + $0x370] sm:$0xff]
    %v151 = vld [vmem:[#allocation2 + $0x378] sm:$0xff]
    %v152 = vld [vmem:[#allocation2 + $0x380] sm:$0xff]
    %v153 = vld [vmem:[#allocation2 + $0x388] sm:$0xff]
    %v154 = vld [vmem:[#allocation2 + $0x390] sm:$0xff]
    %v155 = vld [vmem:[#allocation2 + $0x398] sm:$0xff]
    %v156 = vld [vmem:[#allocation2 + $0x3a0] sm:$0xff]
    %v157 = vld [vmem:[#allocation2 + $0x3a8] sm:$0xff]
    %v158 = vld [vmem:[#allocation2 + $0x3b0] sm:$0xff]
    %v159 = vld [vmem:[#allocation2 + $0x3b8] sm:$0xff]
    %v160 = vld [vmem:[#allocation2 + $0x3c0] sm:$0xff]
    %v161 = vld [vmem:[#allocation2 + $0x3c8] sm:$0xff]
    %v162 = vld [vmem:[#allocation2 + $0x3d0] sm:$0xff]
    %v163 = vld [vmem:[#allocation2 + $0x3d8] sm:$0xff]
    %v164 = vld [vmem:[#allocation2 + $0x3e0] sm:$0xff]
    %v165 = vld [vmem:[#allocation2 + $0x3e8] sm:$0xff]
    %v166 = vld [vmem:[#allocation2 + $0x3f0] sm:$0xff]
    %v167 = vld [vmem:[#allocation2 + $0x3f8] sm:$0xff]
    %v168 = vld [vmem:[#allocation2 + $0x400] sm:$0xff]
    %v169 = vld [vmem:[#allocation2 + $0x408] sm:$0xff]
    %v170 = vld [vmem:[#allocation2 + $0x410] sm:$0xff]
    %v171 = vld [vmem:[#allocation2 + $0x418] sm:$0xff]
    %v172 = vld [vmem:[#allocation2 + $0x420] sm:$0xff]
    %v173 = vld [vmem:[#allocation2 + $0x428] sm:$0xff]
    %v174 = vld [vmem:[#allocation2 + $0x430] sm:$0xff]
    %v175 = vld [vmem:[#allocation2 + $0x438] sm:$0xff]
    %v176 = vld [vmem:[#allocation2 + $0x440] sm:$0xff]
    %v177 = vld [vmem:[#allocation2 + $0x448] sm:$0xff]
    %v178 = vld [vmem:[#allocation2 + $0x450] sm:$0xff]
    %v179 = vld [vmem:[#allocation2 + $0x458] sm:$0xff]
    %v180 = vld [vmem:[#allocation2 + $0x460] sm:$0xff]
    %v181 = vld [vmem:[#allocation2 + $0x468] sm:$0xff]
    %v182 = vld [vmem:[#allocation2 + $0x470] sm:$0xff]
    %v183 = vld [vmem:[#allocation2 + $0x478] sm:$0xff]
    %v184 = vld [vmem:[#allocation2 + $0x480] sm:$0xff]
    %v185 = vld [vmem:[#allocation2 + $0x488] sm:$0xff]
    %v186 = vld [vmem:[#allocation2 + $0x490] sm:$0xff]
    %v187 = vld [vmem:[#allocation2 + $0x498] sm:$0xff]
    %v188 = vld [vmem:[#allocation2 + $0x4a0] sm:$0xff]
    %v189 = vld [vmem:[#allocation2 + $0x4a8] sm:$0xff]
    %v190 = vld [vmem:[#allocation2 + $0x4b0] sm:$0xff]
    %v191 = vld [vmem:[#allocation2 + $0x4b8] sm:$0xff]
    %v192 = vld [vmem:[#allocation2 + $0x4c0] sm:$0xff]
    %v193 = vld [vmem:[#allocation2 + $0x4c8] sm:$0xff]
    %v194 = vld [vmem:[#allocation2 + $0x4d0] sm:$0xff]
    %v195 = vld [vmem:[#allocation2 + $0x4d8] sm:$0xff]
    %v196 = vld [vmem:[#allocation2 + $0x4e0] sm:$0xff]
    %v197 = vld [vmem:[#allocation2 + $0x4e8] sm:$0xff]
    %v198 = vld [vmem:[#allocation2 + $0x4f0] sm:$0xff]
    %v199 = vld [vmem:[#allocation2 + $0x4f8] sm:$0xff]
    %v200 = vld [vmem:[#allocation2 + $0x500] sm:$0xff]
    %v201 = vld [vmem:[#allocation2 + $0x508] sm:$0xff]
    %v202 = vld [vmem:[#allocation2 + $0x510] sm:$0xff]
    %v203 = vld [vmem:[#allocation2 + $0x518] sm:$0xff]
    %v204 = vld [vmem:[#allocation2 + $0x520] sm:$0xff]
    %v205 = vld [vmem:[#allocation2 + $0x528] sm:$0xff]
    %v206 = vld [vmem:[#allocation2 + $0x530] sm:$0xff]
    %v207 = vld [vmem:[#allocation2 + $0x538] sm:$0xff]
    %v208 = vld [vmem:[#allocation2 + $0x540] sm:$0xff]
    %v209 = vld [vmem:[#allocation2 + $0x548] sm:$0xff]
    %v210 = vld [vmem:[#allocation2 + $0x550] sm:$0xff]
    %v211 = vld [vmem:[#allocation2 + $0x558] sm:$0xff]
    %v212 = vld [vmem:[#allocation2 + $0x560] sm:$0xff]
    %v213 = vld [vmem:[#allocation2 + $0x568] sm:$0xff]
    %v214 = vld [vmem:[#allocation2 + $0x570] sm:$0xff]
    %v215 = vld [vmem:[#allocation2 + $0x578] sm:$0xff]
    %v216 = vld [vmem:[#allocation2 + $0x580] sm:$0xff]
    %v217 = vld [vmem:[#allocation2 + $0x588] sm:$0xff]
    %v218 = vld [vmem:[#allocation2 + $0x590] sm:$0xff]
    %v219 = vld [vmem:[#allocation2 + $0x598] sm:$0xff]
    %v220 = vld [vmem:[#allocation2 + $0x5a0] sm:$0xff]
    %v221 = vld [vmem:[#allocation2 + $0x5a8] sm:$0xff]
    %v222 = vld [vmem:[#allocation2 + $0x5b0] sm:$0xff]
    %v223 = vld [vmem:[#allocation2 + $0x5b8] sm:$0xff]
    %v224 = vld [vmem:[#allocation2 + $0x5c0] sm:$0xff]
    %v225 = vld [vmem:[#allocation2 + $0x5c8] sm:$0xff]
    %v226 = vld [vmem:[#allocation2 + $0x5d0] sm:$0xff]
    %v227 = vld [vmem:[#allocation2 + $0x5d8] sm:$0xff]
    %v228 = vld [vmem:[#allocation2 + $0x5e0] sm:$0xff]
    %v229 = vld [vmem:[#allocation2 + $0x5e8] sm:$0xff]
    %v230 = vld [vmem:[#allocation2 + $0x5f0] sm:$0xff]
    %v231 = vld [vmem:[#allocation2 + $0x5f8] sm:$0xff]
    %v232 = vld [vmem:[#allocation2 + $0x600] sm:$0xff]
    %v233 = vld [vmem:[#allocation2 + $0x608] sm:$0xff]
    %v234 = vld [vmem:[#allocation2 + $0x610] sm:$0xff]
    %v235 = vld [vmem:[#allocation2 + $0x618] sm:$0xff]
    %v236 = vld [vmem:[#allocation2 + $0x620] sm:$0xff]
    %v237 = vld [vmem:[#allocation2 + $0x628] sm:$0xff]
    %v238 = vld [vmem:[#allocation2 + $0x630] sm:$0xff]
    %v239 = vld [vmem:[#allocation2 + $0x638] sm:$0xff]
    %v240 = vld [vmem:[#allocation2 + $0x640] sm:$0xff]
    %v241 = vld [vmem:[#allocation2 + $0x648] sm:$0xff]
    %v242 = vld [vmem:[#allocation2 + $0x650] sm:$0xff]
    %v243 = vld [vmem:[#allocation2 + $0x658] sm:$0xff]
    %v244 = vld [vmem:[#allocation2 + $0x660] sm:$0xff]
    %v245 = vld [vmem:[#allocation2 + $0x668] sm:$0xff]
    %v246 = vld [vmem:[#allocation2 + $0x670] sm:$0xff]
    %v247 = vld [vmem:[#allocation2 + $0x678] sm:$0xff]
    %v248 = vld [vmem:[#allocation2 + $0x680] sm:$0xff]
    %v249 = vld [vmem:[#allocation2 + $0x688] sm:$0xff]
    %v250 = vld [vmem:[#allocation2 + $0x690] sm:$0xff]
    %v251 = vld [vmem:[#allocation2 + $0x698] sm:$0xff]
    %v252 = vld [vmem:[#allocation2 + $0x6a0] sm:$0xff]
    %v253 = vld [vmem:[#allocation2 + $0x6a8] sm:$0xff]
    %v254 = vld [vmem:[#allocation2 + $0x6b0] sm:$0xff]
    %v255 = vld [vmem:[#allocation2 + $0x6b8] sm:$0xff]
    %v256 = vld [vmem:[#allocation2 + $0x6c0] sm:$0xff]
    %v257 = vld [vmem:[#allocation2 + $0x6c8] sm:$0xff]
    %v258 = vld [vmem:[#allocation2 + $0x6d0] sm:$0xff]
    %v259 = vld [vmem:[#allocation2 + $0x6d8] sm:$0xff]
    %v260 = vld [vmem:[#allocation2 + $0x6e0] sm:$0xff]
    %v261 = vld [vmem:[#allocation2 + $0x6e8] sm:$0xff]
    %v262 = vld [vmem:[#allocation2 + $0x6f0] sm:$0xff]
    %v263 = vld [vmem:[#allocation2 + $0x6f8] sm:$0xff]
    %v264 = vld [vmem:[#allocation2 + $0x700] sm:$0xff]
    %v265 = vld [vmem:[#allocation2 + $0x708] sm:$0xff]
    %v266 = vld [vmem:[#allocation2 + $0x710] sm:$0xff]
    %v267 = vld [vmem:[#allocation2 + $0x718] sm:$0xff]
    %v268 = vld [vmem:[#allocation2 + $0x720] sm:$0xff]
    %v269 = vld [vmem:[#allocation2 + $0x728] sm:$0xff]
    %v270 = vld [vmem:[#allocation2 + $0x730] sm:$0xff]
    %v271 = vld [vmem:[#allocation2 + $0x738] sm:$0xff]
    %v272 = vld [vmem:[#allocation2 + $0x740] sm:$0xff]
    %v273 = vld [vmem:[#allocation2 + $0x748] sm:$0xff]
    %v274 = vld [vmem:[#allocation2 + $0x750] sm:$0xff]
    %v275 = vld [vmem:[#allocation2 + $0x758] sm:$0xff]
    %v276 = vld [vmem:[#allocation2 + $0x760] sm:$0xff]
    %v277 = vld [vmem:[#allocation2 + $0x768] sm:$0xff]
    %v278 = vld [vmem:[#allocation2 + $0x770] sm:$0xff]
    %v279 = vld [vmem:[#allocation2 + $0x778] sm:$0xff]
    %v280 = vld [vmem:[#allocation2 + $0x780] sm:$0xff]
    %v281 = vld [vmem:[#allocation2 + $0x788] sm:$0xff]
    %v282 = vld [vmem:[#allocation2 + $0x790] sm:$0xff]
    %v283 = vld [vmem:[#allocation2 + $0x798] sm:$0xff]
    %v284 = vld [vmem:[#allocation2 + $0x7a0] sm:$0xff]
    %v285 = vld [vmem:[#allocation2 + $0x7a8] sm:$0xff]
    %v286 = vld [vmem:[#allocation2 + $0x7b0] sm:$0xff]
    %v287 = vld [vmem:[#allocation2 + $0x7b8] sm:$0xff]
    %v288 = vld [vmem:[#allocation2 + $0x7c0] sm:$0xff]
    %v289 = vld [vmem:[#allocation2 + $0x7c8] sm:$0xff]
    %v290 = vld [vmem:[#allocation2 + $0x7d0] sm:$0xff]
    %v291 = vld [vmem:[#allocation2 + $0x7d8] sm:$0xff]
    %v292 = vld [vmem:[#allocation2 + $0x7e0] sm:$0xff]
    %v293 = vld [vmem:[#allocation2 + $0x7e8] sm:$0xff]
    %v294 = vld [vmem:[#allocation2 + $0x7f0] sm:$0xff]
    %v295 = vld [vmem:[#allocation2 + $0x7f8] sm:$0xff]
    %v296 = vld [vmem:[#allocation5] sm:$0xff]
    %v297 = vld [vmem:[#allocation5 + $0x8] sm:$0xff]
    %v298 = vld [vmem:[#allocation5 + $0x10] sm:$0xff]
    %v299 = vld [vmem:[#allocation5 + $0x18] sm:$0xff]
    %v300 = vld [vmem:[#allocation5 + $0x20] sm:$0xff]
    %v301 = vld [vmem:[#allocation5 + $0x28] sm:$0xff]
    %v302 = vld [vmem:[#allocation5 + $0x30] sm:$0xff]
    %v303 = vld [vmem:[#allocation5 + $0x38] sm:$0xff]
    %v304 = vld [vmem:[#allocation5 + $0x40] sm:$0xff]
    %v305 = vld [vmem:[#allocation5 + $0x48] sm:$0xff]
    %v306 = vld [vmem:[#allocation5 + $0x50] sm:$0xff]
    %v307 = vld [vmem:[#allocation5 + $0x58] sm:$0xff]
    %v308 = vld [vmem:[#allocation5 + $0x60] sm:$0xff]
    %v309 = vld [vmem:[#allocation5 + $0x68] sm:$0xff]
    %v310 = vld [vmem:[#allocation5 + $0x70] sm:$0xff]
    %v311 = vld [vmem:[#allocation5 + $0x78] sm:$0xff]
    %v312 = vld [vmem:[#allocation5 + $0x80] sm:$0xff]
    %v313 = vld [vmem:[#allocation5 + $0x88] sm:$0xff]
    %v314 = vld [vmem:[#allocation5 + $0x90] sm:$0xff]
    %v315 = vld [vmem:[#allocation5 + $0x98] sm:$0xff]
    %v316 = vld [vmem:[#allocation5 + $0xa0] sm:$0xff]
    %v317 = vld [vmem:[#allocation5 + $0xa8] sm:$0xff]
    %v318 = vld [vmem:[#allocation5 + $0xb0] sm:$0xff]
    %v319 = vld [vmem:[#allocation5 + $0xb8] sm:$0xff]
    %v320 = vld [vmem:[#allocation5 + $0xc0] sm:$0xff]
    %v321 = vld [vmem:[#allocation5 + $0xc8] sm:$0xff]
    %v322 = vld [vmem:[#allocation5 + $0xd0] sm:$0xff]
    %v323 = vld [vmem:[#allocation5 + $0xd8] sm:$0xff]
    %v324 = vld [vmem:[#allocation5 + $0xe0] sm:$0xff]
    %v325 = vld [vmem:[#allocation5 + $0xe8] sm:$0xff]
    %v326 = vld [vmem:[#allocation5 + $0xf0] sm:$0xff]
    %v327 = vld [vmem:[#allocation5 + $0xf8] sm:$0xff]
    %v328 = vld [vmem:[#allocation5 + $0x100] sm:$0xff]
    %v329 = vld [vmem:[#allocation5 + $0x108] sm:$0xff]
    %v330 = vld [vmem:[#allocation5 + $0x110] sm:$0xff]
    %v331 = vld [vmem:[#allocation5 + $0x118] sm:$0xff]
    %v332 = vld [vmem:[#allocation5 + $0x120] sm:$0xff]
    %v333 = vld [vmem:[#allocation5 + $0x128] sm:$0xff]
    %v334 = vld [vmem:[#allocation5 + $0x130] sm:$0xff]
    %v335 = vld [vmem:[#allocation5 + $0x138] sm:$0xff]
    %v336 = vld [vmem:[#allocation5 + $0x140] sm:$0xff]
    %v337 = vld [vmem:[#allocation5 + $0x148] sm:$0xff]
    %v338 = vld [vmem:[#allocation5 + $0x150] sm:$0xff]
    %v339 = vld [vmem:[#allocation5 + $0x158] sm:$0xff]
    %v340 = vld [vmem:[#allocation5 + $0x160] sm:$0xff]
    %v341 = vld [vmem:[#allocation5 + $0x168] sm:$0xff]
    %v342 = vld [vmem:[#allocation5 + $0x170] sm:$0xff]
    %v343 = vld [vmem:[#allocation5 + $0x178] sm:$0xff]
    %v344 = vld [vmem:[#allocation5 + $0x180] sm:$0xff]
    %v345 = vld [vmem:[#allocation5 + $0x188] sm:$0xff]
    %v346 = vld [vmem:[#allocation5 + $0x190] sm:$0xff]
    %v347 = vld [vmem:[#allocation5 + $0x198] sm:$0xff]
    %v348 = vld [vmem:[#allocation5 + $0x1a0] sm:$0xff]
    %v349 = vld [vmem:[#allocation5 + $0x1a8] sm:$0xff]
    %v350 = vld [vmem:[#allocation5 + $0x1b0] sm:$0xff]
    %v351 = vld [vmem:[#allocation5 + $0x1b8] sm:$0xff]
    %v352 = vld [vmem:[#allocation5 + $0x1c0] sm:$0xff]
    %v353 = vld [vmem:[#allocation5 + $0x1c8] sm:$0xff]
    %v354 = vld [vmem:[#allocation5 + $0x1d0] sm:$0xff]
    %v355 = vld [vmem:[#allocation5 + $0x1d8] sm:$0xff]
    %v356 = vld [vmem:[#allocation5 + $0x1e0] sm:$0xff]
    %v357 = vld [vmem:[#allocation5 + $0x1e8] sm:$0xff]
    %v358 = vld [vmem:[#allocation5 + $0x1f0] sm:$0xff]
    %v359 = vld [vmem:[#allocation5 + $0x1f8] sm:$0xff]
    %v360 = vld [vmem:[#allocation5 + $0x200] sm:$0xff]
    %v361 = vld [vmem:[#allocation5 + $0x208] sm:$0xff]
    %v362 = vld [vmem:[#allocation5 + $0x210] sm:$0xff]
    %v363 = vld [vmem:[#allocation5 + $0x218] sm:$0xff]
    %v364 = vld [vmem:[#allocation5 + $0x220] sm:$0xff]
    %v365 = vld [vmem:[#allocation5 + $0x228] sm:$0xff]
    %v366 = vld [vmem:[#allocation5 + $0x230] sm:$0xff]
    %v367 = vld [vmem:[#allocation5 + $0x238] sm:$0xff]
    %v368 = vld [vmem:[#allocation5 + $0x240] sm:$0xff]
    %v369 = vld [vmem:[#allocation5 + $0x248] sm:$0xff]
    %v370 = vld [vmem:[#allocation5 + $0x250] sm:$0xff]
    %v371 = vld [vmem:[#allocation5 + $0x258] sm:$0xff]
    %v372 = vld [vmem:[#allocation5 + $0x260] sm:$0xff]
    %v373 = vld [vmem:[#allocation5 + $0x268] sm:$0xff]
    %v374 = vld [vmem:[#allocation5 + $0x270] sm:$0xff]
    %v375 = vld [vmem:[#allocation5 + $0x278] sm:$0xff]
    %v376 = vld [vmem:[#allocation5 + $0x280] sm:$0xff]
    %v377 = vld [vmem:[#allocation5 + $0x288] sm:$0xff]
    %v378 = vld [vmem:[#allocation5 + $0x290] sm:$0xff]
    %v379 = vld [vmem:[#allocation5 + $0x298] sm:$0xff]
    %v380 = vld [vmem:[#allocation5 + $0x2a0] sm:$0xff]
    %v381 = vld [vmem:[#allocation5 + $0x2a8] sm:$0xff]
    %v382 = vld [vmem:[#allocation5 + $0x2b0] sm:$0xff]
    %v383 = vld [vmem:[#allocation5 + $0x2b8] sm:$0xff]
    %v384 = vld [vmem:[#allocation5 + $0x2c0] sm:$0xff]
    %v385 = vld [vmem:[#allocation5 + $0x2c8] sm:$0xff]
    %v386 = vld [vmem:[#allocation5 + $0x2d0] sm:$0xff]
    %v387 = vld [vmem:[#allocation5 + $0x2d8] sm:$0xff]
    %v388 = vld [vmem:[#allocation5 + $0x2e0] sm:$0xff]
    %v389 = vld [vmem:[#allocation5 + $0x2e8] sm:$0xff]
    %v390 = vld [vmem:[#allocation5 + $0x2f0] sm:$0xff]
    %v391 = vld [vmem:[#allocation5 + $0x2f8] sm:$0xff]
    %v392 = vld [vmem:[#allocation5 + $0x300] sm:$0xff]
    %v393 = vld [vmem:[#allocation5 + $0x308] sm:$0xff]
    %v394 = vld [vmem:[#allocation5 + $0x310] sm:$0xff]
    %v395 = vld [vmem:[#allocation5 + $0x318] sm:$0xff]
    %v396 = vld [vmem:[#allocation5 + $0x320] sm:$0xff]
    %v397 = vld [vmem:[#allocation5 + $0x328] sm:$0xff]
    %v398 = vld [vmem:[#allocation5 + $0x330] sm:$0xff]
    %v399 = vld [vmem:[#allocation5 + $0x338] sm:$0xff]
    %v400 = vld [vmem:[#allocation5 + $0x340] sm:$0xff]
    %v401 = vld [vmem:[#allocation5 + $0x348] sm:$0xff]
    %v402 = vld [vmem:[#allocation5 + $0x350] sm:$0xff]
    %v403 = vld [vmem:[#allocation5 + $0x358] sm:$0xff]
    %v404 = vld [vmem:[#allocation5 + $0x360] sm:$0xff]
    %v405 = vld [vmem:[#allocation5 + $0x368] sm:$0xff]
    %v406 = vld [vmem:[#allocation5 + $0x370] sm:$0xff]
    %v407 = vld [vmem:[#allocation5 + $0x378] sm:$0xff]
    %v408 = vld [vmem:[#allocation5 + $0x380] sm:$0xff]
    %v409 = vld [vmem:[#allocation5 + $0x388] sm:$0xff]
    %v410 = vld [vmem:[#allocation5 + $0x390] sm:$0xff]
    %v411 = vld [vmem:[#allocation5 + $0x398] sm:$0xff]
    %v412 = vld [vmem:[#allocation5 + $0x3a0] sm:$0xff]
    %v413 = vld [vmem:[#allocation5 + $0x3a8] sm:$0xff]
    %v414 = vld [vmem:[#allocation5 + $0x3b0] sm:$0xff]
    %v415 = vld [vmem:[#allocation5 + $0x3b8] sm:$0xff]
    %v416 = vld [vmem:[#allocation5 + $0x3c0] sm:$0xff]
    %v417 = vld [vmem:[#allocation5 + $0x3c8] sm:$0xff]
    %v418 = vld [vmem:[#allocation5 + $0x3d0] sm:$0xff]
    %v419 = vld [vmem:[#allocation5 + $0x3d8] sm:$0xff]
    %v420 = vld [vmem:[#allocation5 + $0x3e0] sm:$0xff]
    %v421 = vld [vmem:[#allocation5 + $0x3e8] sm:$0xff]
    %v422 = vld [vmem:[#allocation5 + $0x3f0] sm:$0xff]
    %v423 = vld [vmem:[#allocation5 + $0x3f8] sm:$0xff]
    %v424 = vld [vmem:[#allocation5 + $0x400] sm:$0xff]
    %v425 = vld [vmem:[#allocation5 + $0x408] sm:$0xff]
    %v426 = vld [vmem:[#allocation5 + $0x410] sm:$0xff]
    %v427 = vld [vmem:[#allocation5 + $0x418] sm:$0xff]
    %v428 = vld [vmem:[#allocation5 + $0x420] sm:$0xff]
    %v429 = vld [vmem:[#allocation5 + $0x428] sm:$0xff]
    %v430 = vld [vmem:[#allocation5 + $0x430] sm:$0xff]
    %v431 = vld [vmem:[#allocation5 + $0x438] sm:$0xff]
    %v432 = vld [vmem:[#allocation5 + $0x440] sm:$0xff]
    %v433 = vld [vmem:[#allocation5 + $0x448] sm:$0xff]
    %v434 = vld [vmem:[#allocation5 + $0x450] sm:$0xff]
    %v435 = vld [vmem:[#allocation5 + $0x458] sm:$0xff]
    %v436 = vld [vmem:[#allocation5 + $0x460] sm:$0xff]
    %v437 = vld [vmem:[#allocation5 + $0x468] sm:$0xff]
    %v438 = vld [vmem:[#allocation5 + $0x470] sm:$0xff]
    %v439 = vld [vmem:[#allocation5 + $0x478] sm:$0xff]
    %v440 = vld [vmem:[#allocation5 + $0x480] sm:$0xff]
    %v441 = vld [vmem:[#allocation5 + $0x488] sm:$0xff]
    %v442 = vld [vmem:[#allocation5 + $0x490] sm:$0xff]
    %v443 = vld [vmem:[#allocation5 + $0x498] sm:$0xff]
    %v444 = vld [vmem:[#allocation5 + $0x4a0] sm:$0xff]
    %v445 = vld [vmem:[#allocation5 + $0x4a8] sm:$0xff]
    %v446 = vld [vmem:[#allocation5 + $0x4b0] sm:$0xff]
    %v447 = vld [vmem:[#allocation5 + $0x4b8] sm:$0xff]
    %v448 = vld [vmem:[#allocation5 + $0x4c0] sm:$0xff]
    %v449 = vld [vmem:[#allocation5 + $0x4c8] sm:$0xff]
    %v450 = vld [vmem:[#allocation5 + $0x4d0] sm:$0xff]
    %v451 = vld [vmem:[#allocation5 + $0x4d8] sm:$0xff]
    %v452 = vld [vmem:[#allocation5 + $0x4e0] sm:$0xff]
    %v453 = vld [vmem:[#allocation5 + $0x4e8] sm:$0xff]
    %v454 = vld [vmem:[#allocation5 + $0x4f0] sm:$0xff]
    %v455 = vld [vmem:[#allocation5 + $0x4f8] sm:$0xff]
    %v456 = vld [vmem:[#allocation5 + $0x500] sm:$0xff]
    %v457 = vld [vmem:[#allocation5 + $0x508] sm:$0xff]
    %v458 = vld [vmem:[#allocation5 + $0x510] sm:$0xff]
    %v459 = vld [vmem:[#allocation5 + $0x518] sm:$0xff]
    %v460 = vld [vmem:[#allocation5 + $0x520] sm:$0xff]
    %v461 = vld [vmem:[#allocation5 + $0x528] sm:$0xff]
    %v462 = vld [vmem:[#allocation5 + $0x530] sm:$0xff]
    %v463 = vld [vmem:[#allocation5 + $0x538] sm:$0xff]
    %v464 = vld [vmem:[#allocation5 + $0x540] sm:$0xff]
    %v465 = vld [vmem:[#allocation5 + $0x548] sm:$0xff]
    %v466 = vld [vmem:[#allocation5 + $0x550] sm:$0xff]
    %v467 = vld [vmem:[#allocation5 + $0x558] sm:$0xff]
    %v468 = vld [vmem:[#allocation5 + $0x560] sm:$0xff]
    %v469 = vld [vmem:[#allocation5 + $0x568] sm:$0xff]
    %v470 = vld [vmem:[#allocation5 + $0x570] sm:$0xff]
    %v471 = vld [vmem:[#allocation5 + $0x578] sm:$0xff]
    %v472 = vld [vmem:[#allocation5 + $0x580] sm:$0xff]
    %v473 = vld [vmem:[#allocation5 + $0x588] sm:$0xff]
    %v474 = vld [vmem:[#allocation5 + $0x590] sm:$0xff]
    %v475 = vld [vmem:[#allocation5 + $0x598] sm:$0xff]
    %v476 = vld [vmem:[#allocation5 + $0x5a0] sm:$0xff]
    %v477 = vld [vmem:[#allocation5 + $0x5a8] sm:$0xff]
    %v478 = vld [vmem:[#allocation5 + $0x5b0] sm:$0xff]
    %v479 = vld [vmem:[#allocation5 + $0x5b8] sm:$0xff]
    %v480 = vld [vmem:[#allocation5 + $0x5c0] sm:$0xff]
    %v481 = vld [vmem:[#allocation5 + $0x5c8] sm:$0xff]
    %v482 = vld [vmem:[#allocation5 + $0x5d0] sm:$0xff]
    %v483 = vld [vmem:[#allocation5 + $0x5d8] sm:$0xff]
    %v484 = vld [vmem:[#allocation5 + $0x5e0] sm:$0xff]
    %v485 = vld [vmem:[#allocation5 + $0x5e8] sm:$0xff]
    %v486 = vld [vmem:[#allocation5 + $0x5f0] sm:$0xff]
    %v487 = vld [vmem:[#allocation5 + $0x5f8] sm:$0xff]
    %v488 = vld [vmem:[#allocation5 + $0x600] sm:$0xff]
    %v489 = vld [vmem:[#allocation5 + $0x608] sm:$0xff]
    %v490 = vld [vmem:[#allocation5 + $0x610] sm:$0xff]
    %v491 = vld [vmem:[#allocation5 + $0x618] sm:$0xff]
    %v492 = vld [vmem:[#allocation5 + $0x620] sm:$0xff]
    %v493 = vld [vmem:[#allocation5 + $0x628] sm:$0xff]
    %v494 = vld [vmem:[#allocation5 + $0x630] sm:$0xff]
    %v495 = vld [vmem:[#allocation5 + $0x638] sm:$0xff]
    %v496 = vld [vmem:[#allocation5 + $0x640] sm:$0xff]
    %v497 = vld [vmem:[#allocation5 + $0x648] sm:$0xff]
    %v498 = vld [vmem:[#allocation5 + $0x650] sm:$0xff]
    %v499 = vld [vmem:[#allocation5 + $0x658] sm:$0xff]
    %v500 = vld [vmem:[#allocation5 + $0x660] sm:$0xff]
    %v501 = vld [vmem:[#allocation5 + $0x668] sm:$0xff]
    %v502 = vld [vmem:[#allocation5 + $0x670] sm:$0xff]
    %v503 = vld [vmem:[#allocation5 + $0x678] sm:$0xff]
    %v504 = vld [vmem:[#allocation5 + $0x680] sm:$0xff]
    %v505 = vld [vmem:[#allocation5 + $0x688] sm:$0xff]
    %v506 = vld [vmem:[#allocation5 + $0x690] sm:$0xff]
    %v507 = vld [vmem:[#allocation5 + $0x698] sm:$0xff]
    %v508 = vld [vmem:[#allocation5 + $0x6a0] sm:$0xff]
    %v509 = vld [vmem:[#allocation5 + $0x6a8] sm:$0xff]
    %v510 = vld [vmem:[#allocation5 + $0x6b0] sm:$0xff]
    %v511 = vld [vmem:[#allocation5 + $0x6b8] sm:$0xff]
    %v512 = vld [vmem:[#allocation5 + $0x6c0] sm:$0xff]
    %v513 = vld [vmem:[#allocation5 + $0x6c8] sm:$0xff]
    %v514 = vld [vmem:[#allocation5 + $0x6d0] sm:$0xff]
    %v515 = vld [vmem:[#allocation5 + $0x6d8] sm:$0xff]
    %v516 = vld [vmem:[#allocation5 + $0x6e0] sm:$0xff]
    %v517 = vld [vmem:[#allocation5 + $0x6e8] sm:$0xff]
    %v518 = vld [vmem:[#allocation5 + $0x6f0] sm:$0xff]
    %v519 = vld [vmem:[#allocation5 + $0x6f8] sm:$0xff]
    %v520 = vld [vmem:[#allocation5 + $0x700] sm:$0xff]
    %v521 = vld [vmem:[#allocation5 + $0x708] sm:$0xff]
    %v522 = vld [vmem:[#allocation5 + $0x710] sm:$0xff]
    %v523 = vld [vmem:[#allocation5 + $0x718] sm:$0xff]
    %v524 = vld [vmem:[#allocation5 + $0x720] sm:$0xff]
    %v525 = vld [vmem:[#allocation5 + $0x728] sm:$0xff]
    %v526 = vld [vmem:[#allocation5 + $0x730] sm:$0xff]
    %v527 = vld [vmem:[#allocation5 + $0x738] sm:$0xff]
    %v528 = vld [vmem:[#allocation5 + $0x740] sm:$0xff]
    %v529 = vld [vmem:[#allocation5 + $0x748] sm:$0xff]
    %v530 = vld [vmem:[#allocation5 + $0x750] sm:$0xff]
    %v531 = vld [vmem:[#allocation5 + $0x758] sm:$0xff]
    %v532 = vld [vmem:[#allocation5 + $0x760] sm:$0xff]
    %v533 = vld [vmem:[#allocation5 + $0x768] sm:$0xff]
    %v534 = vld [vmem:[#allocation5 + $0x770] sm:$0xff]
    %v535 = vld [vmem:[#allocation5 + $0x778] sm:$0xff]
    %v536 = vld [vmem:[#allocation5 + $0x780] sm:$0xff]
    %v537 = vld [vmem:[#allocation5 + $0x788] sm:$0xff]
    %v538 = vld [vmem:[#allocation5 + $0x790] sm:$0xff]
    %v539 = vld [vmem:[#allocation5 + $0x798] sm:$0xff]
    %v540 = vld [vmem:[#allocation5 + $0x7a0] sm:$0xff]
    %v541 = vld [vmem:[#allocation5 + $0x7a8] sm:$0xff]
    %v542 = vld [vmem:[#allocation5 + $0x7b0] sm:$0xff]
    %v543 = vld [vmem:[#allocation5 + $0x7b8] sm:$0xff]
    %v544 = vld [vmem:[#allocation5 + $0x7c0] sm:$0xff]
    %v545 = vld [vmem:[#allocation5 + $0x7c8] sm:$0xff]
    %v546 = vld [vmem:[#allocation5 + $0x7d0] sm:$0xff]
    %v547 = vld [vmem:[#allocation5 + $0x7d8] sm:$0xff]
    %v548 = vld [vmem:[#allocation5 + $0x7e0] sm:$0xff]
    %v549 = vld [vmem:[#allocation5 + $0x7e8] sm:$0xff]
    %v550 = vld [vmem:[#allocation5 + $0x7f0] sm:$0xff]
    %v551 = vld [vmem:[#allocation5 + $0x7f8] sm:$0xff]
    %v552 = vlaneseq
    %v553 = vshrl.u32 %v552, 7
    %v554 = vadd.s32 %v553, 8
    %v555 = vadd.s32 %v553, 16
    %v556 = vadd.s32 %v553, 24
    %vm557 = vcmp.eq.s32.totalorder %v553, 0
    %vm558 = vcmp.eq.s32.totalorder %v554, 0
    %vm559 = vcmp.eq.s32.totalorder %v555, 0
    %vm560 = vcmp.eq.s32.totalorder %v556, 0
    %v561 = vrot.slane %v40, 7
    %v562 = vrot.slane %v41, 7
    %v563 = vrot.slane %v48, 7
    %v564 = vrot.slane %v49, 7
    %v565 = vrot.slane %v56, 7
    %v566 = vrot.slane %v57, 7
    %v567 = vrot.slane %v64, 7
    %v568 = vrot.slane %v65, 7
    %v569 = vrot.slane %v72, 7
    %v570 = vrot.slane %v73, 7
    %v571 = vrot.slane %v80, 7
    %v572 = vrot.slane %v81, 7
    %v573 = vrot.slane %v88, 7
    %v574 = vrot.slane %v89, 7
    %v575 = vrot.slane %v96, 7
    %v576 = vrot.slane %v97, 7
    %v577 = vrot.slane %v104, 7
    %v578 = vrot.slane %v105, 7
    %v579 = vrot.slane %v112, 7
    %v580 = vrot.slane %v113, 7
    %v581 = vrot.slane %v120, 7
    %v582 = vrot.slane %v121, 7
    %v583 = vrot.slane %v128, 7
    %v584 = vrot.slane %v129, 7
    %v585 = vrot.slane %v136, 7
    %v586 = vrot.slane %v137, 7
    %v587 = vrot.slane %v144, 7
    %v588 = vrot.slane %v145, 7
    %v589 = vrot.slane %v152, 7
    %v590 = vrot.slane %v153, 7
    %v591 = vrot.slane %v160, 7
    %v592 = vrot.slane %v161, 7
    %v593 = vrot.slane %v168, 7
    %v594 = vrot.slane %v169, 7
    %v595 = vrot.slane %v176, 7
    %v596 = vrot.slane %v177, 7
    %v597 = vrot.slane %v184, 7
    %v598 = vrot.slane %v185, 7
    %v599 = vrot.slane %v192, 7
    %v600 = vrot.slane %v193, 7
    %v601 = vrot.slane %v200, 7
    %v602 = vrot.slane %v201, 7
    %v603 = vrot.slane %v208, 7
    %v604 = vrot.slane %v209, 7
    %v605 = vrot.slane %v216, 7
    %v606 = vrot.slane %v217, 7
    %v607 = vrot.slane %v224, 7
    %v608 = vrot.slane %v225, 7
    %v609 = vrot.slane %v232, 7
    %v610 = vrot.slane %v233, 7
    %v611 = vrot.slane %v240, 7
    %v612 = vrot.slane %v241, 7
    %v613 = vrot.slane %v248, 7
    %v614 = vrot.slane %v249, 7
    %v615 = vrot.slane %v256, 7
    %v616 = vrot.slane %v257, 7
    %v617 = vrot.slane %v264, 7
    %v618 = vrot.slane %v265, 7
    %v619 = vrot.slane %v272, 7
    %v620 = vrot.slane %v273, 7
    %v621 = vrot.slane %v280, 7
    %v622 = vrot.slane %v281, 7
    %v623 = vrot.slane %v288, 7
    %v624 = vrot.slane %v289, 7
    %v625 = vrot.slane %v42, 7
    %v626 = vrot.slane %v43, 7
    %v627 = vrot.slane %v50, 7
    %v628 = vrot.slane %v51, 7
    %v629 = vrot.slane %v58, 7
    %v630 = vrot.slane %v59, 7
    %v631 = vrot.slane %v66, 7
    %v632 = vrot.slane %v67, 7
    %v633 = vrot.slane %v74, 7
    %v634 = vrot.slane %v75, 7
    %v635 = vrot.slane %v82, 7
    %v636 = vrot.slane %v83, 7
    %v637 = vrot.slane %v90, 7
    %v638 = vrot.slane %v91, 7
    %v639 = vrot.slane %v98, 7
    %v640 = vrot.slane %v99, 7
    %v641 = vrot.slane %v106, 7
    %v642 = vrot.slane %v107, 7
    %v643 = vrot.slane %v114, 7
    %v644 = vrot.slane %v115, 7
    %v645 = vrot.slane %v122, 7
    %v646 = vrot.slane %v123, 7
    %v647 = vrot.slane %v130, 7
    %v648 = vrot.slane %v131, 7
    %v649 = vrot.slane %v138, 7
    %v650 = vrot.slane %v139, 7
    %v651 = vrot.slane %v146, 7
    %v652 = vrot.slane %v147, 7
    %v653 = vrot.slane %v154, 7
    %v654 = vrot.slane %v155, 7
    %v655 = vrot.slane %v162, 7
    %v656 = vrot.slane %v163, 7
    %v657 = vrot.slane %v170, 7
    %v658 = vrot.slane %v171, 7
    %v659 = vrot.slane %v178, 7
    %v660 = vrot.slane %v179, 7
    %v661 = vrot.slane %v186, 7
    %v662 = vrot.slane %v187, 7
    %v663 = vrot.slane %v194, 7
    %v664 = vrot.slane %v195, 7
    %v665 = vrot.slane %v202, 7
    %v666 = vrot.slane %v203, 7
    %v667 = vrot.slane %v210, 7
    %v668 = vrot.slane %v211, 7
    %v669 = vrot.slane %v218, 7
    %v670 = vrot.slane %v219, 7
    %v671 = vrot.slane %v226, 7
    %v672 = vrot.slane %v227, 7
    %v673 = vrot.slane %v234, 7
    %v674 = vrot.slane %v235, 7
    %v675 = vrot.slane %v242, 7
    %v676 = vrot.slane %v243, 7
    %v677 = vrot.slane %v250, 7
    %v678 = vrot.slane %v251, 7
    %v679 = vrot.slane %v258, 7
    %v680 = vrot.slane %v259, 7
    %v681 = vrot.slane %v266, 7
    %v682 = vrot.slane %v267, 7
    %v683 = vrot.slane %v274, 7
    %v684 = vrot.slane %v275, 7
    %v685 = vrot.slane %v282, 7
    %v686 = vrot.slane %v283, 7
    %v687 = vrot.slane %v290, 7
    %v688 = vrot.slane %v291, 7
    %v689 = vrot.slane %v44, 7
    %v690 = vrot.slane %v45, 7
    %v691 = vrot.slane %v52, 7
    %v692 = vrot.slane %v53, 7
    %v693 = vrot.slane %v60, 7
    %v694 = vrot.slane %v61, 7
    %v695 = vrot.slane %v68, 7
    %v696 = vrot.slane %v69, 7
    %v697 = vrot.slane %v76, 7
    %v698 = vrot.slane %v77, 7
    %v699 = vrot.slane %v84, 7
    %v700 = vrot.slane %v85, 7
    %v701 = vrot.slane %v92, 7
    %v702 = vrot.slane %v93, 7
    %v703 = vrot.slane %v100, 7
    %v704 = vrot.slane %v101, 7
    %v705 = vrot.slane %v108, 7
    %v706 = vrot.slane %v109, 7
    %v707 = vrot.slane %v116, 7
    %v708 = vrot.slane %v117, 7
    %v709 = vrot.slane %v124, 7
    %v710 = vrot.slane %v125, 7
    %v711 = vrot.slane %v132, 7
    %v712 = vrot.slane %v133, 7
    %v713 = vrot.slane %v140, 7
    %v714 = vrot.slane %v141, 7
    %v715 = vrot.slane %v148, 7
    %v716 = vrot.slane %v149, 7
    %v717 = vrot.slane %v156, 7
    %v718 = vrot.slane %v157, 7
    %v719 = vrot.slane %v164, 7
    %v720 = vrot.slane %v165, 7
    %v721 = vrot.slane %v172, 7
    %v722 = vrot.slane %v173, 7
    %v723 = vrot.slane %v180, 7
    %v724 = vrot.slane %v181, 7
    %v725 = vrot.slane %v188, 7
    %v726 = vrot.slane %v189, 7
    %v727 = vrot.slane %v196, 7
    %v728 = vrot.slane %v197, 7
    %v729 = vrot.slane %v204, 7
    %v730 = vrot.slane %v205, 7
    %v731 = vrot.slane %v212, 7
    %v732 = vrot.slane %v213, 7
    %v733 = vrot.slane %v220, 7
    %v734 = vrot.slane %v221, 7
    %v735 = vrot.slane %v228, 7
    %v736 = vrot.slane %v229, 7
    %v737 = vrot.slane %v236, 7
    %v738 = vrot.slane %v237, 7
    %v739 = vrot.slane %v244, 7
    %v740 = vrot.slane %v245, 7
    %v741 = vrot.slane %v252, 7
    %v742 = vrot.slane %v253, 7
    %v743 = vrot.slane %v260, 7
    %v744 = vrot.slane %v261, 7
    %v745 = vrot.slane %v268, 7
    %v746 = vrot.slane %v269, 7
    %v747 = vrot.slane %v276, 7
    %v748 = vrot.slane %v277, 7
    %v749 = vrot.slane %v284, 7
    %v750 = vrot.slane %v285, 7
    %v751 = vrot.slane %v292, 7
    %v752 = vrot.slane %v293, 7
    %v753 = vrot.slane %v46, 7
    %v754 = vrot.slane %v47, 7
    %v755 = vrot.slane %v54, 7
    %v756 = vrot.slane %v55, 7
    %v757 = vrot.slane %v62, 7
    %v758 = vrot.slane %v63, 7
    %v759 = vrot.slane %v70, 7
    %v760 = vrot.slane %v71, 7
    %v761 = vrot.slane %v78, 7
    %v762 = vrot.slane %v79, 7
    %v763 = vrot.slane %v86, 7
    %v764 = vrot.slane %v87, 7
    %v765 = vrot.slane %v94, 7
    %v766 = vrot.slane %v95, 7
    %v767 = vrot.slane %v102, 7
    %v768 = vrot.slane %v103, 7
    %v769 = vrot.slane %v110, 7
    %v770 = vrot.slane %v111, 7
    %v771 = vrot.slane %v118, 7
    %v772 = vrot.slane %v119, 7
    %v773 = vrot.slane %v126, 7
    %v774 = vrot.slane %v127, 7
    %v775 = vrot.slane %v134, 7
    %v776 = vrot.slane %v135, 7
    %v777 = vrot.slane %v142, 7
    %v778 = vrot.slane %v143, 7
    %v779 = vrot.slane %v150, 7
    %v780 = vrot.slane %v151, 7
    %v781 = vrot.slane %v158, 7
    %v782 = vrot.slane %v159, 7
    %v783 = vrot.slane %v166, 7
    %v784 = vrot.slane %v167, 7
    %v785 = vrot.slane %v174, 7
    %v786 = vrot.slane %v175, 7
    %v787 = vrot.slane %v182, 7
    %v788 = vrot.slane %v183, 7
    %v789 = vrot.slane %v190, 7
    %v790 = vrot.slane %v191, 7
    %v791 = vrot.slane %v198, 7
    %v792 = vrot.slane %v199, 7
    %v793 = vrot.slane %v206, 7
    %v794 = vrot.slane %v207, 7
    %v795 = vrot.slane %v214, 7
    %v796 = vrot.slane %v215, 7
    %v797 = vrot.slane %v222, 7
    %v798 = vrot.slane %v223, 7
    %v799 = vrot.slane %v230, 7
    %v800 = vrot.slane %v231, 7
    %v801 = vrot.slane %v238, 7
    %v802 = vrot.slane %v239, 7
    %v803 = vrot.slane %v246, 7
    %v804 = vrot.slane %v247, 7
    %v805 = vrot.slane %v254, 7
    %v806 = vrot.slane %v255, 7
    %v807 = vrot.slane %v262, 7
    %v808 = vrot.slane %v263, 7
    %v809 = vrot.slane %v270, 7
    %v810 = vrot.slane %v271, 7
    %v811 = vrot.slane %v278, 7
    %v812 = vrot.slane %v279, 7
    %v813 = vrot.slane %v286, 7
    %v814 = vrot.slane %v287, 7
    %v815 = vrot.slane %v294, 7
    %v816 = vrot.slane %v295, 7
    %vm817 = vcmp.lt.s32.totalorder %v553, 1
    %v818 = vsel %vm817, %v689, %v753
    %v819 = vsel %vm817, %v690, %v754
    %v820 = vsel %vm817, %v691, %v755
    %v821 = vsel %vm817, %v692, %v756
    %v822 = vsel %vm817, %v693, %v757
    %v823 = vsel %vm817, %v694, %v758
    %v824 = vsel %vm817, %v695, %v759
    %v825 = vsel %vm817, %v696, %v760
    %v826 = vsel %vm817, %v697, %v761
    %v827 = vsel %vm817, %v698, %v762
    %v828 = vsel %vm817, %v699, %v763
    %v829 = vsel %vm817, %v700, %v764
    %v830 = vsel %vm817, %v701, %v765
    %v831 = vsel %vm817, %v702, %v766
    %v832 = vsel %vm817, %v703, %v767
    %v833 = vsel %vm817, %v704, %v768
    %v834 = vsel %vm817, %v705, %v769
    %v835 = vsel %vm817, %v706, %v770
    %v836 = vsel %vm817, %v707, %v771
    %v837 = vsel %vm817, %v708, %v772
    %v838 = vsel %vm817, %v709, %v773
    %v839 = vsel %vm817, %v710, %v774
    %v840 = vsel %vm817, %v711, %v775
    %v841 = vsel %vm817, %v712, %v776
    %v842 = vsel %vm817, %v713, %v777
    %v843 = vsel %vm817, %v714, %v778
    %v844 = vsel %vm817, %v715, %v779
    %v845 = vsel %vm817, %v716, %v780
    %v846 = vsel %vm817, %v717, %v781
    %v847 = vsel %vm817, %v718, %v782
    %v848 = vsel %vm817, %v719, %v783
    %v849 = vsel %vm817, %v720, %v784
    %v850 = vsel %vm817, %v721, %v785
    %v851 = vsel %vm817, %v722, %v786
    %v852 = vsel %vm817, %v723, %v787
    %v853 = vsel %vm817, %v724, %v788
    %v854 = vsel %vm817, %v725, %v789
    %v855 = vsel %vm817, %v726, %v790
    %v856 = vsel %vm817, %v727, %v791
    %v857 = vsel %vm817, %v728, %v792
    %v858 = vsel %vm817, %v729, %v793
    %v859 = vsel %vm817, %v730, %v794
    %v860 = vsel %vm817, %v731, %v795
    %v861 = vsel %vm817, %v732, %v796
    %v862 = vsel %vm817, %v733, %v797
    %v863 = vsel %vm817, %v734, %v798
    %v864 = vsel %vm817, %v735, %v799
    %v865 = vsel %vm817, %v736, %v800
    %v866 = vsel %vm817, %v737, %v801
    %v867 = vsel %vm817, %v738, %v802
    %v868 = vsel %vm817, %v739, %v803
    %v869 = vsel %vm817, %v740, %v804
    %v870 = vsel %vm817, %v741, %v805
    %v871 = vsel %vm817, %v742, %v806
    %v872 = vsel %vm817, %v743, %v807
    %v873 = vsel %vm817, %v744, %v808
    %v874 = vsel %vm817, %v745, %v809
    %v875 = vsel %vm817, %v746, %v810
    %v876 = vsel %vm817, %v747, %v811
    %v877 = vsel %vm817, %v748, %v812
    %v878 = vsel %vm817, %v749, %v813
    %v879 = vsel %vm817, %v750, %v814
    %v880 = vsel %vm817, %v751, %v815
    %v881 = vsel %vm817, %v752, %v816
    %v882 = vsel %vm817, %v625, %v689
    %v883 = vsel %vm817, %v626, %v690
    %v884 = vsel %vm817, %v627, %v691
    %v885 = vsel %vm817, %v628, %v692
    %v886 = vsel %vm817, %v629, %v693
    %v887 = vsel %vm817, %v630, %v694
    %v888 = vsel %vm817, %v631, %v695
    %v889 = vsel %vm817, %v632, %v696
    %v890 = vsel %vm817, %v633, %v697
    %v891 = vsel %vm817, %v634, %v698
    %v892 = vsel %vm817, %v635, %v699
    %v893 = vsel %vm817, %v636, %v700
    %v894 = vsel %vm817, %v637, %v701
    %v895 = vsel %vm817, %v638, %v702
    %v896 = vsel %vm817, %v639, %v703
    %v897 = vsel %vm817, %v640, %v704
    %v898 = vsel %vm817, %v641, %v705
    %v899 = vsel %vm817, %v642, %v706
    %v900 = vsel %vm817, %v643, %v707
    %v901 = vsel %vm817, %v644, %v708
    %v902 = vsel %vm817, %v645, %v709
    %v903 = vsel %vm817, %v646, %v710
    %v904 = vsel %vm817, %v647, %v711
    %v905 = vsel %vm817, %v648, %v712
    %v906 = vsel %vm817, %v649, %v713
    %v907 = vsel %vm817, %v650, %v714
    %v908 = vsel %vm817, %v651, %v715
    %v909 = vsel %vm817, %v652, %v716
    %v910 = vsel %vm817, %v653, %v717
    %v911 = vsel %vm817, %v654, %v718
    %v912 = vsel %vm817, %v655, %v719
    %v913 = vsel %vm817, %v656, %v720
    %v914 = vsel %vm817, %v657, %v721
    %v915 = vsel %vm817, %v658, %v722
    %v916 = vsel %vm817, %v659, %v723
    %v917 = vsel %vm817, %v660, %v724
    %v918 = vsel %vm817, %v661, %v725
    %v919 = vsel %vm817, %v662, %v726
    %v920 = vsel %vm817, %v663, %v727
    %v921 = vsel %vm817, %v664, %v728
    %v922 = vsel %vm817, %v665, %v729
    %v923 = vsel %vm817, %v666, %v730
    %v924 = vsel %vm817, %v667, %v731
    %v925 = vsel %vm817, %v668, %v732
    %v926 = vsel %vm817, %v669, %v733
    %v927 = vsel %vm817, %v670, %v734
    %v928 = vsel %vm817, %v671, %v735
    %v929 = vsel %vm817, %v672, %v736
    %v930 = vsel %vm817, %v673, %v737
    %v931 = vsel %vm817, %v674, %v738
    %v932 = vsel %vm817, %v675, %v739
    %v933 = vsel %vm817, %v676, %v740
    %v934 = vsel %vm817, %v677, %v741
    %v935 = vsel %vm817, %v678, %v742
    %v936 = vsel %vm817, %v679, %v743
    %v937 = vsel %vm817, %v680, %v744
    %v938 = vsel %vm817, %v681, %v745
    %v939 = vsel %vm817, %v682, %v746
    %v940 = vsel %vm817, %v683, %v747
    %v941 = vsel %vm817, %v684, %v748
    %v942 = vsel %vm817, %v685, %v749
    %v943 = vsel %vm817, %v686, %v750
    %v944 = vsel %vm817, %v687, %v751
    %v945 = vsel %vm817, %v688, %v752
    %v946 = vsel %vm817, %v561, %v625
    %v947 = vsel %vm817, %v562, %v626
    %v948 = vsel %vm817, %v563, %v627
    %v949 = vsel %vm817, %v564, %v628
    %v950 = vsel %vm817, %v565, %v629
    %v951 = vsel %vm817, %v566, %v630
    %v952 = vsel %vm817, %v567, %v631
    %v953 = vsel %vm817, %v568, %v632
    %v954 = vsel %vm817, %v569, %v633
    %v955 = vsel %vm817, %v570, %v634
    %v956 = vsel %vm817, %v571, %v635
    %v957 = vsel %vm817, %v572, %v636
    %v958 = vsel %vm817, %v573, %v637
    %v959 = vsel %vm817, %v574, %v638
    %v960 = vsel %vm817, %v575, %v639
    %v961 = vsel %vm817, %v576, %v640
    %v962 = vsel %vm817, %v577, %v641
    %v963 = vsel %vm817, %v578, %v642
    %v964 = vsel %vm817, %v579, %v643
    %v965 = vsel %vm817, %v580, %v644
    %v966 = vsel %vm817, %v581, %v645
    %v967 = vsel %vm817, %v582, %v646
    %v968 = vsel %vm817, %v583, %v647
    %v969 = vsel %vm817, %v584, %v648
    %v970 = vsel %vm817, %v585, %v649
    %v971 = vsel %vm817, %v586, %v650
    %v972 = vsel %vm817, %v587, %v651
    %v973 = vsel %vm817, %v588, %v652
    %v974 = vsel %vm817, %v589, %v653
    %v975 = vsel %vm817, %v590, %v654
    %v976 = vsel %vm817, %v591, %v655
    %v977 = vsel %vm817, %v592, %v656
    %v978 = vsel %vm817, %v593, %v657
    %v979 = vsel %vm817, %v594, %v658
    %v980 = vsel %vm817, %v595, %v659
    %v981 = vsel %vm817, %v596, %v660
    %v982 = vsel %vm817, %v597, %v661
    %v983 = vsel %vm817, %v598, %v662
    %v984 = vsel %vm817, %v599, %v663
    %v985 = vsel %vm817, %v600, %v664
    %v986 = vsel %vm817, %v601, %v665
    %v987 = vsel %vm817, %v602, %v666
    %v988 = vsel %vm817, %v603, %v667
    %v989 = vsel %vm817, %v604, %v668
    %v990 = vsel %vm817, %v605, %v669
    %v991 = vsel %vm817, %v606, %v670
    %v992 = vsel %vm817, %v607, %v671
    %v993 = vsel %vm817, %v608, %v672
    %v994 = vsel %vm817, %v609, %v673
    %v995 = vsel %vm817, %v610, %v674
    %v996 = vsel %vm817, %v611, %v675
    %v997 = vsel %vm817, %v612, %v676
    %v998 = vsel %vm817, %v613, %v677
    %v999 = vsel %vm817, %v614, %v678
    %v1000 = vsel %vm817, %v615, %v679
    %v1001 = vsel %vm817, %v616, %v680
    %v1002 = vsel %vm817, %v617, %v681
    %v1003 = vsel %vm817, %v618, %v682
    %v1004 = vsel %vm817, %v619, %v683
    %v1005 = vsel %vm817, %v620, %v684
    %v1006 = vsel %vm817, %v621, %v685
    %v1007 = vsel %vm817, %v622, %v686
    %v1008 = vsel %vm817, %v623, %v687
    %v1009 = vsel %vm817, %v624, %v688
    %v1010 = vsel %vm817, %v753, %v561
    %v1011 = vsel %vm817, %v754, %v562
    %v1012 = vsel %vm817, %v755, %v563
    %v1013 = vsel %vm817, %v756, %v564
    %v1014 = vsel %vm817, %v757, %v565
    %v1015 = vsel %vm817, %v758, %v566
    %v1016 = vsel %vm817, %v759, %v567
    %v1017 = vsel %vm817, %v760, %v568
    %v1018 = vsel %vm817, %v761, %v569
    %v1019 = vsel %vm817, %v762, %v570
    %v1020 = vsel %vm817, %v763, %v571
    %v1021 = vsel %vm817, %v764, %v572
    %v1022 = vsel %vm817, %v765, %v573
    %v1023 = vsel %vm817, %v766, %v574
    %v1024 = vsel %vm817, %v767, %v575
    %v1025 = vsel %vm817, %v768, %v576
    %v1026 = vsel %vm817, %v769, %v577
    %v1027 = vsel %vm817, %v770, %v578
    %v1028 = vsel %vm817, %v771, %v579
    %v1029 = vsel %vm817, %v772, %v580
    %v1030 = vsel %vm817, %v773, %v581
    %v1031 = vsel %vm817, %v774, %v582
    %v1032 = vsel %vm817, %v775, %v583
    %v1033 = vsel %vm817, %v776, %v584
    %v1034 = vsel %vm817, %v777, %v585
    %v1035 = vsel %vm817, %v778, %v586
    %v1036 = vsel %vm817, %v779, %v587
    %v1037 = vsel %vm817, %v780, %v588
    %v1038 = vsel %vm817, %v781, %v589
    %v1039 = vsel %vm817, %v782, %v590
    %v1040 = vsel %vm817, %v783, %v591
    %v1041 = vsel %vm817, %v784, %v592
    %v1042 = vsel %vm817, %v785, %v593
    %v1043 = vsel %vm817, %v786, %v594
    %v1044 = vsel %vm817, %v787, %v595
    %v1045 = vsel %vm817, %v788, %v596
    %v1046 = vsel %vm817, %v789, %v597
    %v1047 = vsel %vm817, %v790, %v598
    %v1048 = vsel %vm817, %v791, %v599
    %v1049 = vsel %vm817, %v792, %v600
    %v1050 = vsel %vm817, %v793, %v601
    %v1051 = vsel %vm817, %v794, %v602
    %v1052 = vsel %vm817, %v795, %v603
    %v1053 = vsel %vm817, %v796, %v604
    %v1054 = vsel %vm817, %v797, %v605
    %v1055 = vsel %vm817, %v798, %v606
    %v1056 = vsel %vm817, %v799, %v607
    %v1057 = vsel %vm817, %v800, %v608
    %v1058 = vsel %vm817, %v801, %v609
    %v1059 = vsel %vm817, %v802, %v610
    %v1060 = vsel %vm817, %v803, %v611
    %v1061 = vsel %vm817, %v804, %v612
    %v1062 = vsel %vm817, %v805, %v613
    %v1063 = vsel %vm817, %v806, %v614
    %v1064 = vsel %vm817, %v807, %v615
    %v1065 = vsel %vm817, %v808, %v616
    %v1066 = vsel %vm817, %v809, %v617
    %v1067 = vsel %vm817, %v810, %v618
    %v1068 = vsel %vm817, %v811, %v619
    %v1069 = vsel %vm817, %v812, %v620
    %v1070 = vsel %vm817, %v813, %v621
    %v1071 = vsel %vm817, %v814, %v622
    %v1072 = vsel %vm817, %v815, %v623
    %v1073 = vsel %vm817, %v816, %v624
    %v1074 = vsel %vm557, %v40, %v1010
    %v1075 = vsel %vm557, %v41, %v1011
    %v1076 = vsel %vm558, %v42, %v946
    %v1077 = vsel %vm558, %v43, %v947
    %v1078 = vsel %vm559, %v44, %v882
    %v1079 = vsel %vm559, %v45, %v883
    %v1080 = vsel %vm560, %v46, %v818
    %v1081 = vsel %vm560, %v47, %v819
    %v1082 = vsel %vm557, %v48, %v1012
    %v1083 = vsel %vm557, %v49, %v1013
    %v1084 = vsel %vm558, %v50, %v948
    %v1085 = vsel %vm558, %v51, %v949
    %v1086 = vsel %vm559, %v52, %v884
    %v1087 = vsel %vm559, %v53, %v885
    %v1088 = vsel %vm560, %v54, %v820
    %v1089 = vsel %vm560, %v55, %v821
    %v1090 = vsel %vm557, %v56, %v1014
    %v1091 = vsel %vm557, %v57, %v1015
    %v1092 = vsel %vm558, %v58, %v950
    %v1093 = vsel %vm558, %v59, %v951
    %v1094 = vsel %vm559, %v60, %v886
    %v1095 = vsel %vm559, %v61, %v887
    %v1096 = vsel %vm560, %v62, %v822
    %v1097 = vsel %vm560, %v63, %v823
    %v1098 = vsel %vm557, %v64, %v1016
    %v1099 = vsel %vm557, %v65, %v1017
    %v1100 = vsel %vm558, %v66, %v952
    %v1101 = vsel %vm558, %v67, %v953
    %v1102 = vsel %vm559, %v68, %v888
    %v1103 = vsel %vm559, %v69, %v889
    %v1104 = vsel %vm560, %v70, %v824
    %v1105 = vsel %vm560, %v71, %v825
    %v1106 = vsel %vm557, %v72, %v1018
    %v1107 = vsel %vm557, %v73, %v1019
    %v1108 = vsel %vm558, %v74, %v954
    %v1109 = vsel %vm558, %v75, %v955
    %v1110 = vsel %vm559, %v76, %v890
    %v1111 = vsel %vm559, %v77, %v891
    %v1112 = vsel %vm560, %v78, %v826
    %v1113 = vsel %vm560, %v79, %v827
    %v1114 = vsel %vm557, %v80, %v1020
    %v1115 = vsel %vm557, %v81, %v1021
    %v1116 = vsel %vm558, %v82, %v956
    %v1117 = vsel %vm558, %v83, %v957
    %v1118 = vsel %vm559, %v84, %v892
    %v1119 = vsel %vm559, %v85, %v893
    %v1120 = vsel %vm560, %v86, %v828
    %v1121 = vsel %vm560, %v87, %v829
    %v1122 = vsel %vm557, %v88, %v1022
    %v1123 = vsel %vm557, %v89, %v1023
    %v1124 = vsel %vm558, %v90, %v958
    %v1125 = vsel %vm558, %v91, %v959
    %v1126 = vsel %vm559, %v92, %v894
    %v1127 = vsel %vm559, %v93, %v895
    %v1128 = vsel %vm560, %v94, %v830
    %v1129 = vsel %vm560, %v95, %v831
    %v1130 = vsel %vm557, %v96, %v1024
    %v1131 = vsel %vm557, %v97, %v1025
    %v1132 = vsel %vm558, %v98, %v960
    %v1133 = vsel %vm558, %v99, %v961
    %v1134 = vsel %vm559, %v100, %v896
    %v1135 = vsel %vm559, %v101, %v897
    %v1136 = vsel %vm560, %v102, %v832
    %v1137 = vsel %vm560, %v103, %v833
    %v1138 = vsel %vm557, %v104, %v1026
    %v1139 = vsel %vm557, %v105, %v1027
    %v1140 = vsel %vm558, %v106, %v962
    %v1141 = vsel %vm558, %v107, %v963
    %v1142 = vsel %vm559, %v108, %v898
    %v1143 = vsel %vm559, %v109, %v899
    %v1144 = vsel %vm560, %v110, %v834
    %v1145 = vsel %vm560, %v111, %v835
    %v1146 = vsel %vm557, %v112, %v1028
    %v1147 = vsel %vm557, %v113, %v1029
    %v1148 = vsel %vm558, %v114, %v964
    %v1149 = vsel %vm558, %v115, %v965
    %v1150 = vsel %vm559, %v116, %v900
    %v1151 = vsel %vm559, %v117, %v901
    %v1152 = vsel %vm560, %v118, %v836
    %v1153 = vsel %vm560, %v119, %v837
    %v1154 = vsel %vm557, %v120, %v1030
    %v1155 = vsel %vm557, %v121, %v1031
    %v1156 = vsel %vm558, %v122, %v966
    %v1157 = vsel %vm558, %v123, %v967
    %v1158 = vsel %vm559, %v124, %v902
    %v1159 = vsel %vm559, %v125, %v903
    %v1160 = vsel %vm560, %v126, %v838
    %v1161 = vsel %vm560, %v127, %v839
    %v1162 = vsel %vm557, %v128, %v1032
    %v1163 = vsel %vm557, %v129, %v1033
    %v1164 = vsel %vm558, %v130, %v968
    %v1165 = vsel %vm558, %v131, %v969
    %v1166 = vsel %vm559, %v132, %v904
    %v1167 = vsel %vm559, %v133, %v905
    %v1168 = vsel %vm560, %v134, %v840
    %v1169 = vsel %vm560, %v135, %v841
    %v1170 = vsel %vm557, %v136, %v1034
    %v1171 = vsel %vm557, %v137, %v1035
    %v1172 = vsel %vm558, %v138, %v970
    %v1173 = vsel %vm558, %v139, %v971
    %v1174 = vsel %vm559, %v140, %v906
    %v1175 = vsel %vm559, %v141, %v907
    %v1176 = vsel %vm560, %v142, %v842
    %v1177 = vsel %vm560, %v143, %v843
    %v1178 = vsel %vm557, %v144, %v1036
    %v1179 = vsel %vm557, %v145, %v1037
    %v1180 = vsel %vm558, %v146, %v972
    %v1181 = vsel %vm558, %v147, %v973
    %v1182 = vsel %vm559, %v148, %v908
    %v1183 = vsel %vm559, %v149, %v909
    %v1184 = vsel %vm560, %v150, %v844
    %v1185 = vsel %vm560, %v151, %v845
    %v1186 = vsel %vm557, %v152, %v1038
    %v1187 = vsel %vm557, %v153, %v1039
    %v1188 = vsel %vm558, %v154, %v974
    %v1189 = vsel %vm558, %v155, %v975
    %v1190 = vsel %vm559, %v156, %v910
    %v1191 = vsel %vm559, %v157, %v911
    %v1192 = vsel %vm560, %v158, %v846
    %v1193 = vsel %vm560, %v159, %v847
    %v1194 = vsel %vm557, %v160, %v1040
    %v1195 = vsel %vm557, %v161, %v1041
    %v1196 = vsel %vm558, %v162, %v976
    %v1197 = vsel %vm558, %v163, %v977
    %v1198 = vsel %vm559, %v164, %v912
    %v1199 = vsel %vm559, %v165, %v913
    %v1200 = vsel %vm560, %v166, %v848
    %v1201 = vsel %vm560, %v167, %v849
    %v1202 = vsel %vm557, %v168, %v1042
    %v1203 = vsel %vm557, %v169, %v1043
    %v1204 = vsel %vm558, %v170, %v978
    %v1205 = vsel %vm558, %v171, %v979
    %v1206 = vsel %vm559, %v172, %v914
    %v1207 = vsel %vm559, %v173, %v915
    %v1208 = vsel %vm560, %v174, %v850
    %v1209 = vsel %vm560, %v175, %v851
    %v1210 = vsel %vm557, %v176, %v1044
    %v1211 = vsel %vm557, %v177, %v1045
    %v1212 = vsel %vm558, %v178, %v980
    %v1213 = vsel %vm558, %v179, %v981
    %v1214 = vsel %vm559, %v180, %v916
    %v1215 = vsel %vm559, %v181, %v917
    %v1216 = vsel %vm560, %v182, %v852
    %v1217 = vsel %vm560, %v183, %v853
    %v1218 = vsel %vm557, %v184, %v1046
    %v1219 = vsel %vm557, %v185, %v1047
    %v1220 = vsel %vm558, %v186, %v982
    %v1221 = vsel %vm558, %v187, %v983
    %v1222 = vsel %vm559, %v188, %v918
    %v1223 = vsel %vm559, %v189, %v919
    %v1224 = vsel %vm560, %v190, %v854
    %v1225 = vsel %vm560, %v191, %v855
    %v1226 = vsel %vm557, %v192, %v1048
    %v1227 = vsel %vm557, %v193, %v1049
    %v1228 = vsel %vm558, %v194, %v984
    %v1229 = vsel %vm558, %v195, %v985
    %v1230 = vsel %vm559, %v196, %v920
    %v1231 = vsel %vm559, %v197, %v921
    %v1232 = vsel %vm560, %v198, %v856
    %v1233 = vsel %vm560, %v199, %v857
    %v1234 = vsel %vm557, %v200, %v1050
    %v1235 = vsel %vm557, %v201, %v1051
    %v1236 = vsel %vm558, %v202, %v986
    %v1237 = vsel %vm558, %v203, %v987
    %v1238 = vsel %vm559, %v204, %v922
    %v1239 = vsel %vm559, %v205, %v923
    %v1240 = vsel %vm560, %v206, %v858
    %v1241 = vsel %vm560, %v207, %v859
    %v1242 = vsel %vm557, %v208, %v1052
    %v1243 = vsel %vm557, %v209, %v1053
    %v1244 = vsel %vm558, %v210, %v988
    %v1245 = vsel %vm558, %v211, %v989
    %v1246 = vsel %vm559, %v212, %v924
    %v1247 = vsel %vm559, %v213, %v925
    %v1248 = vsel %vm560, %v214, %v860
    %v1249 = vsel %vm560, %v215, %v861
    %v1250 = vsel %vm557, %v216, %v1054
    %v1251 = vsel %vm557, %v217, %v1055
    %v1252 = vsel %vm558, %v218, %v990
    %v1253 = vsel %vm558, %v219, %v991
    %v1254 = vsel %vm559, %v220, %v926
    %v1255 = vsel %vm559, %v221, %v927
    %v1256 = vsel %vm560, %v222, %v862
    %v1257 = vsel %vm560, %v223, %v863
    %v1258 = vsel %vm557, %v224, %v1056
    %v1259 = vsel %vm557, %v225, %v1057
    %v1260 = vsel %vm558, %v226, %v992
    %v1261 = vsel %vm558, %v227, %v993
    %v1262 = vsel %vm559, %v228, %v928
    %v1263 = vsel %vm559, %v229, %v929
    %v1264 = vsel %vm560, %v230, %v864
    %v1265 = vsel %vm560, %v231, %v865
    %v1266 = vsel %vm557, %v232, %v1058
    %v1267 = vsel %vm557, %v233, %v1059
    %v1268 = vsel %vm558, %v234, %v994
    %v1269 = vsel %vm558, %v235, %v995
    %v1270 = vsel %vm559, %v236, %v930
    %v1271 = vsel %vm559, %v237, %v931
    %v1272 = vsel %vm560, %v238, %v866
    %v1273 = vsel %vm560, %v239, %v867
    %v1274 = vsel %vm557, %v240, %v1060
    %v1275 = vsel %vm557, %v241, %v1061
    %v1276 = vsel %vm558, %v242, %v996
    %v1277 = vsel %vm558, %v243, %v997
    %v1278 = vsel %vm559, %v244, %v932
    %v1279 = vsel %vm559, %v245, %v933
    %v1280 = vsel %vm560, %v246, %v868
    %v1281 = vsel %vm560, %v247, %v869
    %v1282 = vsel %vm557, %v248, %v1062
    %v1283 = vsel %vm557, %v249, %v1063
    %v1284 = vsel %vm558, %v250, %v998
    %v1285 = vsel %vm558, %v251, %v999
    %v1286 = vsel %vm559, %v252, %v934
    %v1287 = vsel %vm559, %v253, %v935
    %v1288 = vsel %vm560, %v254, %v870
    %v1289 = vsel %vm560, %v255, %v871
    %v1290 = vsel %vm557, %v256, %v1064
    %v1291 = vsel %vm557, %v257, %v1065
    %v1292 = vsel %vm558, %v258, %v1000
    %v1293 = vsel %vm558, %v259, %v1001
    %v1294 = vsel %vm559, %v260, %v936
    %v1295 = vsel %vm559, %v261, %v937
    %v1296 = vsel %vm560, %v262, %v872
    %v1297 = vsel %vm560, %v263, %v873
    %v1298 = vsel %vm557, %v264, %v1066
    %v1299 = vsel %vm557, %v265, %v1067
    %v1300 = vsel %vm558, %v266, %v1002
    %v1301 = vsel %vm558, %v267, %v1003
    %v1302 = vsel %vm559, %v268, %v938
    %v1303 = vsel %vm559, %v269, %v939
    %v1304 = vsel %vm560, %v270, %v874
    %v1305 = vsel %vm560, %v271, %v875
    %v1306 = vsel %vm557, %v272, %v1068
    %v1307 = vsel %vm557, %v273, %v1069
    %v1308 = vsel %vm558, %v274, %v1004
    %v1309 = vsel %vm558, %v275, %v1005
    %v1310 = vsel %vm559, %v276, %v940
    %v1311 = vsel %vm559, %v277, %v941
    %v1312 = vsel %vm560, %v278, %v876
    %v1313 = vsel %vm560, %v279, %v877
    %v1314 = vsel %vm557, %v280, %v1070
    %v1315 = vsel %vm557, %v281, %v1071
    %v1316 = vsel %vm558, %v282, %v1006
    %v1317 = vsel %vm558, %v283, %v1007
    %v1318 = vsel %vm559, %v284, %v942
    %v1319 = vsel %vm559, %v285, %v943
    %v1320 = vsel %vm560, %v286, %v878
    %v1321 = vsel %vm560, %v287, %v879
    %v1322 = vsel %vm557, %v288, %v1072
    %v1323 = vsel %vm557, %v289, %v1073
    %v1324 = vsel %vm558, %v290, %v1008
    %v1325 = vsel %vm558, %v291, %v1009
    %v1326 = vsel %vm559, %v292, %v944
    %v1327 = vsel %vm559, %v293, %v945
    %v1328 = vsel %vm560, %v294, %v880
    %v1329 = vsel %vm560, %v295, %v881
    %vm1330 = vcmp.eq.s32.totalorder %v553, 31
    %vm1331 = vcmp.eq.s32.totalorder %v554, 31
    %vm1332 = vcmp.eq.s32.totalorder %v555, 31
    %vm1333 = vcmp.eq.s32.totalorder %v556, 31
    %v1334 = vrot.slane %v40, 1
    %v1335 = vrot.slane %v41, 1
    %v1336 = vrot.slane %v48, 1
    %v1337 = vrot.slane %v49, 1
    %v1338 = vrot.slane %v56, 1
    %v1339 = vrot.slane %v57, 1
    %v1340 = vrot.slane %v64, 1
    %v1341 = vrot.slane %v65, 1
    %v1342 = vrot.slane %v72, 1
    %v1343 = vrot.slane %v73, 1
    %v1344 = vrot.slane %v80, 1
    %v1345 = vrot.slane %v81, 1
    %v1346 = vrot.slane %v88, 1
    %v1347 = vrot.slane %v89, 1
    %v1348 = vrot.slane %v96, 1
    %v1349 = vrot.slane %v97, 1
    %v1350 = vrot.slane %v104, 1
    %v1351 = vrot.slane %v105, 1
    %v1352 = vrot.slane %v112, 1
    %v1353 = vrot.slane %v113, 1
    %v1354 = vrot.slane %v120, 1
    %v1355 = vrot.slane %v121, 1
    %v1356 = vrot.slane %v128, 1
    %v1357 = vrot.slane %v129, 1
    %v1358 = vrot.slane %v136, 1
    %v1359 = vrot.slane %v137, 1
    %v1360 = vrot.slane %v144, 1
    %v1361 = vrot.slane %v145, 1
    %v1362 = vrot.slane %v152, 1
    %v1363 = vrot.slane %v153, 1
    %v1364 = vrot.slane %v160, 1
    %v1365 = vrot.slane %v161, 1
    %v1366 = vrot.slane %v168, 1
    %v1367 = vrot.slane %v169, 1
    %v1368 = vrot.slane %v176, 1
    %v1369 = vrot.slane %v177, 1
    %v1370 = vrot.slane %v184, 1
    %v1371 = vrot.slane %v185, 1
    %v1372 = vrot.slane %v192, 1
    %v1373 = vrot.slane %v193, 1
    %v1374 = vrot.slane %v200, 1
    %v1375 = vrot.slane %v201, 1
    %v1376 = vrot.slane %v208, 1
    %v1377 = vrot.slane %v209, 1
    %v1378 = vrot.slane %v216, 1
    %v1379 = vrot.slane %v217, 1
    %v1380 = vrot.slane %v224, 1
    %v1381 = vrot.slane %v225, 1
    %v1382 = vrot.slane %v232, 1
    %v1383 = vrot.slane %v233, 1
    %v1384 = vrot.slane %v240, 1
    %v1385 = vrot.slane %v241, 1
    %v1386 = vrot.slane %v248, 1
    %v1387 = vrot.slane %v249, 1
    %v1388 = vrot.slane %v256, 1
    %v1389 = vrot.slane %v257, 1
    %v1390 = vrot.slane %v264, 1
    %v1391 = vrot.slane %v265, 1
    %v1392 = vrot.slane %v272, 1
    %v1393 = vrot.slane %v273, 1
    %v1394 = vrot.slane %v280, 1
    %v1395 = vrot.slane %v281, 1
    %v1396 = vrot.slane %v288, 1
    %v1397 = vrot.slane %v289, 1
    %v1398 = vrot.slane %v42, 1
    %v1399 = vrot.slane %v43, 1
    %v1400 = vrot.slane %v50, 1
    %v1401 = vrot.slane %v51, 1
    %v1402 = vrot.slane %v58, 1
    %v1403 = vrot.slane %v59, 1
    %v1404 = vrot.slane %v66, 1
    %v1405 = vrot.slane %v67, 1
    %v1406 = vrot.slane %v74, 1
    %v1407 = vrot.slane %v75, 1
    %v1408 = vrot.slane %v82, 1
    %v1409 = vrot.slane %v83, 1
    %v1410 = vrot.slane %v90, 1
    %v1411 = vrot.slane %v91, 1
    %v1412 = vrot.slane %v98, 1
    %v1413 = vrot.slane %v99, 1
    %v1414 = vrot.slane %v106, 1
    %v1415 = vrot.slane %v107, 1
    %v1416 = vrot.slane %v114, 1
    %v1417 = vrot.slane %v115, 1
    %v1418 = vrot.slane %v122, 1
    %v1419 = vrot.slane %v123, 1
    %v1420 = vrot.slane %v130, 1
    %v1421 = vrot.slane %v131, 1
    %v1422 = vrot.slane %v138, 1
    %v1423 = vrot.slane %v139, 1
    %v1424 = vrot.slane %v146, 1
    %v1425 = vrot.slane %v147, 1
    %v1426 = vrot.slane %v154, 1
    %v1427 = vrot.slane %v155, 1
    %v1428 = vrot.slane %v162, 1
    %v1429 = vrot.slane %v163, 1
    %v1430 = vrot.slane %v170, 1
    %v1431 = vrot.slane %v171, 1
    %v1432 = vrot.slane %v178, 1
    %v1433 = vrot.slane %v179, 1
    %v1434 = vrot.slane %v186, 1
    %v1435 = vrot.slane %v187, 1
    %v1436 = vrot.slane %v194, 1
    %v1437 = vrot.slane %v195, 1
    %v1438 = vrot.slane %v202, 1
    %v1439 = vrot.slane %v203, 1
    %v1440 = vrot.slane %v210, 1
    %v1441 = vrot.slane %v211, 1
    %v1442 = vrot.slane %v218, 1
    %v1443 = vrot.slane %v219, 1
    %v1444 = vrot.slane %v226, 1
    %v1445 = vrot.slane %v227, 1
    %v1446 = vrot.slane %v234, 1
    %v1447 = vrot.slane %v235, 1
    %v1448 = vrot.slane %v242, 1
    %v1449 = vrot.slane %v243, 1
    %v1450 = vrot.slane %v250, 1
    %v1451 = vrot.slane %v251, 1
    %v1452 = vrot.slane %v258, 1
    %v1453 = vrot.slane %v259, 1
    %v1454 = vrot.slane %v266, 1
    %v1455 = vrot.slane %v267, 1
    %v1456 = vrot.slane %v274, 1
    %v1457 = vrot.slane %v275, 1
    %v1458 = vrot.slane %v282, 1
    %v1459 = vrot.slane %v283, 1
    %v1460 = vrot.slane %v290, 1
    %v1461 = vrot.slane %v291, 1
    %v1462 = vrot.slane %v44, 1
    %v1463 = vrot.slane %v45, 1
    %v1464 = vrot.slane %v52, 1
    %v1465 = vrot.slane %v53, 1
    %v1466 = vrot.slane %v60, 1
    %v1467 = vrot.slane %v61, 1
    %v1468 = vrot.slane %v68, 1
    %v1469 = vrot.slane %v69, 1
    %v1470 = vrot.slane %v76, 1
    %v1471 = vrot.slane %v77, 1
    %v1472 = vrot.slane %v84, 1
    %v1473 = vrot.slane %v85, 1
    %v1474 = vrot.slane %v92, 1
    %v1475 = vrot.slane %v93, 1
    %v1476 = vrot.slane %v100, 1
    %v1477 = vrot.slane %v101, 1
    %v1478 = vrot.slane %v108, 1
    %v1479 = vrot.slane %v109, 1
    %v1480 = vrot.slane %v116, 1
    %v1481 = vrot.slane %v117, 1
    %v1482 = vrot.slane %v124, 1
    %v1483 = vrot.slane %v125, 1
    %v1484 = vrot.slane %v132, 1
    %v1485 = vrot.slane %v133, 1
    %v1486 = vrot.slane %v140, 1
    %v1487 = vrot.slane %v141, 1
    %v1488 = vrot.slane %v148, 1
    %v1489 = vrot.slane %v149, 1
    %v1490 = vrot.slane %v156, 1
    %v1491 = vrot.slane %v157, 1
    %v1492 = vrot.slane %v164, 1
    %v1493 = vrot.slane %v165, 1
    %v1494 = vrot.slane %v172, 1
    %v1495 = vrot.slane %v173, 1
    %v1496 = vrot.slane %v180, 1
    %v1497 = vrot.slane %v181, 1
    %v1498 = vrot.slane %v188, 1
    %v1499 = vrot.slane %v189, 1
    %v1500 = vrot.slane %v196, 1
    %v1501 = vrot.slane %v197, 1
    %v1502 = vrot.slane %v204, 1
    %v1503 = vrot.slane %v205, 1
    %v1504 = vrot.slane %v212, 1
    %v1505 = vrot.slane %v213, 1
    %v1506 = vrot.slane %v220, 1
    %v1507 = vrot.slane %v221, 1
    %v1508 = vrot.slane %v228, 1
    %v1509 = vrot.slane %v229, 1
    %v1510 = vrot.slane %v236, 1
    %v1511 = vrot.slane %v237, 1
    %v1512 = vrot.slane %v244, 1
    %v1513 = vrot.slane %v245, 1
    %v1514 = vrot.slane %v252, 1
    %v1515 = vrot.slane %v253, 1
    %v1516 = vrot.slane %v260, 1
    %v1517 = vrot.slane %v261, 1
    %v1518 = vrot.slane %v268, 1
    %v1519 = vrot.slane %v269, 1
    %v1520 = vrot.slane %v276, 1
    %v1521 = vrot.slane %v277, 1
    %v1522 = vrot.slane %v284, 1
    %v1523 = vrot.slane %v285, 1
    %v1524 = vrot.slane %v292, 1
    %v1525 = vrot.slane %v293, 1
    %v1526 = vrot.slane %v46, 1
    %v1527 = vrot.slane %v47, 1
    %v1528 = vrot.slane %v54, 1
    %v1529 = vrot.slane %v55, 1
    %v1530 = vrot.slane %v62, 1
    %v1531 = vrot.slane %v63, 1
    %v1532 = vrot.slane %v70, 1
    %v1533 = vrot.slane %v71, 1
    %v1534 = vrot.slane %v78, 1
    %v1535 = vrot.slane %v79, 1
    %v1536 = vrot.slane %v86, 1
    %v1537 = vrot.slane %v87, 1
    %v1538 = vrot.slane %v94, 1
    %v1539 = vrot.slane %v95, 1
    %v1540 = vrot.slane %v102, 1
    %v1541 = vrot.slane %v103, 1
    %v1542 = vrot.slane %v110, 1
    %v1543 = vrot.slane %v111, 1
    %v1544 = vrot.slane %v118, 1
    %v1545 = vrot.slane %v119, 1
    %v1546 = vrot.slane %v126, 1
    %v1547 = vrot.slane %v127, 1
    %v1548 = vrot.slane %v134, 1
    %v1549 = vrot.slane %v135, 1
    %v1550 = vrot.slane %v142, 1
    %v1551 = vrot.slane %v143, 1
    %v1552 = vrot.slane %v150, 1
    %v1553 = vrot.slane %v151, 1
    %v1554 = vrot.slane %v158, 1
    %v1555 = vrot.slane %v159, 1
    %v1556 = vrot.slane %v166, 1
    %v1557 = vrot.slane %v167, 1
    %v1558 = vrot.slane %v174, 1
    %v1559 = vrot.slane %v175, 1
    %v1560 = vrot.slane %v182, 1
    %v1561 = vrot.slane %v183, 1
    %v1562 = vrot.slane %v190, 1
    %v1563 = vrot.slane %v191, 1
    %v1564 = vrot.slane %v198, 1
    %v1565 = vrot.slane %v199, 1
    %v1566 = vrot.slane %v206, 1
    %v1567 = vrot.slane %v207, 1
    %v1568 = vrot.slane %v214, 1
    %v1569 = vrot.slane %v215, 1
    %v1570 = vrot.slane %v222, 1
    %v1571 = vrot.slane %v223, 1
    %v1572 = vrot.slane %v230, 1
    %v1573 = vrot.slane %v231, 1
    %v1574 = vrot.slane %v238, 1
    %v1575 = vrot.slane %v239, 1
    %v1576 = vrot.slane %v246, 1
    %v1577 = vrot.slane %v247, 1
    %v1578 = vrot.slane %v254, 1
    %v1579 = vrot.slane %v255, 1
    %v1580 = vrot.slane %v262, 1
    %v1581 = vrot.slane %v263, 1
    %v1582 = vrot.slane %v270, 1
    %v1583 = vrot.slane %v271, 1
    %v1584 = vrot.slane %v278, 1
    %v1585 = vrot.slane %v279, 1
    %v1586 = vrot.slane %v286, 1
    %v1587 = vrot.slane %v287, 1
    %v1588 = vrot.slane %v294, 1
    %v1589 = vrot.slane %v295, 1
    %vm1590 = vcmp.lt.s32.totalorder %v553, 7
    %v1591 = vsel %vm1590, %v1462, %v1526
    %v1592 = vsel %vm1590, %v1463, %v1527
    %v1593 = vsel %vm1590, %v1464, %v1528
    %v1594 = vsel %vm1590, %v1465, %v1529
    %v1595 = vsel %vm1590, %v1466, %v1530
    %v1596 = vsel %vm1590, %v1467, %v1531
    %v1597 = vsel %vm1590, %v1468, %v1532
    %v1598 = vsel %vm1590, %v1469, %v1533
    %v1599 = vsel %vm1590, %v1470, %v1534
    %v1600 = vsel %vm1590, %v1471, %v1535
    %v1601 = vsel %vm1590, %v1472, %v1536
    %v1602 = vsel %vm1590, %v1473, %v1537
    %v1603 = vsel %vm1590, %v1474, %v1538
    %v1604 = vsel %vm1590, %v1475, %v1539
    %v1605 = vsel %vm1590, %v1476, %v1540
    %v1606 = vsel %vm1590, %v1477, %v1541
    %v1607 = vsel %vm1590, %v1478, %v1542
    %v1608 = vsel %vm1590, %v1479, %v1543
    %v1609 = vsel %vm1590, %v1480, %v1544
    %v1610 = vsel %vm1590, %v1481, %v1545
    %v1611 = vsel %vm1590, %v1482, %v1546
    %v1612 = vsel %vm1590, %v1483, %v1547
    %v1613 = vsel %vm1590, %v1484, %v1548
    %v1614 = vsel %vm1590, %v1485, %v1549
    %v1615 = vsel %vm1590, %v1486, %v1550
    %v1616 = vsel %vm1590, %v1487, %v1551
    %v1617 = vsel %vm1590, %v1488, %v1552
    %v1618 = vsel %vm1590, %v1489, %v1553
    %v1619 = vsel %vm1590, %v1490, %v1554
    %v1620 = vsel %vm1590, %v1491, %v1555
    %v1621 = vsel %vm1590, %v1492, %v1556
    %v1622 = vsel %vm1590, %v1493, %v1557
    %v1623 = vsel %vm1590, %v1494, %v1558
    %v1624 = vsel %vm1590, %v1495, %v1559
    %v1625 = vsel %vm1590, %v1496, %v1560
    %v1626 = vsel %vm1590, %v1497, %v1561
    %v1627 = vsel %vm1590, %v1498, %v1562
    %v1628 = vsel %vm1590, %v1499, %v1563
    %v1629 = vsel %vm1590, %v1500, %v1564
    %v1630 = vsel %vm1590, %v1501, %v1565
    %v1631 = vsel %vm1590, %v1502, %v1566
    %v1632 = vsel %vm1590, %v1503, %v1567
    %v1633 = vsel %vm1590, %v1504, %v1568
    %v1634 = vsel %vm1590, %v1505, %v1569
    %v1635 = vsel %vm1590, %v1506, %v1570
    %v1636 = vsel %vm1590, %v1507, %v1571
    %v1637 = vsel %vm1590, %v1508, %v1572
    %v1638 = vsel %vm1590, %v1509, %v1573
    %v1639 = vsel %vm1590, %v1510, %v1574
    %v1640 = vsel %vm1590, %v1511, %v1575
    %v1641 = vsel %vm1590, %v1512, %v1576
    %v1642 = vsel %vm1590, %v1513, %v1577
    %v1643 = vsel %vm1590, %v1514, %v1578
    %v1644 = vsel %vm1590, %v1515, %v1579
    %v1645 = vsel %vm1590, %v1516, %v1580
    %v1646 = vsel %vm1590, %v1517, %v1581
    %v1647 = vsel %vm1590, %v1518, %v1582
    %v1648 = vsel %vm1590, %v1519, %v1583
    %v1649 = vsel %vm1590, %v1520, %v1584
    %v1650 = vsel %vm1590, %v1521, %v1585
    %v1651 = vsel %vm1590, %v1522, %v1586
    %v1652 = vsel %vm1590, %v1523, %v1587
    %v1653 = vsel %vm1590, %v1524, %v1588
    %v1654 = vsel %vm1590, %v1525, %v1589
    %v1655 = vsel %vm1590, %v1398, %v1462
    %v1656 = vsel %vm1590, %v1399, %v1463
    %v1657 = vsel %vm1590, %v1400, %v1464
    %v1658 = vsel %vm1590, %v1401, %v1465
    %v1659 = vsel %vm1590, %v1402, %v1466
    %v1660 = vsel %vm1590, %v1403, %v1467
    %v1661 = vsel %vm1590, %v1404, %v1468
    %v1662 = vsel %vm1590, %v1405, %v1469
    %v1663 = vsel %vm1590, %v1406, %v1470
    %v1664 = vsel %vm1590, %v1407, %v1471
    %v1665 = vsel %vm1590, %v1408, %v1472
    %v1666 = vsel %vm1590, %v1409, %v1473
    %v1667 = vsel %vm1590, %v1410, %v1474
    %v1668 = vsel %vm1590, %v1411, %v1475
    %v1669 = vsel %vm1590, %v1412, %v1476
    %v1670 = vsel %vm1590, %v1413, %v1477
    %v1671 = vsel %vm1590, %v1414, %v1478
    %v1672 = vsel %vm1590, %v1415, %v1479
    %v1673 = vsel %vm1590, %v1416, %v1480
    %v1674 = vsel %vm1590, %v1417, %v1481
    %v1675 = vsel %vm1590, %v1418, %v1482
    %v1676 = vsel %vm1590, %v1419, %v1483
    %v1677 = vsel %vm1590, %v1420, %v1484
    %v1678 = vsel %vm1590, %v1421, %v1485
    %v1679 = vsel %vm1590, %v1422, %v1486
    %v1680 = vsel %vm1590, %v1423, %v1487
    %v1681 = vsel %vm1590, %v1424, %v1488
    %v1682 = vsel %vm1590, %v1425, %v1489
    %v1683 = vsel %vm1590, %v1426, %v1490
    %v1684 = vsel %vm1590, %v1427, %v1491
    %v1685 = vsel %vm1590, %v1428, %v1492
    %v1686 = vsel %vm1590, %v1429, %v1493
    %v1687 = vsel %vm1590, %v1430, %v1494
    %v1688 = vsel %vm1590, %v1431, %v1495
    %v1689 = vsel %vm1590, %v1432, %v1496
    %v1690 = vsel %vm1590, %v1433, %v1497
    %v1691 = vsel %vm1590, %v1434, %v1498
    %v1692 = vsel %vm1590, %v1435, %v1499
    %v1693 = vsel %vm1590, %v1436, %v1500
    %v1694 = vsel %vm1590, %v1437, %v1501
    %v1695 = vsel %vm1590, %v1438, %v1502
    %v1696 = vsel %vm1590, %v1439, %v1503
    %v1697 = vsel %vm1590, %v1440, %v1504
    %v1698 = vsel %vm1590, %v1441, %v1505
    %v1699 = vsel %vm1590, %v1442, %v1506
    %v1700 = vsel %vm1590, %v1443, %v1507
    %v1701 = vsel %vm1590, %v1444, %v1508
    %v1702 = vsel %vm1590, %v1445, %v1509
    %v1703 = vsel %vm1590, %v1446, %v1510
    %v1704 = vsel %vm1590, %v1447, %v1511
    %v1705 = vsel %vm1590, %v1448, %v1512
    %v1706 = vsel %vm1590, %v1449, %v1513
    %v1707 = vsel %vm1590, %v1450, %v1514
    %v1708 = vsel %vm1590, %v1451, %v1515
    %v1709 = vsel %vm1590, %v1452, %v1516
    %v1710 = vsel %vm1590, %v1453, %v1517
    %v1711 = vsel %vm1590, %v1454, %v1518
    %v1712 = vsel %vm1590, %v1455, %v1519
    %v1713 = vsel %vm1590, %v1456, %v1520
    %v1714 = vsel %vm1590, %v1457, %v1521
    %v1715 = vsel %vm1590, %v1458, %v1522
    %v1716 = vsel %vm1590, %v1459, %v1523
    %v1717 = vsel %vm1590, %v1460, %v1524
    %v1718 = vsel %vm1590, %v1461, %v1525
    %v1719 = vsel %vm1590, %v1334, %v1398
    %v1720 = vsel %vm1590, %v1335, %v1399
    %v1721 = vsel %vm1590, %v1336, %v1400
    %v1722 = vsel %vm1590, %v1337, %v1401
    %v1723 = vsel %vm1590, %v1338, %v1402
    %v1724 = vsel %vm1590, %v1339, %v1403
    %v1725 = vsel %vm1590, %v1340, %v1404
    %v1726 = vsel %vm1590, %v1341, %v1405
    %v1727 = vsel %vm1590, %v1342, %v1406
    %v1728 = vsel %vm1590, %v1343, %v1407
    %v1729 = vsel %vm1590, %v1344, %v1408
    %v1730 = vsel %vm1590, %v1345, %v1409
    %v1731 = vsel %vm1590, %v1346, %v1410
    %v1732 = vsel %vm1590, %v1347, %v1411
    %v1733 = vsel %vm1590, %v1348, %v1412
    %v1734 = vsel %vm1590, %v1349, %v1413
    %v1735 = vsel %vm1590, %v1350, %v1414
    %v1736 = vsel %vm1590, %v1351, %v1415
    %v1737 = vsel %vm1590, %v1352, %v1416
    %v1738 = vsel %vm1590, %v1353, %v1417
    %v1739 = vsel %vm1590, %v1354, %v1418
    %v1740 = vsel %vm1590, %v1355, %v1419
    %v1741 = vsel %vm1590, %v1356, %v1420
    %v1742 = vsel %vm1590, %v1357, %v1421
    %v1743 = vsel %vm1590, %v1358, %v1422
    %v1744 = vsel %vm1590, %v1359, %v1423
    %v1745 = vsel %vm1590, %v1360, %v1424
    %v1746 = vsel %vm1590, %v1361, %v1425
    %v1747 = vsel %vm1590, %v1362, %v1426
    %v1748 = vsel %vm1590, %v1363, %v1427
    %v1749 = vsel %vm1590, %v1364, %v1428
    %v1750 = vsel %vm1590, %v1365, %v1429
    %v1751 = vsel %vm1590, %v1366, %v1430
    %v1752 = vsel %vm1590, %v1367, %v1431
    %v1753 = vsel %vm1590, %v1368, %v1432
    %v1754 = vsel %vm1590, %v1369, %v1433
    %v1755 = vsel %vm1590, %v1370, %v1434
    %v1756 = vsel %vm1590, %v1371, %v1435
    %v1757 = vsel %vm1590, %v1372, %v1436
    %v1758 = vsel %vm1590, %v1373, %v1437
    %v1759 = vsel %vm1590, %v1374, %v1438
    %v1760 = vsel %vm1590, %v1375, %v1439
    %v1761 = vsel %vm1590, %v1376, %v1440
    %v1762 = vsel %vm1590, %v1377, %v1441
    %v1763 = vsel %vm1590, %v1378, %v1442
    %v1764 = vsel %vm1590, %v1379, %v1443
    %v1765 = vsel %vm1590, %v1380, %v1444
    %v1766 = vsel %vm1590, %v1381, %v1445
    %v1767 = vsel %vm1590, %v1382, %v1446
    %v1768 = vsel %vm1590, %v1383, %v1447
    %v1769 = vsel %vm1590, %v1384, %v1448
    %v1770 = vsel %vm1590, %v1385, %v1449
    %v1771 = vsel %vm1590, %v1386, %v1450
    %v1772 = vsel %vm1590, %v1387, %v1451
    %v1773 = vsel %vm1590, %v1388, %v1452
    %v1774 = vsel %vm1590, %v1389, %v1453
    %v1775 = vsel %vm1590, %v1390, %v1454
    %v1776 = vsel %vm1590, %v1391, %v1455
    %v1777 = vsel %vm1590, %v1392, %v1456
    %v1778 = vsel %vm1590, %v1393, %v1457
    %v1779 = vsel %vm1590, %v1394, %v1458
    %v1780 = vsel %vm1590, %v1395, %v1459
    %v1781 = vsel %vm1590, %v1396, %v1460
    %v1782 = vsel %vm1590, %v1397, %v1461
    %v1783 = vsel %vm1590, %v1526, %v1334
    %v1784 = vsel %vm1590, %v1527, %v1335
    %v1785 = vsel %vm1590, %v1528, %v1336
    %v1786 = vsel %vm1590, %v1529, %v1337
    %v1787 = vsel %vm1590, %v1530, %v1338
    %v1788 = vsel %vm1590, %v1531, %v1339
    %v1789 = vsel %vm1590, %v1532, %v1340
    %v1790 = vsel %vm1590, %v1533, %v1341
    %v1791 = vsel %vm1590, %v1534, %v1342
    %v1792 = vsel %vm1590, %v1535, %v1343
    %v1793 = vsel %vm1590, %v1536, %v1344
    %v1794 = vsel %vm1590, %v1537, %v1345
    %v1795 = vsel %vm1590, %v1538, %v1346
    %v1796 = vsel %vm1590, %v1539, %v1347
    %v1797 = vsel %vm1590, %v1540, %v1348
    %v1798 = vsel %vm1590, %v1541, %v1349
    %v1799 = vsel %vm1590, %v1542, %v1350
    %v1800 = vsel %vm1590, %v1543, %v1351
    %v1801 = vsel %vm1590, %v1544, %v1352
    %v1802 = vsel %vm1590, %v1545, %v1353
    %v1803 = vsel %vm1590, %v1546, %v1354
    %v1804 = vsel %vm1590, %v1547, %v1355
    %v1805 = vsel %vm1590, %v1548, %v1356
    %v1806 = vsel %vm1590, %v1549, %v1357
    %v1807 = vsel %vm1590, %v1550, %v1358
    %v1808 = vsel %vm1590, %v1551, %v1359
    %v1809 = vsel %vm1590, %v1552, %v1360
    %v1810 = vsel %vm1590, %v1553, %v1361
    %v1811 = vsel %vm1590, %v1554, %v1362
    %v1812 = vsel %vm1590, %v1555, %v1363
    %v1813 = vsel %vm1590, %v1556, %v1364
    %v1814 = vsel %vm1590, %v1557, %v1365
    %v1815 = vsel %vm1590, %v1558, %v1366
    %v1816 = vsel %vm1590, %v1559, %v1367
    %v1817 = vsel %vm1590, %v1560, %v1368
    %v1818 = vsel %vm1590, %v1561, %v1369
    %v1819 = vsel %vm1590, %v1562, %v1370
    %v1820 = vsel %vm1590, %v1563, %v1371
    %v1821 = vsel %vm1590, %v1564, %v1372
    %v1822 = vsel %vm1590, %v1565, %v1373
    %v1823 = vsel %vm1590, %v1566, %v1374
    %v1824 = vsel %vm1590, %v1567, %v1375
    %v1825 = vsel %vm1590, %v1568, %v1376
    %v1826 = vsel %vm1590, %v1569, %v1377
    %v1827 = vsel %vm1590, %v1570, %v1378
    %v1828 = vsel %vm1590, %v1571, %v1379
    %v1829 = vsel %vm1590, %v1572, %v1380
    %v1830 = vsel %vm1590, %v1573, %v1381
    %v1831 = vsel %vm1590, %v1574, %v1382
    %v1832 = vsel %vm1590, %v1575, %v1383
    %v1833 = vsel %vm1590, %v1576, %v1384
    %v1834 = vsel %vm1590, %v1577, %v1385
    %v1835 = vsel %vm1590, %v1578, %v1386
    %v1836 = vsel %vm1590, %v1579, %v1387
    %v1837 = vsel %vm1590, %v1580, %v1388
    %v1838 = vsel %vm1590, %v1581, %v1389
    %v1839 = vsel %vm1590, %v1582, %v1390
    %v1840 = vsel %vm1590, %v1583, %v1391
    %v1841 = vsel %vm1590, %v1584, %v1392
    %v1842 = vsel %vm1590, %v1585, %v1393
    %v1843 = vsel %vm1590, %v1586, %v1394
    %v1844 = vsel %vm1590, %v1587, %v1395
    %v1845 = vsel %vm1590, %v1588, %v1396
    %v1846 = vsel %vm1590, %v1589, %v1397
    %v1847 = vsel %vm1330, %v40, %v1719
    %v1848 = vsel %vm1330, %v41, %v1720
    %v1849 = vsel %vm1331, %v42, %v1655
    %v1850 = vsel %vm1331, %v43, %v1656
    %v1851 = vsel %vm1332, %v44, %v1591
    %v1852 = vsel %vm1332, %v45, %v1592
    %v1853 = vsel %vm1333, %v46, %v1783
    %v1854 = vsel %vm1333, %v47, %v1784
    %v1855 = vsel %vm1330, %v48, %v1721
    %v1856 = vsel %vm1330, %v49, %v1722
    %v1857 = vsel %vm1331, %v50, %v1657
    %v1858 = vsel %vm1331, %v51, %v1658
    %v1859 = vsel %vm1332, %v52, %v1593
    %v1860 = vsel %vm1332, %v53, %v1594
    %v1861 = vsel %vm1333, %v54, %v1785
    %v1862 = vsel %vm1333, %v55, %v1786
    %v1863 = vsel %vm1330, %v56, %v1723
    %v1864 = vsel %vm1330, %v57, %v1724
    %v1865 = vsel %vm1331, %v58, %v1659
    %v1866 = vsel %vm1331, %v59, %v1660
    %v1867 = vsel %vm1332, %v60, %v1595
    %v1868 = vsel %vm1332, %v61, %v1596
    %v1869 = vsel %vm1333, %v62, %v1787
    %v1870 = vsel %vm1333, %v63, %v1788
    %v1871 = vsel %vm1330, %v64, %v1725
    %v1872 = vsel %vm1330, %v65, %v1726
    %v1873 = vsel %vm1331, %v66, %v1661
    %v1874 = vsel %vm1331, %v67, %v1662
    %v1875 = vsel %vm1332, %v68, %v1597
    %v1876 = vsel %vm1332, %v69, %v1598
    %v1877 = vsel %vm1333, %v70, %v1789
    %v1878 = vsel %vm1333, %v71, %v1790
    %v1879 = vsel %vm1330, %v72, %v1727
    %v1880 = vsel %vm1330, %v73, %v1728
    %v1881 = vsel %vm1331, %v74, %v1663
    %v1882 = vsel %vm1331, %v75, %v1664
    %v1883 = vsel %vm1332, %v76, %v1599
    %v1884 = vsel %vm1332, %v77, %v1600
    %v1885 = vsel %vm1333, %v78, %v1791
    %v1886 = vsel %vm1333, %v79, %v1792
    %v1887 = vsel %vm1330, %v80, %v1729
    %v1888 = vsel %vm1330, %v81, %v1730
    %v1889 = vsel %vm1331, %v82, %v1665
    %v1890 = vsel %vm1331, %v83, %v1666
    %v1891 = vsel %vm1332, %v84, %v1601
    %v1892 = vsel %vm1332, %v85, %v1602
    %v1893 = vsel %vm1333, %v86, %v1793
    %v1894 = vsel %vm1333, %v87, %v1794
    %v1895 = vsel %vm1330, %v88, %v1731
    %v1896 = vsel %vm1330, %v89, %v1732
    %v1897 = vsel %vm1331, %v90, %v1667
    %v1898 = vsel %vm1331, %v91, %v1668
    %v1899 = vsel %vm1332, %v92, %v1603
    %v1900 = vsel %vm1332, %v93, %v1604
    %v1901 = vsel %vm1333, %v94, %v1795
    %v1902 = vsel %vm1333, %v95, %v1796
    %v1903 = vsel %vm1330, %v96, %v1733
    %v1904 = vsel %vm1330, %v97, %v1734
    %v1905 = vsel %vm1331, %v98, %v1669
    %v1906 = vsel %vm1331, %v99, %v1670
    %v1907 = vsel %vm1332, %v100, %v1605
    %v1908 = vsel %vm1332, %v101, %v1606
    %v1909 = vsel %vm1333, %v102, %v1797
    %v1910 = vsel %vm1333, %v103, %v1798
    %v1911 = vsel %vm1330, %v104, %v1735
    %v1912 = vsel %vm1330, %v105, %v1736
    %v1913 = vsel %vm1331, %v106, %v1671
    %v1914 = vsel %vm1331, %v107, %v1672
    %v1915 = vsel %vm1332, %v108, %v1607
    %v1916 = vsel %vm1332, %v109, %v1608
    %v1917 = vsel %vm1333, %v110, %v1799
    %v1918 = vsel %vm1333, %v111, %v1800
    %v1919 = vsel %vm1330, %v112, %v1737
    %v1920 = vsel %vm1330, %v113, %v1738
    %v1921 = vsel %vm1331, %v114, %v1673
    %v1922 = vsel %vm1331, %v115, %v1674
    %v1923 = vsel %vm1332, %v116, %v1609
    %v1924 = vsel %vm1332, %v117, %v1610
    %v1925 = vsel %vm1333, %v118, %v1801
    %v1926 = vsel %vm1333, %v119, %v1802
    %v1927 = vsel %vm1330, %v120, %v1739
    %v1928 = vsel %vm1330, %v121, %v1740
    %v1929 = vsel %vm1331, %v122, %v1675
    %v1930 = vsel %vm1331, %v123, %v1676
    %v1931 = vsel %vm1332, %v124, %v1611
    %v1932 = vsel %vm1332, %v125, %v1612
    %v1933 = vsel %vm1333, %v126, %v1803
    %v1934 = vsel %vm1333, %v127, %v1804
    %v1935 = vsel %vm1330, %v128, %v1741
    %v1936 = vsel %vm1330, %v129, %v1742
    %v1937 = vsel %vm1331, %v130, %v1677
    %v1938 = vsel %vm1331, %v131, %v1678
    %v1939 = vsel %vm1332, %v132, %v1613
    %v1940 = vsel %vm1332, %v133, %v1614
    %v1941 = vsel %vm1333, %v134, %v1805
    %v1942 = vsel %vm1333, %v135, %v1806
    %v1943 = vsel %vm1330, %v136, %v1743
    %v1944 = vsel %vm1330, %v137, %v1744
    %v1945 = vsel %vm1331, %v138, %v1679
    %v1946 = vsel %vm1331, %v139, %v1680
    %v1947 = vsel %vm1332, %v140, %v1615
    %v1948 = vsel %vm1332, %v141, %v1616
    %v1949 = vsel %vm1333, %v142, %v1807
    %v1950 = vsel %vm1333, %v143, %v1808
    %v1951 = vsel %vm1330, %v144, %v1745
    %v1952 = vsel %vm1330, %v145, %v1746
    %v1953 = vsel %vm1331, %v146, %v1681
    %v1954 = vsel %vm1331, %v147, %v1682
    %v1955 = vsel %vm1332, %v148, %v1617
    %v1956 = vsel %vm1332, %v149, %v1618
    %v1957 = vsel %vm1333, %v150, %v1809
    %v1958 = vsel %vm1333, %v151, %v1810
    %v1959 = vsel %vm1330, %v152, %v1747
    %v1960 = vsel %vm1330, %v153, %v1748
    %v1961 = vsel %vm1331, %v154, %v1683
    %v1962 = vsel %vm1331, %v155, %v1684
    %v1963 = vsel %vm1332, %v156, %v1619
    %v1964 = vsel %vm1332, %v157, %v1620
    %v1965 = vsel %vm1333, %v158, %v1811
    %v1966 = vsel %vm1333, %v159, %v1812
    %v1967 = vsel %vm1330, %v160, %v1749
    %v1968 = vsel %vm1330, %v161, %v1750
    %v1969 = vsel %vm1331, %v162, %v1685
    %v1970 = vsel %vm1331, %v163, %v1686
    %v1971 = vsel %vm1332, %v164, %v1621
    %v1972 = vsel %vm1332, %v165, %v1622
    %v1973 = vsel %vm1333, %v166, %v1813
    %v1974 = vsel %vm1333, %v167, %v1814
    %v1975 = vsel %vm1330, %v168, %v1751
    %v1976 = vsel %vm1330, %v169, %v1752
    %v1977 = vsel %vm1331, %v170, %v1687
    %v1978 = vsel %vm1331, %v171, %v1688
    %v1979 = vsel %vm1332, %v172, %v1623
    %v1980 = vsel %vm1332, %v173, %v1624
    %v1981 = vsel %vm1333, %v174, %v1815
    %v1982 = vsel %vm1333, %v175, %v1816
    %v1983 = vsel %vm1330, %v176, %v1753
    %v1984 = vsel %vm1330, %v177, %v1754
    %v1985 = vsel %vm1331, %v178, %v1689
    %v1986 = vsel %vm1331, %v179, %v1690
    %v1987 = vsel %vm1332, %v180, %v1625
    %v1988 = vsel %vm1332, %v181, %v1626
    %v1989 = vsel %vm1333, %v182, %v1817
    %v1990 = vsel %vm1333, %v183, %v1818
    %v1991 = vsel %vm1330, %v184, %v1755
    %v1992 = vsel %vm1330, %v185, %v1756
    %v1993 = vsel %vm1331, %v186, %v1691
    %v1994 = vsel %vm1331, %v187, %v1692
    %v1995 = vsel %vm1332, %v188, %v1627
    %v1996 = vsel %vm1332, %v189, %v1628
    %v1997 = vsel %vm1333, %v190, %v1819
    %v1998 = vsel %vm1333, %v191, %v1820
    %v1999 = vsel %vm1330, %v192, %v1757
    %v2000 = vsel %vm1330, %v193, %v1758
    %v2001 = vsel %vm1331, %v194, %v1693
    %v2002 = vsel %vm1331, %v195, %v1694
    %v2003 = vsel %vm1332, %v196, %v1629
    %v2004 = vsel %vm1332, %v197, %v1630
    %v2005 = vsel %vm1333, %v198, %v1821
    %v2006 = vsel %vm1333, %v199, %v1822
    %v2007 = vsel %vm1330, %v200, %v1759
    %v2008 = vsel %vm1330, %v201, %v1760
    %v2009 = vsel %vm1331, %v202, %v1695
    %v2010 = vsel %vm1331, %v203, %v1696
    %v2011 = vsel %vm1332, %v204, %v1631
    %v2012 = vsel %vm1332, %v205, %v1632
    %v2013 = vsel %vm1333, %v206, %v1823
    %v2014 = vsel %vm1333, %v207, %v1824
    %v2015 = vsel %vm1330, %v208, %v1761
    %v2016 = vsel %vm1330, %v209, %v1762
    %v2017 = vsel %vm1331, %v210, %v1697
    %v2018 = vsel %vm1331, %v211, %v1698
    %v2019 = vsel %vm1332, %v212, %v1633
    %v2020 = vsel %vm1332, %v213, %v1634
    %v2021 = vsel %vm1333, %v214, %v1825
    %v2022 = vsel %vm1333, %v215, %v1826
    %v2023 = vsel %vm1330, %v216, %v1763
    %v2024 = vsel %vm1330, %v217, %v1764
    %v2025 = vsel %vm1331, %v218, %v1699
    %v2026 = vsel %vm1331, %v219, %v1700
    %v2027 = vsel %vm1332, %v220, %v1635
    %v2028 = vsel %vm1332, %v221, %v1636
    %v2029 = vsel %vm1333, %v222, %v1827
    %v2030 = vsel %vm1333, %v223, %v1828
    %v2031 = vsel %vm1330, %v224, %v1765
    %v2032 = vsel %vm1330, %v225, %v1766
    %v2033 = vsel %vm1331, %v226, %v1701
    %v2034 = vsel %vm1331, %v227, %v1702
    %v2035 = vsel %vm1332, %v228, %v1637
    %v2036 = vsel %vm1332, %v229, %v1638
    %v2037 = vsel %vm1333, %v230, %v1829
    %v2038 = vsel %vm1333, %v231, %v1830
    %v2039 = vsel %vm1330, %v232, %v1767
    %v2040 = vsel %vm1330, %v233, %v1768
    %v2041 = vsel %vm1331, %v234, %v1703
    %v2042 = vsel %vm1331, %v235, %v1704
    %v2043 = vsel %vm1332, %v236, %v1639
    %v2044 = vsel %vm1332, %v237, %v1640
    %v2045 = vsel %vm1333, %v238, %v1831
    %v2046 = vsel %vm1333, %v239, %v1832
    %v2047 = vsel %vm1330, %v240, %v1769
    %v2048 = vsel %vm1330, %v241, %v1770
    %v2049 = vsel %vm1331, %v242, %v1705
    %v2050 = vsel %vm1331, %v243, %v1706
    %v2051 = vsel %vm1332, %v244, %v1641
    %v2052 = vsel %vm1332, %v245, %v1642
    %v2053 = vsel %vm1333, %v246, %v1833
    %v2054 = vsel %vm1333, %v247, %v1834
    %v2055 = vsel %vm1330, %v248, %v1771
    %v2056 = vsel %vm1330, %v249, %v1772
    %v2057 = vsel %vm1331, %v250, %v1707
    %v2058 = vsel %vm1331, %v251, %v1708
    %v2059 = vsel %vm1332, %v252, %v1643
    %v2060 = vsel %vm1332, %v253, %v1644
    %v2061 = vsel %vm1333, %v254, %v1835
    %v2062 = vsel %vm1333, %v255, %v1836
    %v2063 = vsel %vm1330, %v256, %v1773
    %v2064 = vsel %vm1330, %v257, %v1774
    %v2065 = vsel %vm1331, %v258, %v1709
    %v2066 = vsel %vm1331, %v259, %v1710
    %v2067 = vsel %vm1332, %v260, %v1645
    %v2068 = vsel %vm1332, %v261, %v1646
    %v2069 = vsel %vm1333, %v262, %v1837
    %v2070 = vsel %vm1333, %v263, %v1838
    %v2071 = vsel %vm1330, %v264, %v1775
    %v2072 = vsel %vm1330, %v265, %v1776
    %v2073 = vsel %vm1331, %v266, %v1711
    %v2074 = vsel %vm1331, %v267, %v1712
    %v2075 = vsel %vm1332, %v268, %v1647
    %v2076 = vsel %vm1332, %v269, %v1648
    %v2077 = vsel %vm1333, %v270, %v1839
    %v2078 = vsel %vm1333, %v271, %v1840
    %v2079 = vsel %vm1330, %v272, %v1777
    %v2080 = vsel %vm1330, %v273, %v1778
    %v2081 = vsel %vm1331, %v274, %v1713
    %v2082 = vsel %vm1331, %v275, %v1714
    %v2083 = vsel %vm1332, %v276, %v1649
    %v2084 = vsel %vm1332, %v277, %v1650
    %v2085 = vsel %vm1333, %v278, %v1841
    %v2086 = vsel %vm1333, %v279, %v1842
    %v2087 = vsel %vm1330, %v280, %v1779
    %v2088 = vsel %vm1330, %v281, %v1780
    %v2089 = vsel %vm1331, %v282, %v1715
    %v2090 = vsel %vm1331, %v283, %v1716
    %v2091 = vsel %vm1332, %v284, %v1651
    %v2092 = vsel %vm1332, %v285, %v1652
    %v2093 = vsel %vm1333, %v286, %v1843
    %v2094 = vsel %vm1333, %v287, %v1844
    %v2095 = vsel %vm1330, %v288, %v1781
    %v2096 = vsel %vm1330, %v289, %v1782
    %v2097 = vsel %vm1331, %v290, %v1717
    %v2098 = vsel %vm1331, %v291, %v1718
    %v2099 = vsel %vm1332, %v292, %v1653
    %v2100 = vsel %vm1332, %v293, %v1654
    %v2101 = vsel %vm1333, %v294, %v1845
    %v2102 = vsel %vm1333, %v295, %v1846
    %v2103 = vsub.f32 %v1847, %v1074
    %v2104 = vsub.f32 %v1848, %v1075
    %v2105 = vsub.f32 %v1849, %v1076
    %v2106 = vsub.f32 %v1850, %v1077
    %v2107 = vsub.f32 %v1851, %v1078
    %v2108 = vsub.f32 %v1852, %v1079
    %v2109 = vsub.f32 %v1853, %v1080
    %v2110 = vsub.f32 %v1854, %v1081
    %v2111 = vsub.f32 %v1855, %v1082
    %v2112 = vsub.f32 %v1856, %v1083
    %v2113 = vsub.f32 %v1857, %v1084
    %v2114 = vsub.f32 %v1858, %v1085
    %v2115 = vsub.f32 %v1859, %v1086
    %v2116 = vsub.f32 %v1860, %v1087
    %v2117 = vsub.f32 %v1861, %v1088
    %v2118 = vsub.f32 %v1862, %v1089
    %v2119 = vsub.f32 %v1863, %v1090
    %v2120 = vsub.f32 %v1864, %v1091
    %v2121 = vsub.f32 %v1865, %v1092
    %v2122 = vsub.f32 %v1866, %v1093
    %v2123 = vsub.f32 %v1867, %v1094
    %v2124 = vsub.f32 %v1868, %v1095
    %v2125 = vsub.f32 %v1869, %v1096
    %v2126 = vsub.f32 %v1870, %v1097
    %v2127 = vsub.f32 %v1871, %v1098
    %v2128 = vsub.f32 %v1872, %v1099
    %v2129 = vsub.f32 %v1873, %v1100
    %v2130 = vsub.f32 %v1874, %v1101
    %v2131 = vsub.f32 %v1875, %v1102
    %v2132 = vsub.f32 %v1876, %v1103
    %v2133 = vsub.f32 %v1877, %v1104
    %v2134 = vsub.f32 %v1878, %v1105
    %v2135 = vsub.f32 %v1879, %v1106
    %v2136 = vsub.f32 %v1880, %v1107
    %v2137 = vsub.f32 %v1881, %v1108
    %v2138 = vsub.f32 %v1882, %v1109
    %v2139 = vsub.f32 %v1883, %v1110
    %v2140 = vsub.f32 %v1884, %v1111
    %v2141 = vsub.f32 %v1885, %v1112
    %v2142 = vsub.f32 %v1886, %v1113
    %v2143 = vsub.f32 %v1887, %v1114
    %v2144 = vsub.f32 %v1888, %v1115
    %v2145 = vsub.f32 %v1889, %v1116
    %v2146 = vsub.f32 %v1890, %v1117
    %v2147 = vsub.f32 %v1891, %v1118
    %v2148 = vsub.f32 %v1892, %v1119
    %v2149 = vsub.f32 %v1893, %v1120
    %v2150 = vsub.f32 %v1894, %v1121
    %v2151 = vsub.f32 %v1895, %v1122
    %v2152 = vsub.f32 %v1896, %v1123
    %v2153 = vsub.f32 %v1897, %v1124
    %v2154 = vsub.f32 %v1898, %v1125
    %v2155 = vsub.f32 %v1899, %v1126
    %v2156 = vsub.f32 %v1900, %v1127
    %v2157 = vsub.f32 %v1901, %v1128
    %v2158 = vsub.f32 %v1902, %v1129
    %v2159 = vsub.f32 %v1903, %v1130
    %v2160 = vsub.f32 %v1904, %v1131
    %v2161 = vsub.f32 %v1905, %v1132
    %v2162 = vsub.f32 %v1906, %v1133
    %v2163 = vsub.f32 %v1907, %v1134
    %v2164 = vsub.f32 %v1908, %v1135
    %v2165 = vsub.f32 %v1909, %v1136
    %v2166 = vsub.f32 %v1910, %v1137
    %v2167 = vsub.f32 %v1911, %v1138
    %v2168 = vsub.f32 %v1912, %v1139
    %v2169 = vsub.f32 %v1913, %v1140
    %v2170 = vsub.f32 %v1914, %v1141
    %v2171 = vsub.f32 %v1915, %v1142
    %v2172 = vsub.f32 %v1916, %v1143
    %v2173 = vsub.f32 %v1917, %v1144
    %v2174 = vsub.f32 %v1918, %v1145
    %v2175 = vsub.f32 %v1919, %v1146
    %v2176 = vsub.f32 %v1920, %v1147
    %v2177 = vsub.f32 %v1921, %v1148
    %v2178 = vsub.f32 %v1922, %v1149
    %v2179 = vsub.f32 %v1923, %v1150
    %v2180 = vsub.f32 %v1924, %v1151
    %v2181 = vsub.f32 %v1925, %v1152
    %v2182 = vsub.f32 %v1926, %v1153
    %v2183 = vsub.f32 %v1927, %v1154
    %v2184 = vsub.f32 %v1928, %v1155
    %v2185 = vsub.f32 %v1929, %v1156
    %v2186 = vsub.f32 %v1930, %v1157
    %v2187 = vsub.f32 %v1931, %v1158
    %v2188 = vsub.f32 %v1932, %v1159
    %v2189 = vsub.f32 %v1933, %v1160
    %v2190 = vsub.f32 %v1934, %v1161
    %v2191 = vsub.f32 %v1935, %v1162
    %v2192 = vsub.f32 %v1936, %v1163
    %v2193 = vsub.f32 %v1937, %v1164
    %v2194 = vsub.f32 %v1938, %v1165
    %v2195 = vsub.f32 %v1939, %v1166
    %v2196 = vsub.f32 %v1940, %v1167
    %v2197 = vsub.f32 %v1941, %v1168
    %v2198 = vsub.f32 %v1942, %v1169
    %v2199 = vsub.f32 %v1943, %v1170
    %v2200 = vsub.f32 %v1944, %v1171
    %v2201 = vsub.f32 %v1945, %v1172
    %v2202 = vsub.f32 %v1946, %v1173
    %v2203 = vsub.f32 %v1947, %v1174
    %v2204 = vsub.f32 %v1948, %v1175
    %v2205 = vsub.f32 %v1949, %v1176
    %v2206 = vsub.f32 %v1950, %v1177
    %v2207 = vsub.f32 %v1951, %v1178
    %v2208 = vsub.f32 %v1952, %v1179
    %v2209 = vsub.f32 %v1953, %v1180
    %v2210 = vsub.f32 %v1954, %v1181
    %v2211 = vsub.f32 %v1955, %v1182
    %v2212 = vsub.f32 %v1956, %v1183
    %v2213 = vsub.f32 %v1957, %v1184
    %v2214 = vsub.f32 %v1958, %v1185
    %v2215 = vsub.f32 %v1959, %v1186
    %v2216 = vsub.f32 %v1960, %v1187
    %v2217 = vsub.f32 %v1961, %v1188
    %v2218 = vsub.f32 %v1962, %v1189
    %v2219 = vsub.f32 %v1963, %v1190
    %v2220 = vsub.f32 %v1964, %v1191
    %v2221 = vsub.f32 %v1965, %v1192
    %v2222 = vsub.f32 %v1966, %v1193
    %v2223 = vsub.f32 %v1967, %v1194
    %v2224 = vsub.f32 %v1968, %v1195
    %v2225 = vsub.f32 %v1969, %v1196
    %v2226 = vsub.f32 %v1970, %v1197
    %v2227 = vsub.f32 %v1971, %v1198
    %v2228 = vsub.f32 %v1972, %v1199
    %v2229 = vsub.f32 %v1973, %v1200
    %v2230 = vsub.f32 %v1974, %v1201
    %v2231 = vsub.f32 %v1975, %v1202
    %v2232 = vsub.f32 %v1976, %v1203
    %v2233 = vsub.f32 %v1977, %v1204
    %v2234 = vsub.f32 %v1978, %v1205
    %v2235 = vsub.f32 %v1979, %v1206
    %v2236 = vsub.f32 %v1980, %v1207
    %v2237 = vsub.f32 %v1981, %v1208
    %v2238 = vsub.f32 %v1982, %v1209
    %v2239 = vsub.f32 %v1983, %v1210
    %v2240 = vsub.f32 %v1984, %v1211
    %v2241 = vsub.f32 %v1985, %v1212
    %v2242 = vsub.f32 %v1986, %v1213
    %v2243 = vsub.f32 %v1987, %v1214
    %v2244 = vsub.f32 %v1988, %v1215
    %v2245 = vsub.f32 %v1989, %v1216
    %v2246 = vsub.f32 %v1990, %v1217
    %v2247 = vsub.f32 %v1991, %v1218
    %v2248 = vsub.f32 %v1992, %v1219
    %v2249 = vsub.f32 %v1993, %v1220
    %v2250 = vsub.f32 %v1994, %v1221
    %v2251 = vsub.f32 %v1995, %v1222
    %v2252 = vsub.f32 %v1996, %v1223
    %v2253 = vsub.f32 %v1997, %v1224
    %v2254 = vsub.f32 %v1998, %v1225
    %v2255 = vsub.f32 %v1999, %v1226
    %v2256 = vsub.f32 %v2000, %v1227
    %v2257 = vsub.f32 %v2001, %v1228
    %v2258 = vsub.f32 %v2002, %v1229
    %v2259 = vsub.f32 %v2003, %v1230
    %v2260 = vsub.f32 %v2004, %v1231
    %v2261 = vsub.f32 %v2005, %v1232
    %v2262 = vsub.f32 %v2006, %v1233
    %v2263 = vsub.f32 %v2007, %v1234
    %v2264 = vsub.f32 %v2008, %v1235
    %v2265 = vsub.f32 %v2009, %v1236
    %v2266 = vsub.f32 %v2010, %v1237
    %v2267 = vsub.f32 %v2011, %v1238
    %v2268 = vsub.f32 %v2012, %v1239
    %v2269 = vsub.f32 %v2013, %v1240
    %v2270 = vsub.f32 %v2014, %v1241
    %v2271 = vsub.f32 %v2015, %v1242
    %v2272 = vsub.f32 %v2016, %v1243
    %v2273 = vsub.f32 %v2017, %v1244
    %v2274 = vsub.f32 %v2018, %v1245
    %v2275 = vsub.f32 %v2019, %v1246
    %v2276 = vsub.f32 %v2020, %v1247
    %v2277 = vsub.f32 %v2021, %v1248
    %v2278 = vsub.f32 %v2022, %v1249
    %v2279 = vsub.f32 %v2023, %v1250
    %v2280 = vsub.f32 %v2024, %v1251
    %v2281 = vsub.f32 %v2025, %v1252
    %v2282 = vsub.f32 %v2026, %v1253
    %v2283 = vsub.f32 %v2027, %v1254
    %v2284 = vsub.f32 %v2028, %v1255
    %v2285 = vsub.f32 %v2029, %v1256
    %v2286 = vsub.f32 %v2030, %v1257
    %v2287 = vsub.f32 %v2031, %v1258
    %v2288 = vsub.f32 %v2032, %v1259
    %v2289 = vsub.f32 %v2033, %v1260
    %v2290 = vsub.f32 %v2034, %v1261
    %v2291 = vsub.f32 %v2035, %v1262
    %v2292 = vsub.f32 %v2036, %v1263
    %v2293 = vsub.f32 %v2037, %v1264
    %v2294 = vsub.f32 %v2038, %v1265
    %v2295 = vsub.f32 %v2039, %v1266
    %v2296 = vsub.f32 %v2040, %v1267
    %v2297 = vsub.f32 %v2041, %v1268
    %v2298 = vsub.f32 %v2042, %v1269
    %v2299 = vsub.f32 %v2043, %v1270
    %v2300 = vsub.f32 %v2044, %v1271
    %v2301 = vsub.f32 %v2045, %v1272
    %v2302 = vsub.f32 %v2046, %v1273
    %v2303 = vsub.f32 %v2047, %v1274
    %v2304 = vsub.f32 %v2048, %v1275
    %v2305 = vsub.f32 %v2049, %v1276
    %v2306 = vsub.f32 %v2050, %v1277
    %v2307 = vsub.f32 %v2051, %v1278
    %v2308 = vsub.f32 %v2052, %v1279
    %v2309 = vsub.f32 %v2053, %v1280
    %v2310 = vsub.f32 %v2054, %v1281
    %v2311 = vsub.f32 %v2055, %v1282
    %v2312 = vsub.f32 %v2056, %v1283
    %v2313 = vsub.f32 %v2057, %v1284
    %v2314 = vsub.f32 %v2058, %v1285
    %v2315 = vsub.f32 %v2059, %v1286
    %v2316 = vsub.f32 %v2060, %v1287
    %v2317 = vsub.f32 %v2061, %v1288
    %v2318 = vsub.f32 %v2062, %v1289
    %v2319 = vsub.f32 %v2063, %v1290
    %v2320 = vsub.f32 %v2064, %v1291
    %v2321 = vsub.f32 %v2065, %v1292
    %v2322 = vsub.f32 %v2066, %v1293
    %v2323 = vsub.f32 %v2067, %v1294
    %v2324 = vsub.f32 %v2068, %v1295
    %v2325 = vsub.f32 %v2069, %v1296
    %v2326 = vsub.f32 %v2070, %v1297
    %v2327 = vsub.f32 %v2071, %v1298
    %v2328 = vsub.f32 %v2072, %v1299
    %v2329 = vsub.f32 %v2073, %v1300
    %v2330 = vsub.f32 %v2074, %v1301
    %v2331 = vsub.f32 %v2075, %v1302
    %v2332 = vsub.f32 %v2076, %v1303
    %v2333 = vsub.f32 %v2077, %v1304
    %v2334 = vsub.f32 %v2078, %v1305
    %v2335 = vsub.f32 %v2079, %v1306
    %v2336 = vsub.f32 %v2080, %v1307
    %v2337 = vsub.f32 %v2081, %v1308
    %v2338 = vsub.f32 %v2082, %v1309
    %v2339 = vsub.f32 %v2083, %v1310
    %v2340 = vsub.f32 %v2084, %v1311
    %v2341 = vsub.f32 %v2085, %v1312
    %v2342 = vsub.f32 %v2086, %v1313
    %v2343 = vsub.f32 %v2087, %v1314
    %v2344 = vsub.f32 %v2088, %v1315
    %v2345 = vsub.f32 %v2089, %v1316
    %v2346 = vsub.f32 %v2090, %v1317
    %v2347 = vsub.f32 %v2091, %v1318
    %v2348 = vsub.f32 %v2092, %v1319
    %v2349 = vsub.f32 %v2093, %v1320
    %v2350 = vsub.f32 %v2094, %v1321
    %v2351 = vsub.f32 %v2095, %v1322
    %v2352 = vsub.f32 %v2096, %v1323
    %v2353 = vsub.f32 %v2097, %v1324
    %v2354 = vsub.f32 %v2098, %v1325
    %v2355 = vsub.f32 %v2099, %v1326
    %v2356 = vsub.f32 %v2100, %v1327
    %v2357 = vsub.f32 %v2101, %v1328
    %v2358 = vsub.f32 %v2102, %v1329
    %v2359 = vmul.f32 %v40, 2.0
    %v2360 = vmul.f32 %v41, 2.0
    %v2361 = vmul.f32 %v42, 2.0
    %v2362 = vmul.f32 %v43, 2.0
    %v2363 = vmul.f32 %v44, 2.0
    %v2364 = vmul.f32 %v45, 2.0
    %v2365 = vmul.f32 %v46, 2.0
    %v2366 = vmul.f32 %v47, 2.0
    %v2367 = vmul.f32 %v48, 2.0
    %v2368 = vmul.f32 %v49, 2.0
    %v2369 = vmul.f32 %v50, 2.0
    %v2370 = vmul.f32 %v51, 2.0
    %v2371 = vmul.f32 %v52, 2.0
    %v2372 = vmul.f32 %v53, 2.0
    %v2373 = vmul.f32 %v54, 2.0
    %v2374 = vmul.f32 %v55, 2.0
    %v2375 = vmul.f32 %v56, 2.0
    %v2376 = vmul.f32 %v57, 2.0
    %v2377 = vmul.f32 %v58, 2.0
    %v2378 = vmul.f32 %v59, 2.0
    %v2379 = vmul.f32 %v60, 2.0
    %v2380 = vmul.f32 %v61, 2.0
    %v2381 = vmul.f32 %v62, 2.0
    %v2382 = vmul.f32 %v63, 2.0
    %v2383 = vmul.f32 %v64, 2.0
    %v2384 = vmul.f32 %v65, 2.0
    %v2385 = vmul.f32 %v66, 2.0
    %v2386 = vmul.f32 %v67, 2.0
    %v2387 = vmul.f32 %v68, 2.0
    %v2388 = vmul.f32 %v69, 2.0
    %v2389 = vmul.f32 %v70, 2.0
    %v2390 = vmul.f32 %v71, 2.0
    %v2391 = vmul.f32 %v72, 2.0
    %v2392 = vmul.f32 %v73, 2.0
    %v2393 = vmul.f32 %v74, 2.0
    %v2394 = vmul.f32 %v75, 2.0
    %v2395 = vmul.f32 %v76, 2.0
    %v2396 = vmul.f32 %v77, 2.0
    %v2397 = vmul.f32 %v78, 2.0
    %v2398 = vmul.f32 %v79, 2.0
    %v2399 = vmul.f32 %v80, 2.0
    %v2400 = vmul.f32 %v81, 2.0
    %v2401 = vmul.f32 %v82, 2.0
    %v2402 = vmul.f32 %v83, 2.0
    %v2403 = vmul.f32 %v84, 2.0
    %v2404 = vmul.f32 %v85, 2.0
    %v2405 = vmul.f32 %v86, 2.0
    %v2406 = vmul.f32 %v87, 2.0
    %v2407 = vmul.f32 %v88, 2.0
    %v2408 = vmul.f32 %v89, 2.0
    %v2409 = vmul.f32 %v90, 2.0
    %v2410 = vmul.f32 %v91, 2.0
    %v2411 = vmul.f32 %v92, 2.0
    %v2412 = vmul.f32 %v93, 2.0
    %v2413 = vmul.f32 %v94, 2.0
    %v2414 = vmul.f32 %v95, 2.0
    %v2415 = vmul.f32 %v96, 2.0
    %v2416 = vmul.f32 %v97, 2.0
    %v2417 = vmul.f32 %v98, 2.0
    %v2418 = vmul.f32 %v99, 2.0
    %v2419 = vmul.f32 %v100, 2.0
    %v2420 = vmul.f32 %v101, 2.0
    %v2421 = vmul.f32 %v102, 2.0
    %v2422 = vmul.f32 %v103, 2.0
    %v2423 = vmul.f32 %v104, 2.0
    %v2424 = vmul.f32 %v105, 2.0
    %v2425 = vmul.f32 %v106, 2.0
    %v2426 = vmul.f32 %v107, 2.0
    %v2427 = vmul.f32 %v108, 2.0
    %v2428 = vmul.f32 %v109, 2.0
    %v2429 = vmul.f32 %v110, 2.0
    %v2430 = vmul.f32 %v111, 2.0
    %v2431 = vmul.f32 %v112, 2.0
    %v2432 = vmul.f32 %v113, 2.0
    %v2433 = vmul.f32 %v114, 2.0
    %v2434 = vmul.f32 %v115, 2.0
    %v2435 = vmul.f32 %v116, 2.0
    %v2436 = vmul.f32 %v117, 2.0
    %v2437 = vmul.f32 %v118, 2.0
    %v2438 = vmul.f32 %v119, 2.0
    %v2439 = vmul.f32 %v120, 2.0
    %v2440 = vmul.f32 %v121, 2.0
    %v2441 = vmul.f32 %v122, 2.0
    %v2442 = vmul.f32 %v123, 2.0
    %v2443 = vmul.f32 %v124, 2.0
    %v2444 = vmul.f32 %v125, 2.0
    %v2445 = vmul.f32 %v126, 2.0
    %v2446 = vmul.f32 %v127, 2.0
    %v2447 = vmul.f32 %v128, 2.0
    %v2448 = vmul.f32 %v129, 2.0
    %v2449 = vmul.f32 %v130, 2.0
    %v2450 = vmul.f32 %v131, 2.0
    %v2451 = vmul.f32 %v132, 2.0
    %v2452 = vmul.f32 %v133, 2.0
    %v2453 = vmul.f32 %v134, 2.0
    %v2454 = vmul.f32 %v135, 2.0
    %v2455 = vmul.f32 %v136, 2.0
    %v2456 = vmul.f32 %v137, 2.0
    %v2457 = vmul.f32 %v138, 2.0
    %v2458 = vmul.f32 %v139, 2.0
    %v2459 = vmul.f32 %v140, 2.0
    %v2460 = vmul.f32 %v141, 2.0
    %v2461 = vmul.f32 %v142, 2.0
    %v2462 = vmul.f32 %v143, 2.0
    %v2463 = vmul.f32 %v144, 2.0
    %v2464 = vmul.f32 %v145, 2.0
    %v2465 = vmul.f32 %v146, 2.0
    %v2466 = vmul.f32 %v147, 2.0
    %v2467 = vmul.f32 %v148, 2.0
    %v2468 = vmul.f32 %v149, 2.0
    %v2469 = vmul.f32 %v150, 2.0
    %v2470 = vmul.f32 %v151, 2.0
    %v2471 = vmul.f32 %v152, 2.0
    %v2472 = vmul.f32 %v153, 2.0
    %v2473 = vmul.f32 %v154, 2.0
    %v2474 = vmul.f32 %v155, 2.0
    %v2475 = vmul.f32 %v156, 2.0
    %v2476 = vmul.f32 %v157, 2.0
    %v2477 = vmul.f32 %v158, 2.0
    %v2478 = vmul.f32 %v159, 2.0
    %v2479 = vmul.f32 %v160, 2.0
    %v2480 = vmul.f32 %v161, 2.0
    %v2481 = vmul.f32 %v162, 2.0
    %v2482 = vmul.f32 %v163, 2.0
    %v2483 = vmul.f32 %v164, 2.0
    %v2484 = vmul.f32 %v165, 2.0
    %v2485 = vmul.f32 %v166, 2.0
    %v2486 = vmul.f32 %v167, 2.0
    %v2487 = vmul.f32 %v168, 2.0
    %v2488 = vmul.f32 %v169, 2.0
    %v2489 = vmul.f32 %v170, 2.0
    %v2490 = vmul.f32 %v171, 2.0
    %v2491 = vmul.f32 %v172, 2.0
    %v2492 = vmul.f32 %v173, 2.0
    %v2493 = vmul.f32 %v174, 2.0
    %v2494 = vmul.f32 %v175, 2.0
    %v2495 = vmul.f32 %v176, 2.0
    %v2496 = vmul.f32 %v177, 2.0
    %v2497 = vmul.f32 %v178, 2.0
    %v2498 = vmul.f32 %v179, 2.0
    %v2499 = vmul.f32 %v180, 2.0
    %v2500 = vmul.f32 %v181, 2.0
    %v2501 = vmul.f32 %v182, 2.0
    %v2502 = vmul.f32 %v183, 2.0
    %v2503 = vmul.f32 %v184, 2.0
    %v2504 = vmul.f32 %v185, 2.0
    %v2505 = vmul.f32 %v186, 2.0
    %v2506 = vmul.f32 %v187, 2.0
    %v2507 = vmul.f32 %v188, 2.0
    %v2508 = vmul.f32 %v189, 2.0
    %v2509 = vmul.f32 %v190, 2.0
    %v2510 = vmul.f32 %v191, 2.0
    %v2511 = vmul.f32 %v192, 2.0
    %v2512 = vmul.f32 %v193, 2.0
    %v2513 = vmul.f32 %v194, 2.0
    %v2514 = vmul.f32 %v195, 2.0
    %v2515 = vmul.f32 %v196, 2.0
    %v2516 = vmul.f32 %v197, 2.0
    %v2517 = vmul.f32 %v198, 2.0
    %v2518 = vmul.f32 %v199, 2.0
    %v2519 = vmul.f32 %v200, 2.0
    %v2520 = vmul.f32 %v201, 2.0
    %v2521 = vmul.f32 %v202, 2.0
    %v2522 = vmul.f32 %v203, 2.0
    %v2523 = vmul.f32 %v204, 2.0
    %v2524 = vmul.f32 %v205, 2.0
    %v2525 = vmul.f32 %v206, 2.0
    %v2526 = vmul.f32 %v207, 2.0
    %v2527 = vmul.f32 %v208, 2.0
    %v2528 = vmul.f32 %v209, 2.0
    %v2529 = vmul.f32 %v210, 2.0
    %v2530 = vmul.f32 %v211, 2.0
    %v2531 = vmul.f32 %v212, 2.0
    %v2532 = vmul.f32 %v213, 2.0
    %v2533 = vmul.f32 %v214, 2.0
    %v2534 = vmul.f32 %v215, 2.0
    %v2535 = vmul.f32 %v216, 2.0
    %v2536 = vmul.f32 %v217, 2.0
    %v2537 = vmul.f32 %v218, 2.0
    %v2538 = vmul.f32 %v219, 2.0
    %v2539 = vmul.f32 %v220, 2.0
    %v2540 = vmul.f32 %v221, 2.0
    %v2541 = vmul.f32 %v222, 2.0
    %v2542 = vmul.f32 %v223, 2.0
    %v2543 = vmul.f32 %v224, 2.0
    %v2544 = vmul.f32 %v225, 2.0
    %v2545 = vmul.f32 %v226, 2.0
    %v2546 = vmul.f32 %v227, 2.0
    %v2547 = vmul.f32 %v228, 2.0
    %v2548 = vmul.f32 %v229, 2.0
    %v2549 = vmul.f32 %v230, 2.0
    %v2550 = vmul.f32 %v231, 2.0
    %v2551 = vmul.f32 %v232, 2.0
    %v2552 = vmul.f32 %v233, 2.0
    %v2553 = vmul.f32 %v234, 2.0
    %v2554 = vmul.f32 %v235, 2.0
    %v2555 = vmul.f32 %v236, 2.0
    %v2556 = vmul.f32 %v237, 2.0
    %v2557 = vmul.f32 %v238, 2.0
    %v2558 = vmul.f32 %v239, 2.0
    %v2559 = vmul.f32 %v240, 2.0
    %v2560 = vmul.f32 %v241, 2.0
    %v2561 = vmul.f32 %v242, 2.0
    %v2562 = vmul.f32 %v243, 2.0
    %v2563 = vmul.f32 %v244, 2.0
    %v2564 = vmul.f32 %v245, 2.0
    %v2565 = vmul.f32 %v246, 2.0
    %v2566 = vmul.f32 %v247, 2.0
    %v2567 = vmul.f32 %v248, 2.0
    %v2568 = vmul.f32 %v249, 2.0
    %v2569 = vmul.f32 %v250, 2.0
    %v2570 = vmul.f32 %v251, 2.0
    %v2571 = vmul.f32 %v252, 2.0
    %v2572 = vmul.f32 %v253, 2.0
    %v2573 = vmul.f32 %v254, 2.0
    %v2574 = vmul.f32 %v255, 2.0
    %v2575 = vmul.f32 %v256, 2.0
    %v2576 = vmul.f32 %v257, 2.0
    %v2577 = vmul.f32 %v258, 2.0
    %v2578 = vmul.f32 %v259, 2.0
    %v2579 = vmul.f32 %v260, 2.0
    %v2580 = vmul.f32 %v261, 2.0
    %v2581 = vmul.f32 %v262, 2.0
    %v2582 = vmul.f32 %v263, 2.0
    %v2583 = vmul.f32 %v264, 2.0
    %v2584 = vmul.f32 %v265, 2.0
    %v2585 = vmul.f32 %v266, 2.0
    %v2586 = vmul.f32 %v267, 2.0
    %v2587 = vmul.f32 %v268, 2.0
    %v2588 = vmul.f32 %v269, 2.0
    %v2589 = vmul.f32 %v270, 2.0
    %v2590 = vmul.f32 %v271, 2.0
    %v2591 = vmul.f32 %v272, 2.0
    %v2592 = vmul.f32 %v273, 2.0
    %v2593 = vmul.f32 %v274, 2.0
    %v2594 = vmul.f32 %v275, 2.0
    %v2595 = vmul.f32 %v276, 2.0
    %v2596 = vmul.f32 %v277, 2.0
    %v2597 = vmul.f32 %v278, 2.0
    %v2598 = vmul.f32 %v279, 2.0
    %v2599 = vmul.f32 %v280, 2.0
    %v2600 = vmul.f32 %v281, 2.0
    %v2601 = vmul.f32 %v282, 2.0
    %v2602 = vmul.f32 %v283, 2.0
    %v2603 = vmul.f32 %v284, 2.0
    %v2604 = vmul.f32 %v285, 2.0
    %v2605 = vmul.f32 %v286, 2.0
    %v2606 = vmul.f32 %v287, 2.0
    %v2607 = vmul.f32 %v288, 2.0
    %v2608 = vmul.f32 %v289, 2.0
    %v2609 = vmul.f32 %v290, 2.0
    %v2610 = vmul.f32 %v291, 2.0
    %v2611 = vmul.f32 %v292, 2.0
    %v2612 = vmul.f32 %v293, 2.0
    %v2613 = vmul.f32 %v294, 2.0
    %v2614 = vmul.f32 %v295, 2.0
    %v2615 = vadd.f32 %v1074, %v2359
    %v2616 = vadd.f32 %v1075, %v2360
    %v2617 = vadd.f32 %v1076, %v2361
    %v2618 = vadd.f32 %v1077, %v2362
    %v2619 = vadd.f32 %v1078, %v2363
    %v2620 = vadd.f32 %v1079, %v2364
    %v2621 = vadd.f32 %v1080, %v2365
    %v2622 = vadd.f32 %v1081, %v2366
    %v2623 = vadd.f32 %v1082, %v2367
    %v2624 = vadd.f32 %v1083, %v2368
    %v2625 = vadd.f32 %v1084, %v2369
    %v2626 = vadd.f32 %v1085, %v2370
    %v2627 = vadd.f32 %v1086, %v2371
    %v2628 = vadd.f32 %v1087, %v2372
    %v2629 = vadd.f32 %v1088, %v2373
    %v2630 = vadd.f32 %v1089, %v2374
    %v2631 = vadd.f32 %v1090, %v2375
    %v2632 = vadd.f32 %v1091, %v2376
    %v2633 = vadd.f32 %v1092, %v2377
    %v2634 = vadd.f32 %v1093, %v2378
    %v2635 = vadd.f32 %v1094, %v2379
    %v2636 = vadd.f32 %v1095, %v2380
    %v2637 = vadd.f32 %v1096, %v2381
    %v2638 = vadd.f32 %v1097, %v2382
    %v2639 = vadd.f32 %v1098, %v2383
    %v2640 = vadd.f32 %v1099, %v2384
    %v2641 = vadd.f32 %v1100, %v2385
    %v2642 = vadd.f32 %v1101, %v2386
    %v2643 = vadd.f32 %v1102, %v2387
    %v2644 = vadd.f32 %v1103, %v2388
    %v2645 = vadd.f32 %v1104, %v2389
    %v2646 = vadd.f32 %v1105, %v2390
    %v2647 = vadd.f32 %v1106, %v2391
    %v2648 = vadd.f32 %v1107, %v2392
    %v2649 = vadd.f32 %v1108, %v2393
    %v2650 = vadd.f32 %v1109, %v2394
    %v2651 = vadd.f32 %v1110, %v2395
    %v2652 = vadd.f32 %v1111, %v2396
    %v2653 = vadd.f32 %v1112, %v2397
    %v2654 = vadd.f32 %v1113, %v2398
    %v2655 = vadd.f32 %v1114, %v2399
    %v2656 = vadd.f32 %v1115, %v2400
    %v2657 = vadd.f32 %v1116, %v2401
    %v2658 = vadd.f32 %v1117, %v2402
    %v2659 = vadd.f32 %v1118, %v2403
    %v2660 = vadd.f32 %v1119, %v2404
    %v2661 = vadd.f32 %v1120, %v2405
    %v2662 = vadd.f32 %v1121, %v2406
    %v2663 = vadd.f32 %v1122, %v2407
    %v2664 = vadd.f32 %v1123, %v2408
    %v2665 = vadd.f32 %v1124, %v2409
    %v2666 = vadd.f32 %v1125, %v2410
    %v2667 = vadd.f32 %v1126, %v2411
    %v2668 = vadd.f32 %v1127, %v2412
    %v2669 = vadd.f32 %v1128, %v2413
    %v2670 = vadd.f32 %v1129, %v2414
    %v2671 = vadd.f32 %v1130, %v2415
    %v2672 = vadd.f32 %v1131, %v2416
    %v2673 = vadd.f32 %v1132, %v2417
    %v2674 = vadd.f32 %v1133, %v2418
    %v2675 = vadd.f32 %v1134, %v2419
    %v2676 = vadd.f32 %v1135, %v2420
    %v2677 = vadd.f32 %v1136, %v2421
    %v2678 = vadd.f32 %v1137, %v2422
    %v2679 = vadd.f32 %v1138, %v2423
    %v2680 = vadd.f32 %v1139, %v2424
    %v2681 = vadd.f32 %v1140, %v2425
    %v2682 = vadd.f32 %v1141, %v2426
    %v2683 = vadd.f32 %v1142, %v2427
    %v2684 = vadd.f32 %v1143, %v2428
    %v2685 = vadd.f32 %v1144, %v2429
    %v2686 = vadd.f32 %v1145, %v2430
    %v2687 = vadd.f32 %v1146, %v2431
    %v2688 = vadd.f32 %v1147, %v2432
    %v2689 = vadd.f32 %v1148, %v2433
    %v2690 = vadd.f32 %v1149, %v2434
    %v2691 = vadd.f32 %v1150, %v2435
    %v2692 = vadd.f32 %v1151, %v2436
    %v2693 = vadd.f32 %v1152, %v2437
    %v2694 = vadd.f32 %v1153, %v2438
    %v2695 = vadd.f32 %v1154, %v2439
    %v2696 = vadd.f32 %v1155, %v2440
    %v2697 = vadd.f32 %v1156, %v2441
    %v2698 = vadd.f32 %v1157, %v2442
    %v2699 = vadd.f32 %v1158, %v2443
    %v2700 = vadd.f32 %v1159, %v2444
    %v2701 = vadd.f32 %v1160, %v2445
    %v2702 = vadd.f32 %v1161, %v2446
    %v2703 = vadd.f32 %v1162, %v2447
    %v2704 = vadd.f32 %v1163, %v2448
    %v2705 = vadd.f32 %v1164, %v2449
    %v2706 = vadd.f32 %v1165, %v2450
    %v2707 = vadd.f32 %v1166, %v2451
    %v2708 = vadd.f32 %v1167, %v2452
    %v2709 = vadd.f32 %v1168, %v2453
    %v2710 = vadd.f32 %v1169, %v2454
    %v2711 = vadd.f32 %v1170, %v2455
    %v2712 = vadd.f32 %v1171, %v2456
    %v2713 = vadd.f32 %v1172, %v2457
    %v2714 = vadd.f32 %v1173, %v2458
    %v2715 = vadd.f32 %v1174, %v2459
    %v2716 = vadd.f32 %v1175, %v2460
    %v2717 = vadd.f32 %v1176, %v2461
    %v2718 = vadd.f32 %v1177, %v2462
    %v2719 = vadd.f32 %v1178, %v2463
    %v2720 = vadd.f32 %v1179, %v2464
    %v2721 = vadd.f32 %v1180, %v2465
    %v2722 = vadd.f32 %v1181, %v2466
    %v2723 = vadd.f32 %v1182, %v2467
    %v2724 = vadd.f32 %v1183, %v2468
    %v2725 = vadd.f32 %v1184, %v2469
    %v2726 = vadd.f32 %v1185, %v2470
    %v2727 = vadd.f32 %v1186, %v2471
    %v2728 = vadd.f32 %v1187, %v2472
    %v2729 = vadd.f32 %v1188, %v2473
    %v2730 = vadd.f32 %v1189, %v2474
    %v2731 = vadd.f32 %v1190, %v2475
    %v2732 = vadd.f32 %v1191, %v2476
    %v2733 = vadd.f32 %v1192, %v2477
    %v2734 = vadd.f32 %v1193, %v2478
    %v2735 = vadd.f32 %v1194, %v2479
    %v2736 = vadd.f32 %v1195, %v2480
    %v2737 = vadd.f32 %v1196, %v2481
    %v2738 = vadd.f32 %v1197, %v2482
    %v2739 = vadd.f32 %v1198, %v2483
    %v2740 = vadd.f32 %v1199, %v2484
    %v2741 = vadd.f32 %v1200, %v2485
    %v2742 = vadd.f32 %v1201, %v2486
    %v2743 = vadd.f32 %v1202, %v2487
    %v2744 = vadd.f32 %v1203, %v2488
    %v2745 = vadd.f32 %v1204, %v2489
    %v2746 = vadd.f32 %v1205, %v2490
    %v2747 = vadd.f32 %v1206, %v2491
    %v2748 = vadd.f32 %v1207, %v2492
    %v2749 = vadd.f32 %v1208, %v2493
    %v2750 = vadd.f32 %v1209, %v2494
    %v2751 = vadd.f32 %v1210, %v2495
    %v2752 = vadd.f32 %v1211, %v2496
    %v2753 = vadd.f32 %v1212, %v2497
    %v2754 = vadd.f32 %v1213, %v2498
    %v2755 = vadd.f32 %v1214, %v2499
    %v2756 = vadd.f32 %v1215, %v2500
    %v2757 = vadd.f32 %v1216, %v2501
    %v2758 = vadd.f32 %v1217, %v2502
    %v2759 = vadd.f32 %v1218, %v2503
    %v2760 = vadd.f32 %v1219, %v2504
    %v2761 = vadd.f32 %v1220, %v2505
    %v2762 = vadd.f32 %v1221, %v2506
    %v2763 = vadd.f32 %v1222, %v2507
    %v2764 = vadd.f32 %v1223, %v2508
    %v2765 = vadd.f32 %v1224, %v2509
    %v2766 = vadd.f32 %v1225, %v2510
    %v2767 = vadd.f32 %v1226, %v2511
    %v2768 = vadd.f32 %v1227, %v2512
    %v2769 = vadd.f32 %v1228, %v2513
    %v2770 = vadd.f32 %v1229, %v2514
    %v2771 = vadd.f32 %v1230, %v2515
    %v2772 = vadd.f32 %v1231, %v2516
    %v2773 = vadd.f32 %v1232, %v2517
    %v2774 = vadd.f32 %v1233, %v2518
    %v2775 = vadd.f32 %v1234, %v2519
    %v2776 = vadd.f32 %v1235, %v2520
    %v2777 = vadd.f32 %v1236, %v2521
    %v2778 = vadd.f32 %v1237, %v2522
    %v2779 = vadd.f32 %v1238, %v2523
    %v2780 = vadd.f32 %v1239, %v2524
    %v2781 = vadd.f32 %v1240, %v2525
    %v2782 = vadd.f32 %v1241, %v2526
    %v2783 = vadd.f32 %v1242, %v2527
    %v2784 = vadd.f32 %v1243, %v2528
    %v2785 = vadd.f32 %v1244, %v2529
    %v2786 = vadd.f32 %v1245, %v2530
    %v2787 = vadd.f32 %v1246, %v2531
    %v2788 = vadd.f32 %v1247, %v2532
    %v2789 = vadd.f32 %v1248, %v2533
    %v2790 = vadd.f32 %v1249, %v2534
    %v2791 = vadd.f32 %v1250, %v2535
    %v2792 = vadd.f32 %v1251, %v2536
    %v2793 = vadd.f32 %v1252, %v2537
    %v2794 = vadd.f32 %v1253, %v2538
    %v2795 = vadd.f32 %v1254, %v2539
    %v2796 = vadd.f32 %v1255, %v2540
    %v2797 = vadd.f32 %v1256, %v2541
    %v2798 = vadd.f32 %v1257, %v2542
    %v2799 = vadd.f32 %v1258, %v2543
    %v2800 = vadd.f32 %v1259, %v2544
    %v2801 = vadd.f32 %v1260, %v2545
    %v2802 = vadd.f32 %v1261, %v2546
    %v2803 = vadd.f32 %v1262, %v2547
    %v2804 = vadd.f32 %v1263, %v2548
    %v2805 = vadd.f32 %v1264, %v2549
    %v2806 = vadd.f32 %v1265, %v2550
    %v2807 = vadd.f32 %v1266, %v2551
    %v2808 = vadd.f32 %v1267, %v2552
    %v2809 = vadd.f32 %v1268, %v2553
    %v2810 = vadd.f32 %v1269, %v2554
    %v2811 = vadd.f32 %v1270, %v2555
    %v2812 = vadd.f32 %v1271, %v2556
    %v2813 = vadd.f32 %v1272, %v2557
    %v2814 = vadd.f32 %v1273, %v2558
    %v2815 = vadd.f32 %v1274, %v2559
    %v2816 = vadd.f32 %v1275, %v2560
    %v2817 = vadd.f32 %v1276, %v2561
    %v2818 = vadd.f32 %v1277, %v2562
    %v2819 = vadd.f32 %v1278, %v2563
    %v2820 = vadd.f32 %v1279, %v2564
    %v2821 = vadd.f32 %v1280, %v2565
    %v2822 = vadd.f32 %v1281, %v2566
    %v2823 = vadd.f32 %v1282, %v2567
    %v2824 = vadd.f32 %v1283, %v2568
    %v2825 = vadd.f32 %v1284, %v2569
    %v2826 = vadd.f32 %v1285, %v2570
    %v2827 = vadd.f32 %v1286, %v2571
    %v2828 = vadd.f32 %v1287, %v2572
    %v2829 = vadd.f32 %v1288, %v2573
    %v2830 = vadd.f32 %v1289, %v2574
    %v2831 = vadd.f32 %v1290, %v2575
    %v2832 = vadd.f32 %v1291, %v2576
    %v2833 = vadd.f32 %v1292, %v2577
    %v2834 = vadd.f32 %v1293, %v2578
    %v2835 = vadd.f32 %v1294, %v2579
    %v2836 = vadd.f32 %v1295, %v2580
    %v2837 = vadd.f32 %v1296, %v2581
    %v2838 = vadd.f32 %v1297, %v2582
    %v2839 = vadd.f32 %v1298, %v2583
    %v2840 = vadd.f32 %v1299, %v2584
    %v2841 = vadd.f32 %v1300, %v2585
    %v2842 = vadd.f32 %v1301, %v2586
    %v2843 = vadd.f32 %v1302, %v2587
    %v2844 = vadd.f32 %v1303, %v2588
    %v2845 = vadd.f32 %v1304, %v2589
    %v2846 = vadd.f32 %v1305, %v2590
    %v2847 = vadd.f32 %v1306, %v2591
    %v2848 = vadd.f32 %v1307, %v2592
    %v2849 = vadd.f32 %v1308, %v2593
    %v2850 = vadd.f32 %v1309, %v2594
    %v2851 = vadd.f32 %v1310, %v2595
    %v2852 = vadd.f32 %v1311, %v2596
    %v2853 = vadd.f32 %v1312, %v2597
    %v2854 = vadd.f32 %v1313, %v2598
    %v2855 = vadd.f32 %v1314, %v2599
    %v2856 = vadd.f32 %v1315, %v2600
    %v2857 = vadd.f32 %v1316, %v2601
    %v2858 = vadd.f32 %v1317, %v2602
    %v2859 = vadd.f32 %v1318, %v2603
    %v2860 = vadd.f32 %v1319, %v2604
    %v2861 = vadd.f32 %v1320, %v2605
    %v2862 = vadd.f32 %v1321, %v2606
    %v2863 = vadd.f32 %v1322, %v2607
    %v2864 = vadd.f32 %v1323, %v2608
    %v2865 = vadd.f32 %v1324, %v2609
    %v2866 = vadd.f32 %v1325, %v2610
    %v2867 = vadd.f32 %v1326, %v2611
    %v2868 = vadd.f32 %v1327, %v2612
    %v2869 = vadd.f32 %v1328, %v2613
    %v2870 = vadd.f32 %v1329, %v2614
    %v2871 = vadd.f32 %v2615, %v1847
    %v2872 = vadd.f32 %v2616, %v1848
    %v2873 = vadd.f32 %v2617, %v1849
    %v2874 = vadd.f32 %v2618, %v1850
    %v2875 = vadd.f32 %v2619, %v1851
    %v2876 = vadd.f32 %v2620, %v1852
    %v2877 = vadd.f32 %v2621, %v1853
    %v2878 = vadd.f32 %v2622, %v1854
    %v2879 = vadd.f32 %v2623, %v1855
    %v2880 = vadd.f32 %v2624, %v1856
    %v2881 = vadd.f32 %v2625, %v1857
    %v2882 = vadd.f32 %v2626, %v1858
    %v2883 = vadd.f32 %v2627, %v1859
    %v2884 = vadd.f32 %v2628, %v1860
    %v2885 = vadd.f32 %v2629, %v1861
    %v2886 = vadd.f32 %v2630, %v1862
    %v2887 = vadd.f32 %v2631, %v1863
    %v2888 = vadd.f32 %v2632, %v1864
    %v2889 = vadd.f32 %v2633, %v1865
    %v2890 = vadd.f32 %v2634, %v1866
    %v2891 = vadd.f32 %v2635, %v1867
    %v2892 = vadd.f32 %v2636, %v1868
    %v2893 = vadd.f32 %v2637, %v1869
    %v2894 = vadd.f32 %v2638, %v1870
    %v2895 = vadd.f32 %v2639, %v1871
    %v2896 = vadd.f32 %v2640, %v1872
    %v2897 = vadd.f32 %v2641, %v1873
    %v2898 = vadd.f32 %v2642, %v1874
    %v2899 = vadd.f32 %v2643, %v1875
    %v2900 = vadd.f32 %v2644, %v1876
    %v2901 = vadd.f32 %v2645, %v1877
    %v2902 = vadd.f32 %v2646, %v1878
    %v2903 = vadd.f32 %v2647, %v1879
    %v2904 = vadd.f32 %v2648, %v1880
    %v2905 = vadd.f32 %v2649, %v1881
    %v2906 = vadd.f32 %v2650, %v1882
    %v2907 = vadd.f32 %v2651, %v1883
    %v2908 = vadd.f32 %v2652, %v1884
    %v2909 = vadd.f32 %v2653, %v1885
    %v2910 = vadd.f32 %v2654, %v1886
    %v2911 = vadd.f32 %v2655, %v1887
    %v2912 = vadd.f32 %v2656, %v1888
    %v2913 = vadd.f32 %v2657, %v1889
    %v2914 = vadd.f32 %v2658, %v1890
    %v2915 = vadd.f32 %v2659, %v1891
    %v2916 = vadd.f32 %v2660, %v1892
    %v2917 = vadd.f32 %v2661, %v1893
    %v2918 = vadd.f32 %v2662, %v1894
    %v2919 = vadd.f32 %v2663, %v1895
    %v2920 = vadd.f32 %v2664, %v1896
    %v2921 = vadd.f32 %v2665, %v1897
    %v2922 = vadd.f32 %v2666, %v1898
    %v2923 = vadd.f32 %v2667, %v1899
    %v2924 = vadd.f32 %v2668, %v1900
    %v2925 = vadd.f32 %v2669, %v1901
    %v2926 = vadd.f32 %v2670, %v1902
    %v2927 = vadd.f32 %v2671, %v1903
    %v2928 = vadd.f32 %v2672, %v1904
    %v2929 = vadd.f32 %v2673, %v1905
    %v2930 = vadd.f32 %v2674, %v1906
    %v2931 = vadd.f32 %v2675, %v1907
    %v2932 = vadd.f32 %v2676, %v1908
    %v2933 = vadd.f32 %v2677, %v1909
    %v2934 = vadd.f32 %v2678, %v1910
    %v2935 = vadd.f32 %v2679, %v1911
    %v2936 = vadd.f32 %v2680, %v1912
    %v2937 = vadd.f32 %v2681, %v1913
    %v2938 = vadd.f32 %v2682, %v1914
    %v2939 = vadd.f32 %v2683, %v1915
    %v2940 = vadd.f32 %v2684, %v1916
    %v2941 = vadd.f32 %v2685, %v1917
    %v2942 = vadd.f32 %v2686, %v1918
    %v2943 = vadd.f32 %v2687, %v1919
    %v2944 = vadd.f32 %v2688, %v1920
    %v2945 = vadd.f32 %v2689, %v1921
    %v2946 = vadd.f32 %v2690, %v1922
    %v2947 = vadd.f32 %v2691, %v1923
    %v2948 = vadd.f32 %v2692, %v1924
    %v2949 = vadd.f32 %v2693, %v1925
    %v2950 = vadd.f32 %v2694, %v1926
    %v2951 = vadd.f32 %v2695, %v1927
    %v2952 = vadd.f32 %v2696, %v1928
    %v2953 = vadd.f32 %v2697, %v1929
    %v2954 = vadd.f32 %v2698, %v1930
    %v2955 = vadd.f32 %v2699, %v1931
    %v2956 = vadd.f32 %v2700, %v1932
    %v2957 = vadd.f32 %v2701, %v1933
    %v2958 = vadd.f32 %v2702, %v1934
    %v2959 = vadd.f32 %v2703, %v1935
    %v2960 = vadd.f32 %v2704, %v1936
    %v2961 = vadd.f32 %v2705, %v1937
    %v2962 = vadd.f32 %v2706, %v1938
    %v2963 = vadd.f32 %v2707, %v1939
    %v2964 = vadd.f32 %v2708, %v1940
    %v2965 = vadd.f32 %v2709, %v1941
    %v2966 = vadd.f32 %v2710, %v1942
    %v2967 = vadd.f32 %v2711, %v1943
    %v2968 = vadd.f32 %v2712, %v1944
    %v2969 = vadd.f32 %v2713, %v1945
    %v2970 = vadd.f32 %v2714, %v1946
    %v2971 = vadd.f32 %v2715, %v1947
    %v2972 = vadd.f32 %v2716, %v1948
    %v2973 = vadd.f32 %v2717, %v1949
    %v2974 = vadd.f32 %v2718, %v1950
    %v2975 = vadd.f32 %v2719, %v1951
    %v2976 = vadd.f32 %v2720, %v1952
    %v2977 = vadd.f32 %v2721, %v1953
    %v2978 = vadd.f32 %v2722, %v1954
    %v2979 = vadd.f32 %v2723, %v1955
    %v2980 = vadd.f32 %v2724, %v1956
    %v2981 = vadd.f32 %v2725, %v1957
    %v2982 = vadd.f32 %v2726, %v1958
    %v2983 = vadd.f32 %v2727, %v1959
    %v2984 = vadd.f32 %v2728, %v1960
    %v2985 = vadd.f32 %v2729, %v1961
    %v2986 = vadd.f32 %v2730, %v1962
    %v2987 = vadd.f32 %v2731, %v1963
    %v2988 = vadd.f32 %v2732, %v1964
    %v2989 = vadd.f32 %v2733, %v1965
    %v2990 = vadd.f32 %v2734, %v1966
    %v2991 = vadd.f32 %v2735, %v1967
    %v2992 = vadd.f32 %v2736, %v1968
    %v2993 = vadd.f32 %v2737, %v1969
    %v2994 = vadd.f32 %v2738, %v1970
    %v2995 = vadd.f32 %v2739, %v1971
    %v2996 = vadd.f32 %v2740, %v1972
    %v2997 = vadd.f32 %v2741, %v1973
    %v2998 = vadd.f32 %v2742, %v1974
    %v2999 = vadd.f32 %v2743, %v1975
    %v3000 = vadd.f32 %v2744, %v1976
    %v3001 = vadd.f32 %v2745, %v1977
    %v3002 = vadd.f32 %v2746, %v1978
    %v3003 = vadd.f32 %v2747, %v1979
    %v3004 = vadd.f32 %v2748, %v1980
    %v3005 = vadd.f32 %v2749, %v1981
    %v3006 = vadd.f32 %v2750, %v1982
    %v3007 = vadd.f32 %v2751, %v1983
    %v3008 = vadd.f32 %v2752, %v1984
    %v3009 = vadd.f32 %v2753, %v1985
    %v3010 = vadd.f32 %v2754, %v1986
    %v3011 = vadd.f32 %v2755, %v1987
    %v3012 = vadd.f32 %v2756, %v1988
    %v3013 = vadd.f32 %v2757, %v1989
    %v3014 = vadd.f32 %v2758, %v1990
    %v3015 = vadd.f32 %v2759, %v1991
    %v3016 = vadd.f32 %v2760, %v1992
    %v3017 = vadd.f32 %v2761, %v1993
    %v3018 = vadd.f32 %v2762, %v1994
    %v3019 = vadd.f32 %v2763, %v1995
    %v3020 = vadd.f32 %v2764, %v1996
    %v3021 = vadd.f32 %v2765, %v1997
    %v3022 = vadd.f32 %v2766, %v1998
    %v3023 = vadd.f32 %v2767, %v1999
    %v3024 = vadd.f32 %v2768, %v2000
    %v3025 = vadd.f32 %v2769, %v2001
    %v3026 = vadd.f32 %v2770, %v2002
    %v3027 = vadd.f32 %v2771, %v2003
    %v3028 = vadd.f32 %v2772, %v2004
    %v3029 = vadd.f32 %v2773, %v2005
    %v3030 = vadd.f32 %v2774, %v2006
    %v3031 = vadd.f32 %v2775, %v2007
    %v3032 = vadd.f32 %v2776, %v2008
    %v3033 = vadd.f32 %v2777, %v2009
    %v3034 = vadd.f32 %v2778, %v2010
    %v3035 = vadd.f32 %v2779, %v2011
    %v3036 = vadd.f32 %v2780, %v2012
    %v3037 = vadd.f32 %v2781, %v2013
    %v3038 = vadd.f32 %v2782, %v2014
    %v3039 = vadd.f32 %v2783, %v2015
    %v3040 = vadd.f32 %v2784, %v2016
    %v3041 = vadd.f32 %v2785, %v2017
    %v3042 = vadd.f32 %v2786, %v2018
    %v3043 = vadd.f32 %v2787, %v2019
    %v3044 = vadd.f32 %v2788, %v2020
    %v3045 = vadd.f32 %v2789, %v2021
    %v3046 = vadd.f32 %v2790, %v2022
    %v3047 = vadd.f32 %v2791, %v2023
    %v3048 = vadd.f32 %v2792, %v2024
    %v3049 = vadd.f32 %v2793, %v2025
    %v3050 = vadd.f32 %v2794, %v2026
    %v3051 = vadd.f32 %v2795, %v2027
    %v3052 = vadd.f32 %v2796, %v2028
    %v3053 = vadd.f32 %v2797, %v2029
    %v3054 = vadd.f32 %v2798, %v2030
    %v3055 = vadd.f32 %v2799, %v2031
    %v3056 = vadd.f32 %v2800, %v2032
    %v3057 = vadd.f32 %v2801, %v2033
    %v3058 = vadd.f32 %v2802, %v2034
    %v3059 = vadd.f32 %v2803, %v2035
    %v3060 = vadd.f32 %v2804, %v2036
    %v3061 = vadd.f32 %v2805, %v2037
    %v3062 = vadd.f32 %v2806, %v2038
    %v3063 = vadd.f32 %v2807, %v2039
    %v3064 = vadd.f32 %v2808, %v2040
    %v3065 = vadd.f32 %v2809, %v2041
    %v3066 = vadd.f32 %v2810, %v2042
    %v3067 = vadd.f32 %v2811, %v2043
    %v3068 = vadd.f32 %v2812, %v2044
    %v3069 = vadd.f32 %v2813, %v2045
    %v3070 = vadd.f32 %v2814, %v2046
    %v3071 = vadd.f32 %v2815, %v2047
    %v3072 = vadd.f32 %v2816, %v2048
    %v3073 = vadd.f32 %v2817, %v2049
    %v3074 = vadd.f32 %v2818, %v2050
    %v3075 = vadd.f32 %v2819, %v2051
    %v3076 = vadd.f32 %v2820, %v2052
    %v3077 = vadd.f32 %v2821, %v2053
    %v3078 = vadd.f32 %v2822, %v2054
    %v3079 = vadd.f32 %v2823, %v2055
    %v3080 = vadd.f32 %v2824, %v2056
    %v3081 = vadd.f32 %v2825, %v2057
    %v3082 = vadd.f32 %v2826, %v2058
    %v3083 = vadd.f32 %v2827, %v2059
    %v3084 = vadd.f32 %v2828, %v2060
    %v3085 = vadd.f32 %v2829, %v2061
    %v3086 = vadd.f32 %v2830, %v2062
    %v3087 = vadd.f32 %v2831, %v2063
    %v3088 = vadd.f32 %v2832, %v2064
    %v3089 = vadd.f32 %v2833, %v2065
    %v3090 = vadd.f32 %v2834, %v2066
    %v3091 = vadd.f32 %v2835, %v2067
    %v3092 = vadd.f32 %v2836, %v2068
    %v3093 = vadd.f32 %v2837, %v2069
    %v3094 = vadd.f32 %v2838, %v2070
    %v3095 = vadd.f32 %v2839, %v2071
    %v3096 = vadd.f32 %v2840, %v2072
    %v3097 = vadd.f32 %v2841, %v2073
    %v3098 = vadd.f32 %v2842, %v2074
    %v3099 = vadd.f32 %v2843, %v2075
    %v3100 = vadd.f32 %v2844, %v2076
    %v3101 = vadd.f32 %v2845, %v2077
    %v3102 = vadd.f32 %v2846, %v2078
    %v3103 = vadd.f32 %v2847, %v2079
    %v3104 = vadd.f32 %v2848, %v2080
    %v3105 = vadd.f32 %v2849, %v2081
    %v3106 = vadd.f32 %v2850, %v2082
    %v3107 = vadd.f32 %v2851, %v2083
    %v3108 = vadd.f32 %v2852, %v2084
    %v3109 = vadd.f32 %v2853, %v2085
    %v3110 = vadd.f32 %v2854, %v2086
    %v3111 = vadd.f32 %v2855, %v2087
    %v3112 = vadd.f32 %v2856, %v2088
    %v3113 = vadd.f32 %v2857, %v2089
    %v3114 = vadd.f32 %v2858, %v2090
    %v3115 = vadd.f32 %v2859, %v2091
    %v3116 = vadd.f32 %v2860, %v2092
    %v3117 = vadd.f32 %v2861, %v2093
    %v3118 = vadd.f32 %v2862, %v2094
    %v3119 = vadd.f32 %v2863, %v2095
    %v3120 = vadd.f32 %v2864, %v2096
    %v3121 = vadd.f32 %v2865, %v2097
    %v3122 = vadd.f32 %v2866, %v2098
    %v3123 = vadd.f32 %v2867, %v2099
    %v3124 = vadd.f32 %v2868, %v2100
    %v3125 = vadd.f32 %v2869, %v2101
    %v3126 = vadd.f32 %v2870, %v2102
    %v3127 = vmul.f32 %v2103, 2.0
    %v3128 = vmul.f32 %v2104, 2.0
    %v3129 = vmul.f32 %v2105, 2.0
    %v3130 = vmul.f32 %v2106, 2.0
    %v3131 = vmul.f32 %v2107, 2.0
    %v3132 = vmul.f32 %v2108, 2.0
    %v3133 = vmul.f32 %v2109, 2.0
    %v3134 = vmul.f32 %v2110, 2.0
    %v3135 = vmul.f32 %v2111, 2.0
    %v3136 = vmul.f32 %v2112, 2.0
    %v3137 = vmul.f32 %v2113, 2.0
    %v3138 = vmul.f32 %v2114, 2.0
    %v3139 = vmul.f32 %v2115, 2.0
    %v3140 = vmul.f32 %v2116, 2.0
    %v3141 = vmul.f32 %v2117, 2.0
    %v3142 = vmul.f32 %v2118, 2.0
    %v3143 = vmul.f32 %v2119, 2.0
    %v3144 = vmul.f32 %v2120, 2.0
    %v3145 = vmul.f32 %v2121, 2.0
    %v3146 = vmul.f32 %v2122, 2.0
    %v3147 = vmul.f32 %v2123, 2.0
    %v3148 = vmul.f32 %v2124, 2.0
    %v3149 = vmul.f32 %v2125, 2.0
    %v3150 = vmul.f32 %v2126, 2.0
    %v3151 = vmul.f32 %v2127, 2.0
    %v3152 = vmul.f32 %v2128, 2.0
    %v3153 = vmul.f32 %v2129, 2.0
    %v3154 = vmul.f32 %v2130, 2.0
    %v3155 = vmul.f32 %v2131, 2.0
    %v3156 = vmul.f32 %v2132, 2.0
    %v3157 = vmul.f32 %v2133, 2.0
    %v3158 = vmul.f32 %v2134, 2.0
    %v3159 = vmul.f32 %v2135, 2.0
    %v3160 = vmul.f32 %v2136, 2.0
    %v3161 = vmul.f32 %v2137, 2.0
    %v3162 = vmul.f32 %v2138, 2.0
    %v3163 = vmul.f32 %v2139, 2.0
    %v3164 = vmul.f32 %v2140, 2.0
    %v3165 = vmul.f32 %v2141, 2.0
    %v3166 = vmul.f32 %v2142, 2.0
    %v3167 = vmul.f32 %v2143, 2.0
    %v3168 = vmul.f32 %v2144, 2.0
    %v3169 = vmul.f32 %v2145, 2.0
    %v3170 = vmul.f32 %v2146, 2.0
    %v3171 = vmul.f32 %v2147, 2.0
    %v3172 = vmul.f32 %v2148, 2.0
    %v3173 = vmul.f32 %v2149, 2.0
    %v3174 = vmul.f32 %v2150, 2.0
    %v3175 = vmul.f32 %v2151, 2.0
    %v3176 = vmul.f32 %v2152, 2.0
    %v3177 = vmul.f32 %v2153, 2.0
    %v3178 = vmul.f32 %v2154, 2.0
    %v3179 = vmul.f32 %v2155, 2.0
    %v3180 = vmul.f32 %v2156, 2.0
    %v3181 = vmul.f32 %v2157, 2.0
    %v3182 = vmul.f32 %v2158, 2.0
    %v3183 = vmul.f32 %v2159, 2.0
    %v3184 = vmul.f32 %v2160, 2.0
    %v3185 = vmul.f32 %v2161, 2.0
    %v3186 = vmul.f32 %v2162, 2.0
    %v3187 = vmul.f32 %v2163, 2.0
    %v3188 = vmul.f32 %v2164, 2.0
    %v3189 = vmul.f32 %v2165, 2.0
    %v3190 = vmul.f32 %v2166, 2.0
    %v3191 = vmul.f32 %v2167, 2.0
    %v3192 = vmul.f32 %v2168, 2.0
    %v3193 = vmul.f32 %v2169, 2.0
    %v3194 = vmul.f32 %v2170, 2.0
    %v3195 = vmul.f32 %v2171, 2.0
    %v3196 = vmul.f32 %v2172, 2.0
    %v3197 = vmul.f32 %v2173, 2.0
    %v3198 = vmul.f32 %v2174, 2.0
    %v3199 = vmul.f32 %v2175, 2.0
    %v3200 = vmul.f32 %v2176, 2.0
    %v3201 = vmul.f32 %v2177, 2.0
    %v3202 = vmul.f32 %v2178, 2.0
    %v3203 = vmul.f32 %v2179, 2.0
    %v3204 = vmul.f32 %v2180, 2.0
    %v3205 = vmul.f32 %v2181, 2.0
    %v3206 = vmul.f32 %v2182, 2.0
    %v3207 = vmul.f32 %v2183, 2.0
    %v3208 = vmul.f32 %v2184, 2.0
    %v3209 = vmul.f32 %v2185, 2.0
    %v3210 = vmul.f32 %v2186, 2.0
    %v3211 = vmul.f32 %v2187, 2.0
    %v3212 = vmul.f32 %v2188, 2.0
    %v3213 = vmul.f32 %v2189, 2.0
    %v3214 = vmul.f32 %v2190, 2.0
    %v3215 = vmul.f32 %v2191, 2.0
    %v3216 = vmul.f32 %v2192, 2.0
    %v3217 = vmul.f32 %v2193, 2.0
    %v3218 = vmul.f32 %v2194, 2.0
    %v3219 = vmul.f32 %v2195, 2.0
    %v3220 = vmul.f32 %v2196, 2.0
    %v3221 = vmul.f32 %v2197, 2.0
    %v3222 = vmul.f32 %v2198, 2.0
    %v3223 = vmul.f32 %v2199, 2.0
    %v3224 = vmul.f32 %v2200, 2.0
    %v3225 = vmul.f32 %v2201, 2.0
    %v3226 = vmul.f32 %v2202, 2.0
    %v3227 = vmul.f32 %v2203, 2.0
    %v3228 = vmul.f32 %v2204, 2.0
    %v3229 = vmul.f32 %v2205, 2.0
    %v3230 = vmul.f32 %v2206, 2.0
    %v3231 = vmul.f32 %v2207, 2.0
    %v3232 = vmul.f32 %v2208, 2.0
    %v3233 = vmul.f32 %v2209, 2.0
    %v3234 = vmul.f32 %v2210, 2.0
    %v3235 = vmul.f32 %v2211, 2.0
    %v3236 = vmul.f32 %v2212, 2.0
    %v3237 = vmul.f32 %v2213, 2.0
    %v3238 = vmul.f32 %v2214, 2.0
    %v3239 = vmul.f32 %v2215, 2.0
    %v3240 = vmul.f32 %v2216, 2.0
    %v3241 = vmul.f32 %v2217, 2.0
    %v3242 = vmul.f32 %v2218, 2.0
    %v3243 = vmul.f32 %v2219, 2.0
    %v3244 = vmul.f32 %v2220, 2.0
    %v3245 = vmul.f32 %v2221, 2.0
    %v3246 = vmul.f32 %v2222, 2.0
    %v3247 = vmul.f32 %v2223, 2.0
    %v3248 = vmul.f32 %v2224, 2.0
    %v3249 = vmul.f32 %v2225, 2.0
    %v3250 = vmul.f32 %v2226, 2.0
    %v3251 = vmul.f32 %v2227, 2.0
    %v3252 = vmul.f32 %v2228, 2.0
    %v3253 = vmul.f32 %v2229, 2.0
    %v3254 = vmul.f32 %v2230, 2.0
    %v3255 = vmul.f32 %v2231, 2.0
    %v3256 = vmul.f32 %v2232, 2.0
    %v3257 = vmul.f32 %v2233, 2.0
    %v3258 = vmul.f32 %v2234, 2.0
    %v3259 = vmul.f32 %v2235, 2.0
    %v3260 = vmul.f32 %v2236, 2.0
    %v3261 = vmul.f32 %v2237, 2.0
    %v3262 = vmul.f32 %v2238, 2.0
    %v3263 = vmul.f32 %v2239, 2.0
    %v3264 = vmul.f32 %v2240, 2.0
    %v3265 = vmul.f32 %v2241, 2.0
    %v3266 = vmul.f32 %v2242, 2.0
    %v3267 = vmul.f32 %v2243, 2.0
    %v3268 = vmul.f32 %v2244, 2.0
    %v3269 = vmul.f32 %v2245, 2.0
    %v3270 = vmul.f32 %v2246, 2.0
    %v3271 = vmul.f32 %v2247, 2.0
    %v3272 = vmul.f32 %v2248, 2.0
    %v3273 = vmul.f32 %v2249, 2.0
    %v3274 = vmul.f32 %v2250, 2.0
    %v3275 = vmul.f32 %v2251, 2.0
    %v3276 = vmul.f32 %v2252, 2.0
    %v3277 = vmul.f32 %v2253, 2.0
    %v3278 = vmul.f32 %v2254, 2.0
    %v3279 = vmul.f32 %v2255, 2.0
    %v3280 = vmul.f32 %v2256, 2.0
    %v3281 = vmul.f32 %v2257, 2.0
    %v3282 = vmul.f32 %v2258, 2.0
    %v3283 = vmul.f32 %v2259, 2.0
    %v3284 = vmul.f32 %v2260, 2.0
    %v3285 = vmul.f32 %v2261, 2.0
    %v3286 = vmul.f32 %v2262, 2.0
    %v3287 = vmul.f32 %v2263, 2.0
    %v3288 = vmul.f32 %v2264, 2.0
    %v3289 = vmul.f32 %v2265, 2.0
    %v3290 = vmul.f32 %v2266, 2.0
    %v3291 = vmul.f32 %v2267, 2.0
    %v3292 = vmul.f32 %v2268, 2.0
    %v3293 = vmul.f32 %v2269, 2.0
    %v3294 = vmul.f32 %v2270, 2.0
    %v3295 = vmul.f32 %v2271, 2.0
    %v3296 = vmul.f32 %v2272, 2.0
    %v3297 = vmul.f32 %v2273, 2.0
    %v3298 = vmul.f32 %v2274, 2.0
    %v3299 = vmul.f32 %v2275, 2.0
    %v3300 = vmul.f32 %v2276, 2.0
    %v3301 = vmul.f32 %v2277, 2.0
    %v3302 = vmul.f32 %v2278, 2.0
    %v3303 = vmul.f32 %v2279, 2.0
    %v3304 = vmul.f32 %v2280, 2.0
    %v3305 = vmul.f32 %v2281, 2.0
    %v3306 = vmul.f32 %v2282, 2.0
    %v3307 = vmul.f32 %v2283, 2.0
    %v3308 = vmul.f32 %v2284, 2.0
    %v3309 = vmul.f32 %v2285, 2.0
    %v3310 = vmul.f32 %v2286, 2.0
    %v3311 = vmul.f32 %v2287, 2.0
    %v3312 = vmul.f32 %v2288, 2.0
    %v3313 = vmul.f32 %v2289, 2.0
    %v3314 = vmul.f32 %v2290, 2.0
    %v3315 = vmul.f32 %v2291, 2.0
    %v3316 = vmul.f32 %v2292, 2.0
    %v3317 = vmul.f32 %v2293, 2.0
    %v3318 = vmul.f32 %v2294, 2.0
    %v3319 = vmul.f32 %v2295, 2.0
    %v3320 = vmul.f32 %v2296, 2.0
    %v3321 = vmul.f32 %v2297, 2.0
    %v3322 = vmul.f32 %v2298, 2.0
    %v3323 = vmul.f32 %v2299, 2.0
    %v3324 = vmul.f32 %v2300, 2.0
    %v3325 = vmul.f32 %v2301, 2.0
    %v3326 = vmul.f32 %v2302, 2.0
    %v3327 = vmul.f32 %v2303, 2.0
    %v3328 = vmul.f32 %v2304, 2.0
    %v3329 = vmul.f32 %v2305, 2.0
    %v3330 = vmul.f32 %v2306, 2.0
    %v3331 = vmul.f32 %v2307, 2.0
    %v3332 = vmul.f32 %v2308, 2.0
    %v3333 = vmul.f32 %v2309, 2.0
    %v3334 = vmul.f32 %v2310, 2.0
    %v3335 = vmul.f32 %v2311, 2.0
    %v3336 = vmul.f32 %v2312, 2.0
    %v3337 = vmul.f32 %v2313, 2.0
    %v3338 = vmul.f32 %v2314, 2.0
    %v3339 = vmul.f32 %v2315, 2.0
    %v3340 = vmul.f32 %v2316, 2.0
    %v3341 = vmul.f32 %v2317, 2.0
    %v3342 = vmul.f32 %v2318, 2.0
    %v3343 = vmul.f32 %v2319, 2.0
    %v3344 = vmul.f32 %v2320, 2.0
    %v3345 = vmul.f32 %v2321, 2.0
    %v3346 = vmul.f32 %v2322, 2.0
    %v3347 = vmul.f32 %v2323, 2.0
    %v3348 = vmul.f32 %v2324, 2.0
    %v3349 = vmul.f32 %v2325, 2.0
    %v3350 = vmul.f32 %v2326, 2.0
    %v3351 = vmul.f32 %v2327, 2.0
    %v3352 = vmul.f32 %v2328, 2.0
    %v3353 = vmul.f32 %v2329, 2.0
    %v3354 = vmul.f32 %v2330, 2.0
    %v3355 = vmul.f32 %v2331, 2.0
    %v3356 = vmul.f32 %v2332, 2.0
    %v3357 = vmul.f32 %v2333, 2.0
    %v3358 = vmul.f32 %v2334, 2.0
    %v3359 = vmul.f32 %v2335, 2.0
    %v3360 = vmul.f32 %v2336, 2.0
    %v3361 = vmul.f32 %v2337, 2.0
    %v3362 = vmul.f32 %v2338, 2.0
    %v3363 = vmul.f32 %v2339, 2.0
    %v3364 = vmul.f32 %v2340, 2.0
    %v3365 = vmul.f32 %v2341, 2.0
    %v3366 = vmul.f32 %v2342, 2.0
    %v3367 = vmul.f32 %v2343, 2.0
    %v3368 = vmul.f32 %v2344, 2.0
    %v3369 = vmul.f32 %v2345, 2.0
    %v3370 = vmul.f32 %v2346, 2.0
    %v3371 = vmul.f32 %v2347, 2.0
    %v3372 = vmul.f32 %v2348, 2.0
    %v3373 = vmul.f32 %v2349, 2.0
    %v3374 = vmul.f32 %v2350, 2.0
    %v3375 = vmul.f32 %v2351, 2.0
    %v3376 = vmul.f32 %v2352, 2.0
    %v3377 = vmul.f32 %v2353, 2.0
    %v3378 = vmul.f32 %v2354, 2.0
    %v3379 = vmul.f32 %v2355, 2.0
    %v3380 = vmul.f32 %v2356, 2.0
    %v3381 = vmul.f32 %v2357, 2.0
    %v3382 = vmul.f32 %v2358, 2.0
    %v3383 = vadd.f32 %v2103, %v3127
    %v3384 = vadd.f32 %v2104, %v3128
    %v3385 = vadd.f32 %v2105, %v3129
    %v3386 = vadd.f32 %v2106, %v3130
    %v3387 = vadd.f32 %v2107, %v3131
    %v3388 = vadd.f32 %v2108, %v3132
    %v3389 = vadd.f32 %v2109, %v3133
    %v3390 = vadd.f32 %v2110, %v3134
    %v3391 = vadd.f32 %v2103, %v3135
    %v3392 = vadd.f32 %v2104, %v3136
    %v3393 = vadd.f32 %v2105, %v3137
    %v3394 = vadd.f32 %v2106, %v3138
    %v3395 = vadd.f32 %v2107, %v3139
    %v3396 = vadd.f32 %v2108, %v3140
    %v3397 = vadd.f32 %v2109, %v3141
    %v3398 = vadd.f32 %v2110, %v3142
    %v3399 = vadd.f32 %v2111, %v3143
    %v3400 = vadd.f32 %v2112, %v3144
    %v3401 = vadd.f32 %v2113, %v3145
    %v3402 = vadd.f32 %v2114, %v3146
    %v3403 = vadd.f32 %v2115, %v3147
    %v3404 = vadd.f32 %v2116, %v3148
    %v3405 = vadd.f32 %v2117, %v3149
    %v3406 = vadd.f32 %v2118, %v3150
    %v3407 = vadd.f32 %v2119, %v3151
    %v3408 = vadd.f32 %v2120, %v3152
    %v3409 = vadd.f32 %v2121, %v3153
    %v3410 = vadd.f32 %v2122, %v3154
    %v3411 = vadd.f32 %v2123, %v3155
    %v3412 = vadd.f32 %v2124, %v3156
    %v3413 = vadd.f32 %v2125, %v3157
    %v3414 = vadd.f32 %v2126, %v3158
    %v3415 = vadd.f32 %v2127, %v3159
    %v3416 = vadd.f32 %v2128, %v3160
    %v3417 = vadd.f32 %v2129, %v3161
    %v3418 = vadd.f32 %v2130, %v3162
    %v3419 = vadd.f32 %v2131, %v3163
    %v3420 = vadd.f32 %v2132, %v3164
    %v3421 = vadd.f32 %v2133, %v3165
    %v3422 = vadd.f32 %v2134, %v3166
    %v3423 = vadd.f32 %v2135, %v3167
    %v3424 = vadd.f32 %v2136, %v3168
    %v3425 = vadd.f32 %v2137, %v3169
    %v3426 = vadd.f32 %v2138, %v3170
    %v3427 = vadd.f32 %v2139, %v3171
    %v3428 = vadd.f32 %v2140, %v3172
    %v3429 = vadd.f32 %v2141, %v3173
    %v3430 = vadd.f32 %v2142, %v3174
    %v3431 = vadd.f32 %v2143, %v3175
    %v3432 = vadd.f32 %v2144, %v3176
    %v3433 = vadd.f32 %v2145, %v3177
    %v3434 = vadd.f32 %v2146, %v3178
    %v3435 = vadd.f32 %v2147, %v3179
    %v3436 = vadd.f32 %v2148, %v3180
    %v3437 = vadd.f32 %v2149, %v3181
    %v3438 = vadd.f32 %v2150, %v3182
    %v3439 = vadd.f32 %v2151, %v3183
    %v3440 = vadd.f32 %v2152, %v3184
    %v3441 = vadd.f32 %v2153, %v3185
    %v3442 = vadd.f32 %v2154, %v3186
    %v3443 = vadd.f32 %v2155, %v3187
    %v3444 = vadd.f32 %v2156, %v3188
    %v3445 = vadd.f32 %v2157, %v3189
    %v3446 = vadd.f32 %v2158, %v3190
    %v3447 = vadd.f32 %v2159, %v3191
    %v3448 = vadd.f32 %v2160, %v3192
    %v3449 = vadd.f32 %v2161, %v3193
    %v3450 = vadd.f32 %v2162, %v3194
    %v3451 = vadd.f32 %v2163, %v3195
    %v3452 = vadd.f32 %v2164, %v3196
    %v3453 = vadd.f32 %v2165, %v3197
    %v3454 = vadd.f32 %v2166, %v3198
    %v3455 = vadd.f32 %v2167, %v3199
    %v3456 = vadd.f32 %v2168, %v3200
    %v3457 = vadd.f32 %v2169, %v3201
    %v3458 = vadd.f32 %v2170, %v3202
    %v3459 = vadd.f32 %v2171, %v3203
    %v3460 = vadd.f32 %v2172, %v3204
    %v3461 = vadd.f32 %v2173, %v3205
    %v3462 = vadd.f32 %v2174, %v3206
    %v3463 = vadd.f32 %v2175, %v3207
    %v3464 = vadd.f32 %v2176, %v3208
    %v3465 = vadd.f32 %v2177, %v3209
    %v3466 = vadd.f32 %v2178, %v3210
    %v3467 = vadd.f32 %v2179, %v3211
    %v3468 = vadd.f32 %v2180, %v3212
    %v3469 = vadd.f32 %v2181, %v3213
    %v3470 = vadd.f32 %v2182, %v3214
    %v3471 = vadd.f32 %v2183, %v3215
    %v3472 = vadd.f32 %v2184, %v3216
    %v3473 = vadd.f32 %v2185, %v3217
    %v3474 = vadd.f32 %v2186, %v3218
    %v3475 = vadd.f32 %v2187, %v3219
    %v3476 = vadd.f32 %v2188, %v3220
    %v3477 = vadd.f32 %v2189, %v3221
    %v3478 = vadd.f32 %v2190, %v3222
    %v3479 = vadd.f32 %v2191, %v3223
    %v3480 = vadd.f32 %v2192, %v3224
    %v3481 = vadd.f32 %v2193, %v3225
    %v3482 = vadd.f32 %v2194, %v3226
    %v3483 = vadd.f32 %v2195, %v3227
    %v3484 = vadd.f32 %v2196, %v3228
    %v3485 = vadd.f32 %v2197, %v3229
    %v3486 = vadd.f32 %v2198, %v3230
    %v3487 = vadd.f32 %v2199, %v3231
    %v3488 = vadd.f32 %v2200, %v3232
    %v3489 = vadd.f32 %v2201, %v3233
    %v3490 = vadd.f32 %v2202, %v3234
    %v3491 = vadd.f32 %v2203, %v3235
    %v3492 = vadd.f32 %v2204, %v3236
    %v3493 = vadd.f32 %v2205, %v3237
    %v3494 = vadd.f32 %v2206, %v3238
    %v3495 = vadd.f32 %v2207, %v3239
    %v3496 = vadd.f32 %v2208, %v3240
    %v3497 = vadd.f32 %v2209, %v3241
    %v3498 = vadd.f32 %v2210, %v3242
    %v3499 = vadd.f32 %v2211, %v3243
    %v3500 = vadd.f32 %v2212, %v3244
    %v3501 = vadd.f32 %v2213, %v3245
    %v3502 = vadd.f32 %v2214, %v3246
    %v3503 = vadd.f32 %v2215, %v3247
    %v3504 = vadd.f32 %v2216, %v3248
    %v3505 = vadd.f32 %v2217, %v3249
    %v3506 = vadd.f32 %v2218, %v3250
    %v3507 = vadd.f32 %v2219, %v3251
    %v3508 = vadd.f32 %v2220, %v3252
    %v3509 = vadd.f32 %v2221, %v3253
    %v3510 = vadd.f32 %v2222, %v3254
    %v3511 = vadd.f32 %v2223, %v3255
    %v3512 = vadd.f32 %v2224, %v3256
    %v3513 = vadd.f32 %v2225, %v3257
    %v3514 = vadd.f32 %v2226, %v3258
    %v3515 = vadd.f32 %v2227, %v3259
    %v3516 = vadd.f32 %v2228, %v3260
    %v3517 = vadd.f32 %v2229, %v3261
    %v3518 = vadd.f32 %v2230, %v3262
    %v3519 = vadd.f32 %v2231, %v3263
    %v3520 = vadd.f32 %v2232, %v3264
    %v3521 = vadd.f32 %v2233, %v3265
    %v3522 = vadd.f32 %v2234, %v3266
    %v3523 = vadd.f32 %v2235, %v3267
    %v3524 = vadd.f32 %v2236, %v3268
    %v3525 = vadd.f32 %v2237, %v3269
    %v3526 = vadd.f32 %v2238, %v3270
    %v3527 = vadd.f32 %v2239, %v3271
    %v3528 = vadd.f32 %v2240, %v3272
    %v3529 = vadd.f32 %v2241, %v3273
    %v3530 = vadd.f32 %v2242, %v3274
    %v3531 = vadd.f32 %v2243, %v3275
    %v3532 = vadd.f32 %v2244, %v3276
    %v3533 = vadd.f32 %v2245, %v3277
    %v3534 = vadd.f32 %v2246, %v3278
    %v3535 = vadd.f32 %v2247, %v3279
    %v3536 = vadd.f32 %v2248, %v3280
    %v3537 = vadd.f32 %v2249, %v3281
    %v3538 = vadd.f32 %v2250, %v3282
    %v3539 = vadd.f32 %v2251, %v3283
    %v3540 = vadd.f32 %v2252, %v3284
    %v3541 = vadd.f32 %v2253, %v3285
    %v3542 = vadd.f32 %v2254, %v3286
    %v3543 = vadd.f32 %v2255, %v3287
    %v3544 = vadd.f32 %v2256, %v3288
    %v3545 = vadd.f32 %v2257, %v3289
    %v3546 = vadd.f32 %v2258, %v3290
    %v3547 = vadd.f32 %v2259, %v3291
    %v3548 = vadd.f32 %v2260, %v3292
    %v3549 = vadd.f32 %v2261, %v3293
    %v3550 = vadd.f32 %v2262, %v3294
    %v3551 = vadd.f32 %v2263, %v3295
    %v3552 = vadd.f32 %v2264, %v3296
    %v3553 = vadd.f32 %v2265, %v3297
    %v3554 = vadd.f32 %v2266, %v3298
    %v3555 = vadd.f32 %v2267, %v3299
    %v3556 = vadd.f32 %v2268, %v3300
    %v3557 = vadd.f32 %v2269, %v3301
    %v3558 = vadd.f32 %v2270, %v3302
    %v3559 = vadd.f32 %v2271, %v3303
    %v3560 = vadd.f32 %v2272, %v3304
    %v3561 = vadd.f32 %v2273, %v3305
    %v3562 = vadd.f32 %v2274, %v3306
    %v3563 = vadd.f32 %v2275, %v3307
    %v3564 = vadd.f32 %v2276, %v3308
    %v3565 = vadd.f32 %v2277, %v3309
    %v3566 = vadd.f32 %v2278, %v3310
    %v3567 = vadd.f32 %v2279, %v3311
    %v3568 = vadd.f32 %v2280, %v3312
    %v3569 = vadd.f32 %v2281, %v3313
    %v3570 = vadd.f32 %v2282, %v3314
    %v3571 = vadd.f32 %v2283, %v3315
    %v3572 = vadd.f32 %v2284, %v3316
    %v3573 = vadd.f32 %v2285, %v3317
    %v3574 = vadd.f32 %v2286, %v3318
    %v3575 = vadd.f32 %v2287, %v3319
    %v3576 = vadd.f32 %v2288, %v3320
    %v3577 = vadd.f32 %v2289, %v3321
    %v3578 = vadd.f32 %v2290, %v3322
    %v3579 = vadd.f32 %v2291, %v3323
    %v3580 = vadd.f32 %v2292, %v3324
    %v3581 = vadd.f32 %v2293, %v3325
    %v3582 = vadd.f32 %v2294, %v3326
    %v3583 = vadd.f32 %v2295, %v3327
    %v3584 = vadd.f32 %v2296, %v3328
    %v3585 = vadd.f32 %v2297, %v3329
    %v3586 = vadd.f32 %v2298, %v3330
    %v3587 = vadd.f32 %v2299, %v3331
    %v3588 = vadd.f32 %v2300, %v3332
    %v3589 = vadd.f32 %v2301, %v3333
    %v3590 = vadd.f32 %v2302, %v3334
    %v3591 = vadd.f32 %v2303, %v3335
    %v3592 = vadd.f32 %v2304, %v3336
    %v3593 = vadd.f32 %v2305, %v3337
    %v3594 = vadd.f32 %v2306, %v3338
    %v3595 = vadd.f32 %v2307, %v3339
    %v3596 = vadd.f32 %v2308, %v3340
    %v3597 = vadd.f32 %v2309, %v3341
    %v3598 = vadd.f32 %v2310, %v3342
    %v3599 = vadd.f32 %v2311, %v3343
    %v3600 = vadd.f32 %v2312, %v3344
    %v3601 = vadd.f32 %v2313, %v3345
    %v3602 = vadd.f32 %v2314, %v3346
    %v3603 = vadd.f32 %v2315, %v3347
    %v3604 = vadd.f32 %v2316, %v3348
    %v3605 = vadd.f32 %v2317, %v3349
    %v3606 = vadd.f32 %v2318, %v3350
    %v3607 = vadd.f32 %v2319, %v3351
    %v3608 = vadd.f32 %v2320, %v3352
    %v3609 = vadd.f32 %v2321, %v3353
    %v3610 = vadd.f32 %v2322, %v3354
    %v3611 = vadd.f32 %v2323, %v3355
    %v3612 = vadd.f32 %v2324, %v3356
    %v3613 = vadd.f32 %v2325, %v3357
    %v3614 = vadd.f32 %v2326, %v3358
    %v3615 = vadd.f32 %v2327, %v3359
    %v3616 = vadd.f32 %v2328, %v3360
    %v3617 = vadd.f32 %v2329, %v3361
    %v3618 = vadd.f32 %v2330, %v3362
    %v3619 = vadd.f32 %v2331, %v3363
    %v3620 = vadd.f32 %v2332, %v3364
    %v3621 = vadd.f32 %v2333, %v3365
    %v3622 = vadd.f32 %v2334, %v3366
    %v3623 = vadd.f32 %v2335, %v3367
    %v3624 = vadd.f32 %v2336, %v3368
    %v3625 = vadd.f32 %v2337, %v3369
    %v3626 = vadd.f32 %v2338, %v3370
    %v3627 = vadd.f32 %v2339, %v3371
    %v3628 = vadd.f32 %v2340, %v3372
    %v3629 = vadd.f32 %v2341, %v3373
    %v3630 = vadd.f32 %v2342, %v3374
    %v3631 = vadd.f32 %v2343, %v3375
    %v3632 = vadd.f32 %v2344, %v3376
    %v3633 = vadd.f32 %v2345, %v3377
    %v3634 = vadd.f32 %v2346, %v3378
    %v3635 = vadd.f32 %v2347, %v3379
    %v3636 = vadd.f32 %v2348, %v3380
    %v3637 = vadd.f32 %v2349, %v3381
    %v3638 = vadd.f32 %v2350, %v3382
    %v3639 = vadd.f32 %v3383, %v2111
    %v3640 = vadd.f32 %v3384, %v2112
    %v3641 = vadd.f32 %v3385, %v2113
    %v3642 = vadd.f32 %v3386, %v2114
    %v3643 = vadd.f32 %v3387, %v2115
    %v3644 = vadd.f32 %v3388, %v2116
    %v3645 = vadd.f32 %v3389, %v2117
    %v3646 = vadd.f32 %v3390, %v2118
    %v3647 = vadd.f32 %v3391, %v2119
    %v3648 = vadd.f32 %v3392, %v2120
    %v3649 = vadd.f32 %v3393, %v2121
    %v3650 = vadd.f32 %v3394, %v2122
    %v3651 = vadd.f32 %v3395, %v2123
    %v3652 = vadd.f32 %v3396, %v2124
    %v3653 = vadd.f32 %v3397, %v2125
    %v3654 = vadd.f32 %v3398, %v2126
    %v3655 = vadd.f32 %v3399, %v2127
    %v3656 = vadd.f32 %v3400, %v2128
    %v3657 = vadd.f32 %v3401, %v2129
    %v3658 = vadd.f32 %v3402, %v2130
    %v3659 = vadd.f32 %v3403, %v2131
    %v3660 = vadd.f32 %v3404, %v2132
    %v3661 = vadd.f32 %v3405, %v2133
    %v3662 = vadd.f32 %v3406, %v2134
    %v3663 = vadd.f32 %v3407, %v2135
    %v3664 = vadd.f32 %v3408, %v2136
    %v3665 = vadd.f32 %v3409, %v2137
    %v3666 = vadd.f32 %v3410, %v2138
    %v3667 = vadd.f32 %v3411, %v2139
    %v3668 = vadd.f32 %v3412, %v2140
    %v3669 = vadd.f32 %v3413, %v2141
    %v3670 = vadd.f32 %v3414, %v2142
    %v3671 = vadd.f32 %v3415, %v2143
    %v3672 = vadd.f32 %v3416, %v2144
    %v3673 = vadd.f32 %v3417, %v2145
    %v3674 = vadd.f32 %v3418, %v2146
    %v3675 = vadd.f32 %v3419, %v2147
    %v3676 = vadd.f32 %v3420, %v2148
    %v3677 = vadd.f32 %v3421, %v2149
    %v3678 = vadd.f32 %v3422, %v2150
    %v3679 = vadd.f32 %v3423, %v2151
    %v3680 = vadd.f32 %v3424, %v2152
    %v3681 = vadd.f32 %v3425, %v2153
    %v3682 = vadd.f32 %v3426, %v2154
    %v3683 = vadd.f32 %v3427, %v2155
    %v3684 = vadd.f32 %v3428, %v2156
    %v3685 = vadd.f32 %v3429, %v2157
    %v3686 = vadd.f32 %v3430, %v2158
    %v3687 = vadd.f32 %v3431, %v2159
    %v3688 = vadd.f32 %v3432, %v2160
    %v3689 = vadd.f32 %v3433, %v2161
    %v3690 = vadd.f32 %v3434, %v2162
    %v3691 = vadd.f32 %v3435, %v2163
    %v3692 = vadd.f32 %v3436, %v2164
    %v3693 = vadd.f32 %v3437, %v2165
    %v3694 = vadd.f32 %v3438, %v2166
    %v3695 = vadd.f32 %v3439, %v2167
    %v3696 = vadd.f32 %v3440, %v2168
    %v3697 = vadd.f32 %v3441, %v2169
    %v3698 = vadd.f32 %v3442, %v2170
    %v3699 = vadd.f32 %v3443, %v2171
    %v3700 = vadd.f32 %v3444, %v2172
    %v3701 = vadd.f32 %v3445, %v2173
    %v3702 = vadd.f32 %v3446, %v2174
    %v3703 = vadd.f32 %v3447, %v2175
    %v3704 = vadd.f32 %v3448, %v2176
    %v3705 = vadd.f32 %v3449, %v2177
    %v3706 = vadd.f32 %v3450, %v2178
    %v3707 = vadd.f32 %v3451, %v2179
    %v3708 = vadd.f32 %v3452, %v2180
    %v3709 = vadd.f32 %v3453, %v2181
    %v3710 = vadd.f32 %v3454, %v2182
    %v3711 = vadd.f32 %v3455, %v2183
    %v3712 = vadd.f32 %v3456, %v2184
    %v3713 = vadd.f32 %v3457, %v2185
    %v3714 = vadd.f32 %v3458, %v2186
    %v3715 = vadd.f32 %v3459, %v2187
    %v3716 = vadd.f32 %v3460, %v2188
    %v3717 = vadd.f32 %v3461, %v2189
    %v3718 = vadd.f32 %v3462, %v2190
    %v3719 = vadd.f32 %v3463, %v2191
    %v3720 = vadd.f32 %v3464, %v2192
    %v3721 = vadd.f32 %v3465, %v2193
    %v3722 = vadd.f32 %v3466, %v2194
    %v3723 = vadd.f32 %v3467, %v2195
    %v3724 = vadd.f32 %v3468, %v2196
    %v3725 = vadd.f32 %v3469, %v2197
    %v3726 = vadd.f32 %v3470, %v2198
    %v3727 = vadd.f32 %v3471, %v2199
    %v3728 = vadd.f32 %v3472, %v2200
    %v3729 = vadd.f32 %v3473, %v2201
    %v3730 = vadd.f32 %v3474, %v2202
    %v3731 = vadd.f32 %v3475, %v2203
    %v3732 = vadd.f32 %v3476, %v2204
    %v3733 = vadd.f32 %v3477, %v2205
    %v3734 = vadd.f32 %v3478, %v2206
    %v3735 = vadd.f32 %v3479, %v2207
    %v3736 = vadd.f32 %v3480, %v2208
    %v3737 = vadd.f32 %v3481, %v2209
    %v3738 = vadd.f32 %v3482, %v2210
    %v3739 = vadd.f32 %v3483, %v2211
    %v3740 = vadd.f32 %v3484, %v2212
    %v3741 = vadd.f32 %v3485, %v2213
    %v3742 = vadd.f32 %v3486, %v2214
    %v3743 = vadd.f32 %v3487, %v2215
    %v3744 = vadd.f32 %v3488, %v2216
    %v3745 = vadd.f32 %v3489, %v2217
    %v3746 = vadd.f32 %v3490, %v2218
    %v3747 = vadd.f32 %v3491, %v2219
    %v3748 = vadd.f32 %v3492, %v2220
    %v3749 = vadd.f32 %v3493, %v2221
    %v3750 = vadd.f32 %v3494, %v2222
    %v3751 = vadd.f32 %v3495, %v2223
    %v3752 = vadd.f32 %v3496, %v2224
    %v3753 = vadd.f32 %v3497, %v2225
    %v3754 = vadd.f32 %v3498, %v2226
    %v3755 = vadd.f32 %v3499, %v2227
    %v3756 = vadd.f32 %v3500, %v2228
    %v3757 = vadd.f32 %v3501, %v2229
    %v3758 = vadd.f32 %v3502, %v2230
    %v3759 = vadd.f32 %v3503, %v2231
    %v3760 = vadd.f32 %v3504, %v2232
    %v3761 = vadd.f32 %v3505, %v2233
    %v3762 = vadd.f32 %v3506, %v2234
    %v3763 = vadd.f32 %v3507, %v2235
    %v3764 = vadd.f32 %v3508, %v2236
    %v3765 = vadd.f32 %v3509, %v2237
    %v3766 = vadd.f32 %v3510, %v2238
    %v3767 = vadd.f32 %v3511, %v2239
    %v3768 = vadd.f32 %v3512, %v2240
    %v3769 = vadd.f32 %v3513, %v2241
    %v3770 = vadd.f32 %v3514, %v2242
    %v3771 = vadd.f32 %v3515, %v2243
    %v3772 = vadd.f32 %v3516, %v2244
    %v3773 = vadd.f32 %v3517, %v2245
    %v3774 = vadd.f32 %v3518, %v2246
    %v3775 = vadd.f32 %v3519, %v2247
    %v3776 = vadd.f32 %v3520, %v2248
    %v3777 = vadd.f32 %v3521, %v2249
    %v3778 = vadd.f32 %v3522, %v2250
    %v3779 = vadd.f32 %v3523, %v2251
    %v3780 = vadd.f32 %v3524, %v2252
    %v3781 = vadd.f32 %v3525, %v2253
    %v3782 = vadd.f32 %v3526, %v2254
    %v3783 = vadd.f32 %v3527, %v2255
    %v3784 = vadd.f32 %v3528, %v2256
    %v3785 = vadd.f32 %v3529, %v2257
    %v3786 = vadd.f32 %v3530, %v2258
    %v3787 = vadd.f32 %v3531, %v2259
    %v3788 = vadd.f32 %v3532, %v2260
    %v3789 = vadd.f32 %v3533, %v2261
    %v3790 = vadd.f32 %v3534, %v2262
    %v3791 = vadd.f32 %v3535, %v2263
    %v3792 = vadd.f32 %v3536, %v2264
    %v3793 = vadd.f32 %v3537, %v2265
    %v3794 = vadd.f32 %v3538, %v2266
    %v3795 = vadd.f32 %v3539, %v2267
    %v3796 = vadd.f32 %v3540, %v2268
    %v3797 = vadd.f32 %v3541, %v2269
    %v3798 = vadd.f32 %v3542, %v2270
    %v3799 = vadd.f32 %v3543, %v2271
    %v3800 = vadd.f32 %v3544, %v2272
    %v3801 = vadd.f32 %v3545, %v2273
    %v3802 = vadd.f32 %v3546, %v2274
    %v3803 = vadd.f32 %v3547, %v2275
    %v3804 = vadd.f32 %v3548, %v2276
    %v3805 = vadd.f32 %v3549, %v2277
    %v3806 = vadd.f32 %v3550, %v2278
    %v3807 = vadd.f32 %v3551, %v2279
    %v3808 = vadd.f32 %v3552, %v2280
    %v3809 = vadd.f32 %v3553, %v2281
    %v3810 = vadd.f32 %v3554, %v2282
    %v3811 = vadd.f32 %v3555, %v2283
    %v3812 = vadd.f32 %v3556, %v2284
    %v3813 = vadd.f32 %v3557, %v2285
    %v3814 = vadd.f32 %v3558, %v2286
    %v3815 = vadd.f32 %v3559, %v2287
    %v3816 = vadd.f32 %v3560, %v2288
    %v3817 = vadd.f32 %v3561, %v2289
    %v3818 = vadd.f32 %v3562, %v2290
    %v3819 = vadd.f32 %v3563, %v2291
    %v3820 = vadd.f32 %v3564, %v2292
    %v3821 = vadd.f32 %v3565, %v2293
    %v3822 = vadd.f32 %v3566, %v2294
    %v3823 = vadd.f32 %v3567, %v2295
    %v3824 = vadd.f32 %v3568, %v2296
    %v3825 = vadd.f32 %v3569, %v2297
    %v3826 = vadd.f32 %v3570, %v2298
    %v3827 = vadd.f32 %v3571, %v2299
    %v3828 = vadd.f32 %v3572, %v2300
    %v3829 = vadd.f32 %v3573, %v2301
    %v3830 = vadd.f32 %v3574, %v2302
    %v3831 = vadd.f32 %v3575, %v2303
    %v3832 = vadd.f32 %v3576, %v2304
    %v3833 = vadd.f32 %v3577, %v2305
    %v3834 = vadd.f32 %v3578, %v2306
    %v3835 = vadd.f32 %v3579, %v2307
    %v3836 = vadd.f32 %v3580, %v2308
    %v3837 = vadd.f32 %v3581, %v2309
    %v3838 = vadd.f32 %v3582, %v2310
    %v3839 = vadd.f32 %v3583, %v2311
    %v3840 = vadd.f32 %v3584, %v2312
    %v3841 = vadd.f32 %v3585, %v2313
    %v3842 = vadd.f32 %v3586, %v2314
    %v3843 = vadd.f32 %v3587, %v2315
    %v3844 = vadd.f32 %v3588, %v2316
    %v3845 = vadd.f32 %v3589, %v2317
    %v3846 = vadd.f32 %v3590, %v2318
    %v3847 = vadd.f32 %v3591, %v2319
    %v3848 = vadd.f32 %v3592, %v2320
    %v3849 = vadd.f32 %v3593, %v2321
    %v3850 = vadd.f32 %v3594, %v2322
    %v3851 = vadd.f32 %v3595, %v2323
    %v3852 = vadd.f32 %v3596, %v2324
    %v3853 = vadd.f32 %v3597, %v2325
    %v3854 = vadd.f32 %v3598, %v2326
    %v3855 = vadd.f32 %v3599, %v2327
    %v3856 = vadd.f32 %v3600, %v2328
    %v3857 = vadd.f32 %v3601, %v2329
    %v3858 = vadd.f32 %v3602, %v2330
    %v3859 = vadd.f32 %v3603, %v2331
    %v3860 = vadd.f32 %v3604, %v2332
    %v3861 = vadd.f32 %v3605, %v2333
    %v3862 = vadd.f32 %v3606, %v2334
    %v3863 = vadd.f32 %v3607, %v2335
    %v3864 = vadd.f32 %v3608, %v2336
    %v3865 = vadd.f32 %v3609, %v2337
    %v3866 = vadd.f32 %v3610, %v2338
    %v3867 = vadd.f32 %v3611, %v2339
    %v3868 = vadd.f32 %v3612, %v2340
    %v3869 = vadd.f32 %v3613, %v2341
    %v3870 = vadd.f32 %v3614, %v2342
    %v3871 = vadd.f32 %v3615, %v2343
    %v3872 = vadd.f32 %v3616, %v2344
    %v3873 = vadd.f32 %v3617, %v2345
    %v3874 = vadd.f32 %v3618, %v2346
    %v3875 = vadd.f32 %v3619, %v2347
    %v3876 = vadd.f32 %v3620, %v2348
    %v3877 = vadd.f32 %v3621, %v2349
    %v3878 = vadd.f32 %v3622, %v2350
    %v3879 = vadd.f32 %v3623, %v2351
    %v3880 = vadd.f32 %v3624, %v2352
    %v3881 = vadd.f32 %v3625, %v2353
    %v3882 = vadd.f32 %v3626, %v2354
    %v3883 = vadd.f32 %v3627, %v2355
    %v3884 = vadd.f32 %v3628, %v2356
    %v3885 = vadd.f32 %v3629, %v2357
    %v3886 = vadd.f32 %v3630, %v2358
    %v3887 = vadd.f32 %v3631, %v2351
    %v3888 = vadd.f32 %v3632, %v2352
    %v3889 = vadd.f32 %v3633, %v2353
    %v3890 = vadd.f32 %v3634, %v2354
    %v3891 = vadd.f32 %v3635, %v2355
    %v3892 = vadd.f32 %v3636, %v2356
    %v3893 = vadd.f32 %v3637, %v2357
    %v3894 = vadd.f32 %v3638, %v2358
    %v3895 = vmul.f32 %v3639, %v296
    %v3896 = vmul.f32 %v3640, %v297
    %v3897 = vmul.f32 %v3641, %v298
    %v3898 = vmul.f32 %v3642, %v299
    %v3899 = vmul.f32 %v3643, %v300
    %v3900 = vmul.f32 %v3644, %v301
    %v3901 = vmul.f32 %v3645, %v302
    %v3902 = vmul.f32 %v3646, %v303
    %v3903 = vmul.f32 %v3647, %v304
    %v3904 = vmul.f32 %v3648, %v305
    %v3905 = vmul.f32 %v3649, %v306
    %v3906 = vmul.f32 %v3650, %v307
    %v3907 = vmul.f32 %v3651, %v308
    %v3908 = vmul.f32 %v3652, %v309
    %v3909 = vmul.f32 %v3653, %v310
    %v3910 = vmul.f32 %v3654, %v311
    %v3911 = vmul.f32 %v3655, %v312
    %v3912 = vmul.f32 %v3656, %v313
    %v3913 = vmul.f32 %v3657, %v314
    %v3914 = vmul.f32 %v3658, %v315
    %v3915 = vmul.f32 %v3659, %v316
    %v3916 = vmul.f32 %v3660, %v317
    %v3917 = vmul.f32 %v3661, %v318
    %v3918 = vmul.f32 %v3662, %v319
    %v3919 = vmul.f32 %v3663, %v320
    %v3920 = vmul.f32 %v3664, %v321
    %v3921 = vmul.f32 %v3665, %v322
    %v3922 = vmul.f32 %v3666, %v323
    %v3923 = vmul.f32 %v3667, %v324
    %v3924 = vmul.f32 %v3668, %v325
    %v3925 = vmul.f32 %v3669, %v326
    %v3926 = vmul.f32 %v3670, %v327
    %v3927 = vmul.f32 %v3671, %v328
    %v3928 = vmul.f32 %v3672, %v329
    %v3929 = vmul.f32 %v3673, %v330
    %v3930 = vmul.f32 %v3674, %v331
    %v3931 = vmul.f32 %v3675, %v332
    %v3932 = vmul.f32 %v3676, %v333
    %v3933 = vmul.f32 %v3677, %v334
    %v3934 = vmul.f32 %v3678, %v335
    %v3935 = vmul.f32 %v3679, %v336
    %v3936 = vmul.f32 %v3680, %v337
    %v3937 = vmul.f32 %v3681, %v338
    %v3938 = vmul.f32 %v3682, %v339
    %v3939 = vmul.f32 %v3683, %v340
    %v3940 = vmul.f32 %v3684, %v341
    %v3941 = vmul.f32 %v3685, %v342
    %v3942 = vmul.f32 %v3686, %v343
    %v3943 = vmul.f32 %v3687, %v344
    %v3944 = vmul.f32 %v3688, %v345
    %v3945 = vmul.f32 %v3689, %v346
    %v3946 = vmul.f32 %v3690, %v347
    %v3947 = vmul.f32 %v3691, %v348
    %v3948 = vmul.f32 %v3692, %v349
    %v3949 = vmul.f32 %v3693, %v350
    %v3950 = vmul.f32 %v3694, %v351
    %v3951 = vmul.f32 %v3695, %v352
    %v3952 = vmul.f32 %v3696, %v353
    %v3953 = vmul.f32 %v3697, %v354
    %v3954 = vmul.f32 %v3698, %v355
    %v3955 = vmul.f32 %v3699, %v356
    %v3956 = vmul.f32 %v3700, %v357
    %v3957 = vmul.f32 %v3701, %v358
    %v3958 = vmul.f32 %v3702, %v359
    %v3959 = vmul.f32 %v3703, %v360
    %v3960 = vmul.f32 %v3704, %v361
    %v3961 = vmul.f32 %v3705, %v362
    %v3962 = vmul.f32 %v3706, %v363
    %v3963 = vmul.f32 %v3707, %v364
    %v3964 = vmul.f32 %v3708, %v365
    %v3965 = vmul.f32 %v3709, %v366
    %v3966 = vmul.f32 %v3710, %v367
    %v3967 = vmul.f32 %v3711, %v368
    %v3968 = vmul.f32 %v3712, %v369
    %v3969 = vmul.f32 %v3713, %v370
    %v3970 = vmul.f32 %v3714, %v371
    %v3971 = vmul.f32 %v3715, %v372
    %v3972 = vmul.f32 %v3716, %v373
    %v3973 = vmul.f32 %v3717, %v374
    %v3974 = vmul.f32 %v3718, %v375
    %v3975 = vmul.f32 %v3719, %v376
    %v3976 = vmul.f32 %v3720, %v377
    %v3977 = vmul.f32 %v3721, %v378
    %v3978 = vmul.f32 %v3722, %v379
    %v3979 = vmul.f32 %v3723, %v380
    %v3980 = vmul.f32 %v3724, %v381
    %v3981 = vmul.f32 %v3725, %v382
    %v3982 = vmul.f32 %v3726, %v383
    %v3983 = vmul.f32 %v3727, %v384
    %v3984 = vmul.f32 %v3728, %v385
    %v3985 = vmul.f32 %v3729, %v386
    %v3986 = vmul.f32 %v3730, %v387
    %v3987 = vmul.f32 %v3731, %v388
    %v3988 = vmul.f32 %v3732, %v389
    %v3989 = vmul.f32 %v3733, %v390
    %v3990 = vmul.f32 %v3734, %v391
    %v3991 = vmul.f32 %v3735, %v392
    %v3992 = vmul.f32 %v3736, %v393
    %v3993 = vmul.f32 %v3737, %v394
    %v3994 = vmul.f32 %v3738, %v395
    %v3995 = vmul.f32 %v3739, %v396
    %v3996 = vmul.f32 %v3740, %v397
    %v3997 = vmul.f32 %v3741, %v398
    %v3998 = vmul.f32 %v3742, %v399
    %v3999 = vmul.f32 %v3743, %v400
    %v4000 = vmul.f32 %v3744, %v401
    %v4001 = vmul.f32 %v3745, %v402
    %v4002 = vmul.f32 %v3746, %v403
    %v4003 = vmul.f32 %v3747, %v404
    %v4004 = vmul.f32 %v3748, %v405
    %v4005 = vmul.f32 %v3749, %v406
    %v4006 = vmul.f32 %v3750, %v407
    %v4007 = vmul.f32 %v3751, %v408
    %v4008 = vmul.f32 %v3752, %v409
    %v4009 = vmul.f32 %v3753, %v410
    %v4010 = vmul.f32 %v3754, %v411
    %v4011 = vmul.f32 %v3755, %v412
    %v4012 = vmul.f32 %v3756, %v413
    %v4013 = vmul.f32 %v3757, %v414
    %v4014 = vmul.f32 %v3758, %v415
    %v4015 = vmul.f32 %v3759, %v416
    %v4016 = vmul.f32 %v3760, %v417
    %v4017 = vmul.f32 %v3761, %v418
    %v4018 = vmul.f32 %v3762, %v419
    %v4019 = vmul.f32 %v3763, %v420
    %v4020 = vmul.f32 %v3764, %v421
    %v4021 = vmul.f32 %v3765, %v422
    %v4022 = vmul.f32 %v3766, %v423
    %v4023 = vmul.f32 %v3767, %v424
    %v4024 = vmul.f32 %v3768, %v425
    %v4025 = vmul.f32 %v3769, %v426
    %v4026 = vmul.f32 %v3770, %v427
    %v4027 = vmul.f32 %v3771, %v428
    %v4028 = vmul.f32 %v3772, %v429
    %v4029 = vmul.f32 %v3773, %v430
    %v4030 = vmul.f32 %v3774, %v431
    %v4031 = vmul.f32 %v3775, %v432
    %v4032 = vmul.f32 %v3776, %v433
    %v4033 = vmul.f32 %v3777, %v434
    %v4034 = vmul.f32 %v3778, %v435
    %v4035 = vmul.f32 %v3779, %v436
    %v4036 = vmul.f32 %v3780, %v437
    %v4037 = vmul.f32 %v3781, %v438
    %v4038 = vmul.f32 %v3782, %v439
    %v4039 = vmul.f32 %v3783, %v440
    %v4040 = vmul.f32 %v3784, %v441
    %v4041 = vmul.f32 %v3785, %v442
    %v4042 = vmul.f32 %v3786, %v443
    %v4043 = vmul.f32 %v3787, %v444
    %v4044 = vmul.f32 %v3788, %v445
    %v4045 = vmul.f32 %v3789, %v446
    %v4046 = vmul.f32 %v3790, %v447
    %v4047 = vmul.f32 %v3791, %v448
    %v4048 = vmul.f32 %v3792, %v449
    %v4049 = vmul.f32 %v3793, %v450
    %v4050 = vmul.f32 %v3794, %v451
    %v4051 = vmul.f32 %v3795, %v452
    %v4052 = vmul.f32 %v3796, %v453
    %v4053 = vmul.f32 %v3797, %v454
    %v4054 = vmul.f32 %v3798, %v455
    %v4055 = vmul.f32 %v3799, %v456
    %v4056 = vmul.f32 %v3800, %v457
    %v4057 = vmul.f32 %v3801, %v458
    %v4058 = vmul.f32 %v3802, %v459
    %v4059 = vmul.f32 %v3803, %v460
    %v4060 = vmul.f32 %v3804, %v461
    %v4061 = vmul.f32 %v3805, %v462
    %v4062 = vmul.f32 %v3806, %v463
    %v4063 = vmul.f32 %v3807, %v464
    %v4064 = vmul.f32 %v3808, %v465
    %v4065 = vmul.f32 %v3809, %v466
    %v4066 = vmul.f32 %v3810, %v467
    %v4067 = vmul.f32 %v3811, %v468
    %v4068 = vmul.f32 %v3812, %v469
    %v4069 = vmul.f32 %v3813, %v470
    %v4070 = vmul.f32 %v3814, %v471
    %v4071 = vmul.f32 %v3815, %v472
    %v4072 = vmul.f32 %v3816, %v473
    %v4073 = vmul.f32 %v3817, %v474
    %v4074 = vmul.f32 %v3818, %v475
    %v4075 = vmul.f32 %v3819, %v476
    %v4076 = vmul.f32 %v3820, %v477
    %v4077 = vmul.f32 %v3821, %v478
    %v4078 = vmul.f32 %v3822, %v479
    %v4079 = vmul.f32 %v3823, %v480
    %v4080 = vmul.f32 %v3824, %v481
    %v4081 = vmul.f32 %v3825, %v482
    %v4082 = vmul.f32 %v3826, %v483
    %v4083 = vmul.f32 %v3827, %v484
    %v4084 = vmul.f32 %v3828, %v485
    %v4085 = vmul.f32 %v3829, %v486
    %v4086 = vmul.f32 %v3830, %v487
    %v4087 = vmul.f32 %v3831, %v488
    %v4088 = vmul.f32 %v3832, %v489
    %v4089 = vmul.f32 %v3833, %v490
    %v4090 = vmul.f32 %v3834, %v491
    %v4091 = vmul.f32 %v3835, %v492
    %v4092 = vmul.f32 %v3836, %v493
    %v4093 = vmul.f32 %v3837, %v494
    %v4094 = vmul.f32 %v3838, %v495
    %v4095 = vmul.f32 %v3839, %v496
    %v4096 = vmul.f32 %v3840, %v497
    %v4097 = vmul.f32 %v3841, %v498
    %v4098 = vmul.f32 %v3842, %v499
    %v4099 = vmul.f32 %v3843, %v500
    %v4100 = vmul.f32 %v3844, %v501
    %v4101 = vmul.f32 %v3845, %v502
    %v4102 = vmul.f32 %v3846, %v503
    %v4103 = vmul.f32 %v3847, %v504
    %v4104 = vmul.f32 %v3848, %v505
    %v4105 = vmul.f32 %v3849, %v506
    %v4106 = vmul.f32 %v3850, %v507
    %v4107 = vmul.f32 %v3851, %v508
    %v4108 = vmul.f32 %v3852, %v509
    %v4109 = vmul.f32 %v3853, %v510
    %v4110 = vmul.f32 %v3854, %v511
    %v4111 = vmul.f32 %v3855, %v512
    %v4112 = vmul.f32 %v3856, %v513
    %v4113 = vmul.f32 %v3857, %v514
    %v4114 = vmul.f32 %v3858, %v515
    %v4115 = vmul.f32 %v3859, %v516
    %v4116 = vmul.f32 %v3860, %v517
    %v4117 = vmul.f32 %v3861, %v518
    %v4118 = vmul.f32 %v3862, %v519
    %v4119 = vmul.f32 %v3863, %v520
    %v4120 = vmul.f32 %v3864, %v521
    %v4121 = vmul.f32 %v3865, %v522
    %v4122 = vmul.f32 %v3866, %v523
    %v4123 = vmul.f32 %v3867, %v524
    %v4124 = vmul.f32 %v3868, %v525
    %v4125 = vmul.f32 %v3869, %v526
    %v4126 = vmul.f32 %v3870, %v527
    %v4127 = vmul.f32 %v3871, %v528
    %v4128 = vmul.f32 %v3872, %v529
    %v4129 = vmul.f32 %v3873, %v530
    %v4130 = vmul.f32 %v3874, %v531
    %v4131 = vmul.f32 %v3875, %v532
    %v4132 = vmul.f32 %v3876, %v533
    %v4133 = vmul.f32 %v3877, %v534
    %v4134 = vmul.f32 %v3878, %v535
    %v4135 = vmul.f32 %v3879, %v536
    %v4136 = vmul.f32 %v3880, %v537
    %v4137 = vmul.f32 %v3881, %v538
    %v4138 = vmul.f32 %v3882, %v539
    %v4139 = vmul.f32 %v3883, %v540
    %v4140 = vmul.f32 %v3884, %v541
    %v4141 = vmul.f32 %v3885, %v542
    %v4142 = vmul.f32 %v3886, %v543
    %v4143 = vmul.f32 %v3887, %v544
    %v4144 = vmul.f32 %v3888, %v545
    %v4145 = vmul.f32 %v3889, %v546
    %v4146 = vmul.f32 %v3890, %v547
    %v4147 = vmul.f32 %v3891, %v548
    %v4148 = vmul.f32 %v3892, %v549
    %v4149 = vmul.f32 %v3893, %v550
    %v4150 = vmul.f32 %v3894, %v551
    %v4151 = vsub.f32 %v2879, %v2871
    %v4152 = vsub.f32 %v2880, %v2872
    %v4153 = vsub.f32 %v2881, %v2873
    %v4154 = vsub.f32 %v2882, %v2874
    %v4155 = vsub.f32 %v2883, %v2875
    %v4156 = vsub.f32 %v2884, %v2876
    %v4157 = vsub.f32 %v2885, %v2877
    %v4158 = vsub.f32 %v2886, %v2878
    %v4159 = vsub.f32 %v2887, %v2871
    %v4160 = vsub.f32 %v2888, %v2872
    %v4161 = vsub.f32 %v2889, %v2873
    %v4162 = vsub.f32 %v2890, %v2874
    %v4163 = vsub.f32 %v2891, %v2875
    %v4164 = vsub.f32 %v2892, %v2876
    %v4165 = vsub.f32 %v2893, %v2877
    %v4166 = vsub.f32 %v2894, %v2878
    %v4167 = vsub.f32 %v2895, %v2879
    %v4168 = vsub.f32 %v2896, %v2880
    %v4169 = vsub.f32 %v2897, %v2881
    %v4170 = vsub.f32 %v2898, %v2882
    %v4171 = vsub.f32 %v2899, %v2883
    %v4172 = vsub.f32 %v2900, %v2884
    %v4173 = vsub.f32 %v2901, %v2885
    %v4174 = vsub.f32 %v2902, %v2886
    %v4175 = vsub.f32 %v2903, %v2887
    %v4176 = vsub.f32 %v2904, %v2888
    %v4177 = vsub.f32 %v2905, %v2889
    %v4178 = vsub.f32 %v2906, %v2890
    %v4179 = vsub.f32 %v2907, %v2891
    %v4180 = vsub.f32 %v2908, %v2892
    %v4181 = vsub.f32 %v2909, %v2893
    %v4182 = vsub.f32 %v2910, %v2894
    %v4183 = vsub.f32 %v2911, %v2895
    %v4184 = vsub.f32 %v2912, %v2896
    %v4185 = vsub.f32 %v2913, %v2897
    %v4186 = vsub.f32 %v2914, %v2898
    %v4187 = vsub.f32 %v2915, %v2899
    %v4188 = vsub.f32 %v2916, %v2900
    %v4189 = vsub.f32 %v2917, %v2901
    %v4190 = vsub.f32 %v2918, %v2902
    %v4191 = vsub.f32 %v2919, %v2903
    %v4192 = vsub.f32 %v2920, %v2904
    %v4193 = vsub.f32 %v2921, %v2905
    %v4194 = vsub.f32 %v2922, %v2906
    %v4195 = vsub.f32 %v2923, %v2907
    %v4196 = vsub.f32 %v2924, %v2908
    %v4197 = vsub.f32 %v2925, %v2909
    %v4198 = vsub.f32 %v2926, %v2910
    %v4199 = vsub.f32 %v2927, %v2911
    %v4200 = vsub.f32 %v2928, %v2912
    %v4201 = vsub.f32 %v2929, %v2913
    %v4202 = vsub.f32 %v2930, %v2914
    %v4203 = vsub.f32 %v2931, %v2915
    %v4204 = vsub.f32 %v2932, %v2916
    %v4205 = vsub.f32 %v2933, %v2917
    %v4206 = vsub.f32 %v2934, %v2918
    %v4207 = vsub.f32 %v2935, %v2919
    %v4208 = vsub.f32 %v2936, %v2920
    %v4209 = vsub.f32 %v2937, %v2921
    %v4210 = vsub.f32 %v2938, %v2922
    %v4211 = vsub.f32 %v2939, %v2923
    %v4212 = vsub.f32 %v2940, %v2924
    %v4213 = vsub.f32 %v2941, %v2925
    %v4214 = vsub.f32 %v2942, %v2926
    %v4215 = vsub.f32 %v2943, %v2927
    %v4216 = vsub.f32 %v2944, %v2928
    %v4217 = vsub.f32 %v2945, %v2929
    %v4218 = vsub.f32 %v2946, %v2930
    %v4219 = vsub.f32 %v2947, %v2931
    %v4220 = vsub.f32 %v2948, %v2932
    %v4221 = vsub.f32 %v2949, %v2933
    %v4222 = vsub.f32 %v2950, %v2934
    %v4223 = vsub.f32 %v2951, %v2935
    %v4224 = vsub.f32 %v2952, %v2936
    %v4225 = vsub.f32 %v2953, %v2937
    %v4226 = vsub.f32 %v2954, %v2938
    %v4227 = vsub.f32 %v2955, %v2939
    %v4228 = vsub.f32 %v2956, %v2940
    %v4229 = vsub.f32 %v2957, %v2941
    %v4230 = vsub.f32 %v2958, %v2942
    %v4231 = vsub.f32 %v2959, %v2943
    %v4232 = vsub.f32 %v2960, %v2944
    %v4233 = vsub.f32 %v2961, %v2945
    %v4234 = vsub.f32 %v2962, %v2946
    %v4235 = vsub.f32 %v2963, %v2947
    %v4236 = vsub.f32 %v2964, %v2948
    %v4237 = vsub.f32 %v2965, %v2949
    %v4238 = vsub.f32 %v2966, %v2950
    %v4239 = vsub.f32 %v2967, %v2951
    %v4240 = vsub.f32 %v2968, %v2952
    %v4241 = vsub.f32 %v2969, %v2953
    %v4242 = vsub.f32 %v2970, %v2954
    %v4243 = vsub.f32 %v2971, %v2955
    %v4244 = vsub.f32 %v2972, %v2956
    %v4245 = vsub.f32 %v2973, %v2957
    %v4246 = vsub.f32 %v2974, %v2958
    %v4247 = vsub.f32 %v2975, %v2959
    %v4248 = vsub.f32 %v2976, %v2960
    %v4249 = vsub.f32 %v2977, %v2961
    %v4250 = vsub.f32 %v2978, %v2962
    %v4251 = vsub.f32 %v2979, %v2963
    %v4252 = vsub.f32 %v2980, %v2964
    %v4253 = vsub.f32 %v2981, %v2965
    %v4254 = vsub.f32 %v2982, %v2966
    %v4255 = vsub.f32 %v2983, %v2967
    %v4256 = vsub.f32 %v2984, %v2968
    %v4257 = vsub.f32 %v2985, %v2969
    %v4258 = vsub.f32 %v2986, %v2970
    %v4259 = vsub.f32 %v2987, %v2971
    %v4260 = vsub.f32 %v2988, %v2972
    %v4261 = vsub.f32 %v2989, %v2973
    %v4262 = vsub.f32 %v2990, %v2974
    %v4263 = vsub.f32 %v2991, %v2975
    %v4264 = vsub.f32 %v2992, %v2976
    %v4265 = vsub.f32 %v2993, %v2977
    %v4266 = vsub.f32 %v2994, %v2978
    %v4267 = vsub.f32 %v2995, %v2979
    %v4268 = vsub.f32 %v2996, %v2980
    %v4269 = vsub.f32 %v2997, %v2981
    %v4270 = vsub.f32 %v2998, %v2982
    %v4271 = vsub.f32 %v2999, %v2983
    %v4272 = vsub.f32 %v3000, %v2984
    %v4273 = vsub.f32 %v3001, %v2985
    %v4274 = vsub.f32 %v3002, %v2986
    %v4275 = vsub.f32 %v3003, %v2987
    %v4276 = vsub.f32 %v3004, %v2988
    %v4277 = vsub.f32 %v3005, %v2989
    %v4278 = vsub.f32 %v3006, %v2990
    %v4279 = vsub.f32 %v3007, %v2991
    %v4280 = vsub.f32 %v3008, %v2992
    %v4281 = vsub.f32 %v3009, %v2993
    %v4282 = vsub.f32 %v3010, %v2994
    %v4283 = vsub.f32 %v3011, %v2995
    %v4284 = vsub.f32 %v3012, %v2996
    %v4285 = vsub.f32 %v3013, %v2997
    %v4286 = vsub.f32 %v3014, %v2998
    %v4287 = vsub.f32 %v3015, %v2999
    %v4288 = vsub.f32 %v3016, %v3000
    %v4289 = vsub.f32 %v3017, %v3001
    %v4290 = vsub.f32 %v3018, %v3002
    %v4291 = vsub.f32 %v3019, %v3003
    %v4292 = vsub.f32 %v3020, %v3004
    %v4293 = vsub.f32 %v3021, %v3005
    %v4294 = vsub.f32 %v3022, %v3006
    %v4295 = vsub.f32 %v3023, %v3007
    %v4296 = vsub.f32 %v3024, %v3008
    %v4297 = vsub.f32 %v3025, %v3009
    %v4298 = vsub.f32 %v3026, %v3010
    %v4299 = vsub.f32 %v3027, %v3011
    %v4300 = vsub.f32 %v3028, %v3012
    %v4301 = vsub.f32 %v3029, %v3013
    %v4302 = vsub.f32 %v3030, %v3014
    %v4303 = vsub.f32 %v3031, %v3015
    %v4304 = vsub.f32 %v3032, %v3016
    %v4305 = vsub.f32 %v3033, %v3017
    %v4306 = vsub.f32 %v3034, %v3018
    %v4307 = vsub.f32 %v3035, %v3019
    %v4308 = vsub.f32 %v3036, %v3020
    %v4309 = vsub.f32 %v3037, %v3021
    %v4310 = vsub.f32 %v3038, %v3022
    %v4311 = vsub.f32 %v3039, %v3023
    %v4312 = vsub.f32 %v3040, %v3024
    %v4313 = vsub.f32 %v3041, %v3025
    %v4314 = vsub.f32 %v3042, %v3026
    %v4315 = vsub.f32 %v3043, %v3027
    %v4316 = vsub.f32 %v3044, %v3028
    %v4317 = vsub.f32 %v3045, %v3029
    %v4318 = vsub.f32 %v3046, %v3030
    %v4319 = vsub.f32 %v3047, %v3031
    %v4320 = vsub.f32 %v3048, %v3032
    %v4321 = vsub.f32 %v3049, %v3033
    %v4322 = vsub.f32 %v3050, %v3034
    %v4323 = vsub.f32 %v3051, %v3035
    %v4324 = vsub.f32 %v3052, %v3036
    %v4325 = vsub.f32 %v3053, %v3037
    %v4326 = vsub.f32 %v3054, %v3038
    %v4327 = vsub.f32 %v3055, %v3039
    %v4328 = vsub.f32 %v3056, %v3040
    %v4329 = vsub.f32 %v3057, %v3041
    %v4330 = vsub.f32 %v3058, %v3042
    %v4331 = vsub.f32 %v3059, %v3043
    %v4332 = vsub.f32 %v3060, %v3044
    %v4333 = vsub.f32 %v3061, %v3045
    %v4334 = vsub.f32 %v3062, %v3046
    %v4335 = vsub.f32 %v3063, %v3047
    %v4336 = vsub.f32 %v3064, %v3048
    %v4337 = vsub.f32 %v3065, %v3049
    %v4338 = vsub.f32 %v3066, %v3050
    %v4339 = vsub.f32 %v3067, %v3051
    %v4340 = vsub.f32 %v3068, %v3052
    %v4341 = vsub.f32 %v3069, %v3053
    %v4342 = vsub.f32 %v3070, %v3054
    %v4343 = vsub.f32 %v3071, %v3055
    %v4344 = vsub.f32 %v3072, %v3056
    %v4345 = vsub.f32 %v3073, %v3057
    %v4346 = vsub.f32 %v3074, %v3058
    %v4347 = vsub.f32 %v3075, %v3059
    %v4348 = vsub.f32 %v3076, %v3060
    %v4349 = vsub.f32 %v3077, %v3061
    %v4350 = vsub.f32 %v3078, %v3062
    %v4351 = vsub.f32 %v3079, %v3063
    %v4352 = vsub.f32 %v3080, %v3064
    %v4353 = vsub.f32 %v3081, %v3065
    %v4354 = vsub.f32 %v3082, %v3066
    %v4355 = vsub.f32 %v3083, %v3067
    %v4356 = vsub.f32 %v3084, %v3068
    %v4357 = vsub.f32 %v3085, %v3069
    %v4358 = vsub.f32 %v3086, %v3070
    %v4359 = vsub.f32 %v3087, %v3071
    %v4360 = vsub.f32 %v3088, %v3072
    %v4361 = vsub.f32 %v3089, %v3073
    %v4362 = vsub.f32 %v3090, %v3074
    %v4363 = vsub.f32 %v3091, %v3075
    %v4364 = vsub.f32 %v3092, %v3076
    %v4365 = vsub.f32 %v3093, %v3077
    %v4366 = vsub.f32 %v3094, %v3078
    %v4367 = vsub.f32 %v3095, %v3079
    %v4368 = vsub.f32 %v3096, %v3080
    %v4369 = vsub.f32 %v3097, %v3081
    %v4370 = vsub.f32 %v3098, %v3082
    %v4371 = vsub.f32 %v3099, %v3083
    %v4372 = vsub.f32 %v3100, %v3084
    %v4373 = vsub.f32 %v3101, %v3085
    %v4374 = vsub.f32 %v3102, %v3086
    %v4375 = vsub.f32 %v3103, %v3087
    %v4376 = vsub.f32 %v3104, %v3088
    %v4377 = vsub.f32 %v3105, %v3089
    %v4378 = vsub.f32 %v3106, %v3090
    %v4379 = vsub.f32 %v3107, %v3091
    %v4380 = vsub.f32 %v3108, %v3092
    %v4381 = vsub.f32 %v3109, %v3093
    %v4382 = vsub.f32 %v3110, %v3094
    %v4383 = vsub.f32 %v3111, %v3095
    %v4384 = vsub.f32 %v3112, %v3096
    %v4385 = vsub.f32 %v3113, %v3097
    %v4386 = vsub.f32 %v3114, %v3098
    %v4387 = vsub.f32 %v3115, %v3099
    %v4388 = vsub.f32 %v3116, %v3100
    %v4389 = vsub.f32 %v3117, %v3101
    %v4390 = vsub.f32 %v3118, %v3102
    %v4391 = vsub.f32 %v3119, %v3103
    %v4392 = vsub.f32 %v3120, %v3104
    %v4393 = vsub.f32 %v3121, %v3105
    %v4394 = vsub.f32 %v3122, %v3106
    %v4395 = vsub.f32 %v3123, %v3107
    %v4396 = vsub.f32 %v3124, %v3108
    %v4397 = vsub.f32 %v3125, %v3109
    %v4398 = vsub.f32 %v3126, %v3110
    %v4399 = vsub.f32 %v3119, %v3111
    %v4400 = vsub.f32 %v3120, %v3112
    %v4401 = vsub.f32 %v3121, %v3113
    %v4402 = vsub.f32 %v3122, %v3114
    %v4403 = vsub.f32 %v3123, %v3115
    %v4404 = vsub.f32 %v3124, %v3116
    %v4405 = vsub.f32 %v3125, %v3117
    %v4406 = vsub.f32 %v3126, %v3118
    %v4407 = vmul.f32 %v4151, %v296
    %v4408 = vmul.f32 %v4152, %v297
    %v4409 = vmul.f32 %v4153, %v298
    %v4410 = vmul.f32 %v4154, %v299
    %v4411 = vmul.f32 %v4155, %v300
    %v4412 = vmul.f32 %v4156, %v301
    %v4413 = vmul.f32 %v4157, %v302
    %v4414 = vmul.f32 %v4158, %v303
    %v4415 = vmul.f32 %v4159, %v304
    %v4416 = vmul.f32 %v4160, %v305
    %v4417 = vmul.f32 %v4161, %v306
    %v4418 = vmul.f32 %v4162, %v307
    %v4419 = vmul.f32 %v4163, %v308
    %v4420 = vmul.f32 %v4164, %v309
    %v4421 = vmul.f32 %v4165, %v310
    %v4422 = vmul.f32 %v4166, %v311
    %v4423 = vmul.f32 %v4167, %v312
    %v4424 = vmul.f32 %v4168, %v313
    %v4425 = vmul.f32 %v4169, %v314
    %v4426 = vmul.f32 %v4170, %v315
    %v4427 = vmul.f32 %v4171, %v316
    %v4428 = vmul.f32 %v4172, %v317
    %v4429 = vmul.f32 %v4173, %v318
    %v4430 = vmul.f32 %v4174, %v319
    %v4431 = vmul.f32 %v4175, %v320
    %v4432 = vmul.f32 %v4176, %v321
    %v4433 = vmul.f32 %v4177, %v322
    %v4434 = vmul.f32 %v4178, %v323
    %v4435 = vmul.f32 %v4179, %v324
    %v4436 = vmul.f32 %v4180, %v325
    %v4437 = vmul.f32 %v4181, %v326
    %v4438 = vmul.f32 %v4182, %v327
    %v4439 = vmul.f32 %v4183, %v328
    %v4440 = vmul.f32 %v4184, %v329
    %v4441 = vmul.f32 %v4185, %v330
    %v4442 = vmul.f32 %v4186, %v331
    %v4443 = vmul.f32 %v4187, %v332
    %v4444 = vmul.f32 %v4188, %v333
    %v4445 = vmul.f32 %v4189, %v334
    %v4446 = vmul.f32 %v4190, %v335
    %v4447 = vmul.f32 %v4191, %v336
    %v4448 = vmul.f32 %v4192, %v337
    %v4449 = vmul.f32 %v4193, %v338
    %v4450 = vmul.f32 %v4194, %v339
    %v4451 = vmul.f32 %v4195, %v340
    %v4452 = vmul.f32 %v4196, %v341
    %v4453 = vmul.f32 %v4197, %v342
    %v4454 = vmul.f32 %v4198, %v343
    %v4455 = vmul.f32 %v4199, %v344
    %v4456 = vmul.f32 %v4200, %v345
    %v4457 = vmul.f32 %v4201, %v346
    %v4458 = vmul.f32 %v4202, %v347
    %v4459 = vmul.f32 %v4203, %v348
    %v4460 = vmul.f32 %v4204, %v349
    %v4461 = vmul.f32 %v4205, %v350
    %v4462 = vmul.f32 %v4206, %v351
    %v4463 = vmul.f32 %v4207, %v352
    %v4464 = vmul.f32 %v4208, %v353
    %v4465 = vmul.f32 %v4209, %v354
    %v4466 = vmul.f32 %v4210, %v355
    %v4467 = vmul.f32 %v4211, %v356
    %v4468 = vmul.f32 %v4212, %v357
    %v4469 = vmul.f32 %v4213, %v358
    %v4470 = vmul.f32 %v4214, %v359
    %v4471 = vmul.f32 %v4215, %v360
    %v4472 = vmul.f32 %v4216, %v361
    %v4473 = vmul.f32 %v4217, %v362
    %v4474 = vmul.f32 %v4218, %v363
    %v4475 = vmul.f32 %v4219, %v364
    %v4476 = vmul.f32 %v4220, %v365
    %v4477 = vmul.f32 %v4221, %v366
    %v4478 = vmul.f32 %v4222, %v367
    %v4479 = vmul.f32 %v4223, %v368
    %v4480 = vmul.f32 %v4224, %v369
    %v4481 = vmul.f32 %v4225, %v370
    %v4482 = vmul.f32 %v4226, %v371
    %v4483 = vmul.f32 %v4227, %v372
    %v4484 = vmul.f32 %v4228, %v373
    %v4485 = vmul.f32 %v4229, %v374
    %v4486 = vmul.f32 %v4230, %v375
    %v4487 = vmul.f32 %v4231, %v376
    %v4488 = vmul.f32 %v4232, %v377
    %v4489 = vmul.f32 %v4233, %v378
    %v4490 = vmul.f32 %v4234, %v379
    %v4491 = vmul.f32 %v4235, %v380
    %v4492 = vmul.f32 %v4236, %v381
    %v4493 = vmul.f32 %v4237, %v382
    %v4494 = vmul.f32 %v4238, %v383
    %v4495 = vmul.f32 %v4239, %v384
    %v4496 = vmul.f32 %v4240, %v385
    %v4497 = vmul.f32 %v4241, %v386
    %v4498 = vmul.f32 %v4242, %v387
    %v4499 = vmul.f32 %v4243, %v388
    %v4500 = vmul.f32 %v4244, %v389
    %v4501 = vmul.f32 %v4245, %v390
    %v4502 = vmul.f32 %v4246, %v391
    %v4503 = vmul.f32 %v4247, %v392
    %v4504 = vmul.f32 %v4248, %v393
    %v4505 = vmul.f32 %v4249, %v394
    %v4506 = vmul.f32 %v4250, %v395
    %v4507 = vmul.f32 %v4251, %v396
    %v4508 = vmul.f32 %v4252, %v397
    %v4509 = vmul.f32 %v4253, %v398
    %v4510 = vmul.f32 %v4254, %v399
    %v4511 = vmul.f32 %v4255, %v400
    %v4512 = vmul.f32 %v4256, %v401
    %v4513 = vmul.f32 %v4257, %v402
    %v4514 = vmul.f32 %v4258, %v403
    %v4515 = vmul.f32 %v4259, %v404
    %v4516 = vmul.f32 %v4260, %v405
    %v4517 = vmul.f32 %v4261, %v406
    %v4518 = vmul.f32 %v4262, %v407
    %v4519 = vmul.f32 %v4263, %v408
    %v4520 = vmul.f32 %v4264, %v409
    %v4521 = vmul.f32 %v4265, %v410
    %v4522 = vmul.f32 %v4266, %v411
    %v4523 = vmul.f32 %v4267, %v412
    %v4524 = vmul.f32 %v4268, %v413
    %v4525 = vmul.f32 %v4269, %v414
    %v4526 = vmul.f32 %v4270, %v415
    %v4527 = vmul.f32 %v4271, %v416
    %v4528 = vmul.f32 %v4272, %v417
    %v4529 = vmul.f32 %v4273, %v418
    %v4530 = vmul.f32 %v4274, %v419
    %v4531 = vmul.f32 %v4275, %v420
    %v4532 = vmul.f32 %v4276, %v421
    %v4533 = vmul.f32 %v4277, %v422
    %v4534 = vmul.f32 %v4278, %v423
    %v4535 = vmul.f32 %v4279, %v424
    %v4536 = vmul.f32 %v4280, %v425
    %v4537 = vmul.f32 %v4281, %v426
    %v4538 = vmul.f32 %v4282, %v427
    %v4539 = vmul.f32 %v4283, %v428
    %v4540 = vmul.f32 %v4284, %v429
    %v4541 = vmul.f32 %v4285, %v430
    %v4542 = vmul.f32 %v4286, %v431
    %v4543 = vmul.f32 %v4287, %v432
    %v4544 = vmul.f32 %v4288, %v433
    %v4545 = vmul.f32 %v4289, %v434
    %v4546 = vmul.f32 %v4290, %v435
    %v4547 = vmul.f32 %v4291, %v436
    %v4548 = vmul.f32 %v4292, %v437
    %v4549 = vmul.f32 %v4293, %v438
    %v4550 = vmul.f32 %v4294, %v439
    %v4551 = vmul.f32 %v4295, %v440
    %v4552 = vmul.f32 %v4296, %v441
    %v4553 = vmul.f32 %v4297, %v442
    %v4554 = vmul.f32 %v4298, %v443
    %v4555 = vmul.f32 %v4299, %v444
    %v4556 = vmul.f32 %v4300, %v445
    %v4557 = vmul.f32 %v4301, %v446
    %v4558 = vmul.f32 %v4302, %v447
    %v4559 = vmul.f32 %v4303, %v448
    %v4560 = vmul.f32 %v4304, %v449
    %v4561 = vmul.f32 %v4305, %v450
    %v4562 = vmul.f32 %v4306, %v451
    %v4563 = vmul.f32 %v4307, %v452
    %v4564 = vmul.f32 %v4308, %v453
    %v4565 = vmul.f32 %v4309, %v454
    %v4566 = vmul.f32 %v4310, %v455
    %v4567 = vmul.f32 %v4311, %v456
    %v4568 = vmul.f32 %v4312, %v457
    %v4569 = vmul.f32 %v4313, %v458
    %v4570 = vmul.f32 %v4314, %v459
    %v4571 = vmul.f32 %v4315, %v460
    %v4572 = vmul.f32 %v4316, %v461
    %v4573 = vmul.f32 %v4317, %v462
    %v4574 = vmul.f32 %v4318, %v463
    %v4575 = vmul.f32 %v4319, %v464
    %v4576 = vmul.f32 %v4320, %v465
    %v4577 = vmul.f32 %v4321, %v466
    %v4578 = vmul.f32 %v4322, %v467
    %v4579 = vmul.f32 %v4323, %v468
    %v4580 = vmul.f32 %v4324, %v469
    %v4581 = vmul.f32 %v4325, %v470
    %v4582 = vmul.f32 %v4326, %v471
    %v4583 = vmul.f32 %v4327, %v472
    %v4584 = vmul.f32 %v4328, %v473
    %v4585 = vmul.f32 %v4329, %v474
    %v4586 = vmul.f32 %v4330, %v475
    %v4587 = vmul.f32 %v4331, %v476
    %v4588 = vmul.f32 %v4332, %v477
    %v4589 = vmul.f32 %v4333, %v478
    %v4590 = vmul.f32 %v4334, %v479
    %v4591 = vmul.f32 %v4335, %v480
    %v4592 = vmul.f32 %v4336, %v481
    %v4593 = vmul.f32 %v4337, %v482
    %v4594 = vmul.f32 %v4338, %v483
    %v4595 = vmul.f32 %v4339, %v484
    %v4596 = vmul.f32 %v4340, %v485
    %v4597 = vmul.f32 %v4341, %v486
    %v4598 = vmul.f32 %v4342, %v487
    %v4599 = vmul.f32 %v4343, %v488
    %v4600 = vmul.f32 %v4344, %v489
    %v4601 = vmul.f32 %v4345, %v490
    %v4602 = vmul.f32 %v4346, %v491
    %v4603 = vmul.f32 %v4347, %v492
    %v4604 = vmul.f32 %v4348, %v493
    %v4605 = vmul.f32 %v4349, %v494
    %v4606 = vmul.f32 %v4350, %v495
    %v4607 = vmul.f32 %v4351, %v496
    %v4608 = vmul.f32 %v4352, %v497
    %v4609 = vmul.f32 %v4353, %v498
    %v4610 = vmul.f32 %v4354, %v499
    %v4611 = vmul.f32 %v4355, %v500
    %v4612 = vmul.f32 %v4356, %v501
    %v4613 = vmul.f32 %v4357, %v502
    %v4614 = vmul.f32 %v4358, %v503
    %v4615 = vmul.f32 %v4359, %v504
    %v4616 = vmul.f32 %v4360, %v505
    %v4617 = vmul.f32 %v4361, %v506
    %v4618 = vmul.f32 %v4362, %v507
    %v4619 = vmul.f32 %v4363, %v508
    %v4620 = vmul.f32 %v4364, %v509
    %v4621 = vmul.f32 %v4365, %v510
    %v4622 = vmul.f32 %v4366, %v511
    %v4623 = vmul.f32 %v4367, %v512
    %v4624 = vmul.f32 %v4368, %v513
    %v4625 = vmul.f32 %v4369, %v514
    %v4626 = vmul.f32 %v4370, %v515
    %v4627 = vmul.f32 %v4371, %v516
    %v4628 = vmul.f32 %v4372, %v517
    %v4629 = vmul.f32 %v4373, %v518
    %v4630 = vmul.f32 %v4374, %v519
    %v4631 = vmul.f32 %v4375, %v520
    %v4632 = vmul.f32 %v4376, %v521
    %v4633 = vmul.f32 %v4377, %v522
    %v4634 = vmul.f32 %v4378, %v523
    %v4635 = vmul.f32 %v4379, %v524
    %v4636 = vmul.f32 %v4380, %v525
    %v4637 = vmul.f32 %v4381, %v526
    %v4638 = vmul.f32 %v4382, %v527
    %v4639 = vmul.f32 %v4383, %v528
    %v4640 = vmul.f32 %v4384, %v529
    %v4641 = vmul.f32 %v4385, %v530
    %v4642 = vmul.f32 %v4386, %v531
    %v4643 = vmul.f32 %v4387, %v532
    %v4644 = vmul.f32 %v4388, %v533
    %v4645 = vmul.f32 %v4389, %v534
    %v4646 = vmul.f32 %v4390, %v535
    %v4647 = vmul.f32 %v4391, %v536
    %v4648 = vmul.f32 %v4392, %v537
    %v4649 = vmul.f32 %v4393, %v538
    %v4650 = vmul.f32 %v4394, %v539
    %v4651 = vmul.f32 %v4395, %v540
    %v4652 = vmul.f32 %v4396, %v541
    %v4653 = vmul.f32 %v4397, %v542
    %v4654 = vmul.f32 %v4398, %v543
    %v4655 = vmul.f32 %v4399, %v544
    %v4656 = vmul.f32 %v4400, %v545
    %v4657 = vmul.f32 %v4401, %v546
    %v4658 = vmul.f32 %v4402, %v547
    %v4659 = vmul.f32 %v4403, %v548
    %v4660 = vmul.f32 %v4404, %v549
    %v4661 = vmul.f32 %v4405, %v550
    %v4662 = vmul.f32 %v4406, %v551
    %v4663 = vmul.f32 %v3895, %v3895
    %v4664 = vmul.f32 %v3896, %v3896
    %v4665 = vmul.f32 %v3897, %v3897
    %v4666 = vmul.f32 %v3898, %v3898
    %v4667 = vmul.f32 %v3899, %v3899
    %v4668 = vmul.f32 %v3900, %v3900
    %v4669 = vmul.f32 %v3901, %v3901
    %v4670 = vmul.f32 %v3902, %v3902
    %v4671 = vmul.f32 %v3903, %v3903
    %v4672 = vmul.f32 %v3904, %v3904
    %v4673 = vmul.f32 %v3905, %v3905
    %v4674 = vmul.f32 %v3906, %v3906
    %v4675 = vmul.f32 %v3907, %v3907
    %v4676 = vmul.f32 %v3908, %v3908
    %v4677 = vmul.f32 %v3909, %v3909
    %v4678 = vmul.f32 %v3910, %v3910
    %v4679 = vmul.f32 %v3911, %v3911
    %v4680 = vmul.f32 %v3912, %v3912
    %v4681 = vmul.f32 %v3913, %v3913
    %v4682 = vmul.f32 %v3914, %v3914
    %v4683 = vmul.f32 %v3915, %v3915
    %v4684 = vmul.f32 %v3916, %v3916
    %v4685 = vmul.f32 %v3917, %v3917
    %v4686 = vmul.f32 %v3918, %v3918
    %v4687 = vmul.f32 %v3919, %v3919
    %v4688 = vmul.f32 %v3920, %v3920
    %v4689 = vmul.f32 %v3921, %v3921
    %v4690 = vmul.f32 %v3922, %v3922
    %v4691 = vmul.f32 %v3923, %v3923
    %v4692 = vmul.f32 %v3924, %v3924
    %v4693 = vmul.f32 %v3925, %v3925
    %v4694 = vmul.f32 %v3926, %v3926
    %v4695 = vmul.f32 %v3927, %v3927
    %v4696 = vmul.f32 %v3928, %v3928
    %v4697 = vmul.f32 %v3929, %v3929
    %v4698 = vmul.f32 %v3930, %v3930
    %v4699 = vmul.f32 %v3931, %v3931
    %v4700 = vmul.f32 %v3932, %v3932
    %v4701 = vmul.f32 %v3933, %v3933
    %v4702 = vmul.f32 %v3934, %v3934
    %v4703 = vmul.f32 %v3935, %v3935
    %v4704 = vmul.f32 %v3936, %v3936
    %v4705 = vmul.f32 %v3937, %v3937
    %v4706 = vmul.f32 %v3938, %v3938
    %v4707 = vmul.f32 %v3939, %v3939
    %v4708 = vmul.f32 %v3940, %v3940
    %v4709 = vmul.f32 %v3941, %v3941
    %v4710 = vmul.f32 %v3942, %v3942
    %v4711 = vmul.f32 %v3943, %v3943
    %v4712 = vmul.f32 %v3944, %v3944
    %v4713 = vmul.f32 %v3945, %v3945
    %v4714 = vmul.f32 %v3946, %v3946
    %v4715 = vmul.f32 %v3947, %v3947
    %v4716 = vmul.f32 %v3948, %v3948
    %v4717 = vmul.f32 %v3949, %v3949
    %v4718 = vmul.f32 %v3950, %v3950
    %v4719 = vmul.f32 %v3951, %v3951
    %v4720 = vmul.f32 %v3952, %v3952
    %v4721 = vmul.f32 %v3953, %v3953
    %v4722 = vmul.f32 %v3954, %v3954
    %v4723 = vmul.f32 %v3955, %v3955
    %v4724 = vmul.f32 %v3956, %v3956
    %v4725 = vmul.f32 %v3957, %v3957
    %v4726 = vmul.f32 %v3958, %v3958
    %v4727 = vmul.f32 %v3959, %v3959
    %v4728 = vmul.f32 %v3960, %v3960
    %v4729 = vmul.f32 %v3961, %v3961
    %v4730 = vmul.f32 %v3962, %v3962
    %v4731 = vmul.f32 %v3963, %v3963
    %v4732 = vmul.f32 %v3964, %v3964
    %v4733 = vmul.f32 %v3965, %v3965
    %v4734 = vmul.f32 %v3966, %v3966
    %v4735 = vmul.f32 %v3967, %v3967
    %v4736 = vmul.f32 %v3968, %v3968
    %v4737 = vmul.f32 %v3969, %v3969
    %v4738 = vmul.f32 %v3970, %v3970
    %v4739 = vmul.f32 %v3971, %v3971
    %v4740 = vmul.f32 %v3972, %v3972
    %v4741 = vmul.f32 %v3973, %v3973
    %v4742 = vmul.f32 %v3974, %v3974
    %v4743 = vmul.f32 %v3975, %v3975
    %v4744 = vmul.f32 %v3976, %v3976
    %v4745 = vmul.f32 %v3977, %v3977
    %v4746 = vmul.f32 %v3978, %v3978
    %v4747 = vmul.f32 %v3979, %v3979
    %v4748 = vmul.f32 %v3980, %v3980
    %v4749 = vmul.f32 %v3981, %v3981
    %v4750 = vmul.f32 %v3982, %v3982
    %v4751 = vmul.f32 %v3983, %v3983
    %v4752 = vmul.f32 %v3984, %v3984
    %v4753 = vmul.f32 %v3985, %v3985
    %v4754 = vmul.f32 %v3986, %v3986
    %v4755 = vmul.f32 %v3987, %v3987
    %v4756 = vmul.f32 %v3988, %v3988
    %v4757 = vmul.f32 %v3989, %v3989
    %v4758 = vmul.f32 %v3990, %v3990
    %v4759 = vmul.f32 %v3991, %v3991
    %v4760 = vmul.f32 %v3992, %v3992
    %v4761 = vmul.f32 %v3993, %v3993
    %v4762 = vmul.f32 %v3994, %v3994
    %v4763 = vmul.f32 %v3995, %v3995
    %v4764 = vmul.f32 %v3996, %v3996
    %v4765 = vmul.f32 %v3997, %v3997
    %v4766 = vmul.f32 %v3998, %v3998
    %v4767 = vmul.f32 %v3999, %v3999
    %v4768 = vmul.f32 %v4000, %v4000
    %v4769 = vmul.f32 %v4001, %v4001
    %v4770 = vmul.f32 %v4002, %v4002
    %v4771 = vmul.f32 %v4003, %v4003
    %v4772 = vmul.f32 %v4004, %v4004
    %v4773 = vmul.f32 %v4005, %v4005
    %v4774 = vmul.f32 %v4006, %v4006
    %v4775 = vmul.f32 %v4007, %v4007
    %v4776 = vmul.f32 %v4008, %v4008
    %v4777 = vmul.f32 %v4009, %v4009
    %v4778 = vmul.f32 %v4010, %v4010
    %v4779 = vmul.f32 %v4011, %v4011
    %v4780 = vmul.f32 %v4012, %v4012
    %v4781 = vmul.f32 %v4013, %v4013
    %v4782 = vmul.f32 %v4014, %v4014
    %v4783 = vmul.f32 %v4015, %v4015
    %v4784 = vmul.f32 %v4016, %v4016
    %v4785 = vmul.f32 %v4017, %v4017
    %v4786 = vmul.f32 %v4018, %v4018
    %v4787 = vmul.f32 %v4019, %v4019
    %v4788 = vmul.f32 %v4020, %v4020
    %v4789 = vmul.f32 %v4021, %v4021
    %v4790 = vmul.f32 %v4022, %v4022
    %v4791 = vmul.f32 %v4023, %v4023
    %v4792 = vmul.f32 %v4024, %v4024
    %v4793 = vmul.f32 %v4025, %v4025
    %v4794 = vmul.f32 %v4026, %v4026
    %v4795 = vmul.f32 %v4027, %v4027
    %v4796 = vmul.f32 %v4028, %v4028
    %v4797 = vmul.f32 %v4029, %v4029
    %v4798 = vmul.f32 %v4030, %v4030
    %v4799 = vmul.f32 %v4031, %v4031
    %v4800 = vmul.f32 %v4032, %v4032
    %v4801 = vmul.f32 %v4033, %v4033
    %v4802 = vmul.f32 %v4034, %v4034
    %v4803 = vmul.f32 %v4035, %v4035
    %v4804 = vmul.f32 %v4036, %v4036
    %v4805 = vmul.f32 %v4037, %v4037
    %v4806 = vmul.f32 %v4038, %v4038
    %v4807 = vmul.f32 %v4039, %v4039
    %v4808 = vmul.f32 %v4040, %v4040
    %v4809 = vmul.f32 %v4041, %v4041
    %v4810 = vmul.f32 %v4042, %v4042
    %v4811 = vmul.f32 %v4043, %v4043
    %v4812 = vmul.f32 %v4044, %v4044
    %v4813 = vmul.f32 %v4045, %v4045
    %v4814 = vmul.f32 %v4046, %v4046
    %v4815 = vmul.f32 %v4047, %v4047
    %v4816 = vmul.f32 %v4048, %v4048
    %v4817 = vmul.f32 %v4049, %v4049
    %v4818 = vmul.f32 %v4050, %v4050
    %v4819 = vmul.f32 %v4051, %v4051
    %v4820 = vmul.f32 %v4052, %v4052
    %v4821 = vmul.f32 %v4053, %v4053
    %v4822 = vmul.f32 %v4054, %v4054
    %v4823 = vmul.f32 %v4055, %v4055
    %v4824 = vmul.f32 %v4056, %v4056
    %v4825 = vmul.f32 %v4057, %v4057
    %v4826 = vmul.f32 %v4058, %v4058
    %v4827 = vmul.f32 %v4059, %v4059
    %v4828 = vmul.f32 %v4060, %v4060
    %v4829 = vmul.f32 %v4061, %v4061
    %v4830 = vmul.f32 %v4062, %v4062
    %v4831 = vmul.f32 %v4063, %v4063
    %v4832 = vmul.f32 %v4064, %v4064
    %v4833 = vmul.f32 %v4065, %v4065
    %v4834 = vmul.f32 %v4066, %v4066
    %v4835 = vmul.f32 %v4067, %v4067
    %v4836 = vmul.f32 %v4068, %v4068
    %v4837 = vmul.f32 %v4069, %v4069
    %v4838 = vmul.f32 %v4070, %v4070
    %v4839 = vmul.f32 %v4071, %v4071
    %v4840 = vmul.f32 %v4072, %v4072
    %v4841 = vmul.f32 %v4073, %v4073
    %v4842 = vmul.f32 %v4074, %v4074
    %v4843 = vmul.f32 %v4075, %v4075
    %v4844 = vmul.f32 %v4076, %v4076
    %v4845 = vmul.f32 %v4077, %v4077
    %v4846 = vmul.f32 %v4078, %v4078
    %v4847 = vmul.f32 %v4079, %v4079
    %v4848 = vmul.f32 %v4080, %v4080
    %v4849 = vmul.f32 %v4081, %v4081
    %v4850 = vmul.f32 %v4082, %v4082
    %v4851 = vmul.f32 %v4083, %v4083
    %v4852 = vmul.f32 %v4084, %v4084
    %v4853 = vmul.f32 %v4085, %v4085
    %v4854 = vmul.f32 %v4086, %v4086
    %v4855 = vmul.f32 %v4087, %v4087
    %v4856 = vmul.f32 %v4088, %v4088
    %v4857 = vmul.f32 %v4089, %v4089
    %v4858 = vmul.f32 %v4090, %v4090
    %v4859 = vmul.f32 %v4091, %v4091
    %v4860 = vmul.f32 %v4092, %v4092
    %v4861 = vmul.f32 %v4093, %v4093
    %v4862 = vmul.f32 %v4094, %v4094
    %v4863 = vmul.f32 %v4095, %v4095
    %v4864 = vmul.f32 %v4096, %v4096
    %v4865 = vmul.f32 %v4097, %v4097
    %v4866 = vmul.f32 %v4098, %v4098
    %v4867 = vmul.f32 %v4099, %v4099
    %v4868 = vmul.f32 %v4100, %v4100
    %v4869 = vmul.f32 %v4101, %v4101
    %v4870 = vmul.f32 %v4102, %v4102
    %v4871 = vmul.f32 %v4103, %v4103
    %v4872 = vmul.f32 %v4104, %v4104
    %v4873 = vmul.f32 %v4105, %v4105
    %v4874 = vmul.f32 %v4106, %v4106
    %v4875 = vmul.f32 %v4107, %v4107
    %v4876 = vmul.f32 %v4108, %v4108
    %v4877 = vmul.f32 %v4109, %v4109
    %v4878 = vmul.f32 %v4110, %v4110
    %v4879 = vmul.f32 %v4111, %v4111
    %v4880 = vmul.f32 %v4112, %v4112
    %v4881 = vmul.f32 %v4113, %v4113
    %v4882 = vmul.f32 %v4114, %v4114
    %v4883 = vmul.f32 %v4115, %v4115
    %v4884 = vmul.f32 %v4116, %v4116
    %v4885 = vmul.f32 %v4117, %v4117
    %v4886 = vmul.f32 %v4118, %v4118
    %v4887 = vmul.f32 %v4119, %v4119
    %v4888 = vmul.f32 %v4120, %v4120
    %v4889 = vmul.f32 %v4121, %v4121
    %v4890 = vmul.f32 %v4122, %v4122
    %v4891 = vmul.f32 %v4123, %v4123
    %v4892 = vmul.f32 %v4124, %v4124
    %v4893 = vmul.f32 %v4125, %v4125
    %v4894 = vmul.f32 %v4126, %v4126
    %v4895 = vmul.f32 %v4127, %v4127
    %v4896 = vmul.f32 %v4128, %v4128
    %v4897 = vmul.f32 %v4129, %v4129
    %v4898 = vmul.f32 %v4130, %v4130
    %v4899 = vmul.f32 %v4131, %v4131
    %v4900 = vmul.f32 %v4132, %v4132
    %v4901 = vmul.f32 %v4133, %v4133
    %v4902 = vmul.f32 %v4134, %v4134
    %v4903 = vmul.f32 %v4135, %v4135
    %v4904 = vmul.f32 %v4136, %v4136
    %v4905 = vmul.f32 %v4137, %v4137
    %v4906 = vmul.f32 %v4138, %v4138
    %v4907 = vmul.f32 %v4139, %v4139
    %v4908 = vmul.f32 %v4140, %v4140
    %v4909 = vmul.f32 %v4141, %v4141
    %v4910 = vmul.f32 %v4142, %v4142
    %v4911 = vmul.f32 %v4143, %v4143
    %v4912 = vmul.f32 %v4144, %v4144
    %v4913 = vmul.f32 %v4145, %v4145
    %v4914 = vmul.f32 %v4146, %v4146
    %v4915 = vmul.f32 %v4147, %v4147
    %v4916 = vmul.f32 %v4148, %v4148
    %v4917 = vmul.f32 %v4149, %v4149
    %v4918 = vmul.f32 %v4150, %v4150
    %v4919 = vadd.f32 %v4663, %v4671
    %v4920 = vadd.f32 %v4919, %v4679
    %v4921 = vadd.f32 %v4920, %v4687
    %v4922 = vadd.f32 %v4921, %v4695
    %v4923 = vadd.f32 %v4922, %v4703
    %v4924 = vadd.f32 %v4923, %v4711
    %v4925 = vadd.f32 %v4924, %v4719
    %v4926 = vadd.f32 %v4925, %v4727
    %v4927 = vadd.f32 %v4926, %v4735
    %v4928 = vadd.f32 %v4927, %v4743
    %v4929 = vadd.f32 %v4928, %v4751
    %v4930 = vadd.f32 %v4929, %v4759
    %v4931 = vadd.f32 %v4930, %v4767
    %v4932 = vadd.f32 %v4931, %v4775
    %v4933 = vadd.f32 %v4932, %v4783
    %v4934 = vadd.f32 %v4933, %v4791
    %v4935 = vadd.f32 %v4934, %v4799
    %v4936 = vadd.f32 %v4935, %v4807
    %v4937 = vadd.f32 %v4936, %v4815
    %v4938 = vadd.f32 %v4937, %v4823
    %v4939 = vadd.f32 %v4938, %v4831
    %v4940 = vadd.f32 %v4939, %v4839
    %v4941 = vadd.f32 %v4940, %v4847
    %v4942 = vadd.f32 %v4941, %v4855
    %v4943 = vadd.f32 %v4942, %v4863
    %v4944 = vadd.f32 %v4943, %v4871
    %v4945 = vadd.f32 %v4944, %v4879
    %v4946 = vadd.f32 %v4945, %v4887
    %v4947 = vadd.f32 %v4946, %v4895
    %v4948 = vadd.f32 %v4947, %v4903
    %v4949 = vadd.f32 %v4948, %v4911
    %v4950 = vadd.f32 %v4664, %v4672
    %v4951 = vadd.f32 %v4950, %v4680
    %v4952 = vadd.f32 %v4951, %v4688
    %v4953 = vadd.f32 %v4952, %v4696
    %v4954 = vadd.f32 %v4953, %v4704
    %v4955 = vadd.f32 %v4954, %v4712
    %v4956 = vadd.f32 %v4955, %v4720
    %v4957 = vadd.f32 %v4956, %v4728
    %v4958 = vadd.f32 %v4957, %v4736
    %v4959 = vadd.f32 %v4958, %v4744
    %v4960 = vadd.f32 %v4959, %v4752
    %v4961 = vadd.f32 %v4960, %v4760
    %v4962 = vadd.f32 %v4961, %v4768
    %v4963 = vadd.f32 %v4962, %v4776
    %v4964 = vadd.f32 %v4963, %v4784
    %v4965 = vadd.f32 %v4964, %v4792
    %v4966 = vadd.f32 %v4965, %v4800
    %v4967 = vadd.f32 %v4966, %v4808
    %v4968 = vadd.f32 %v4967, %v4816
    %v4969 = vadd.f32 %v4968, %v4824
    %v4970 = vadd.f32 %v4969, %v4832
    %v4971 = vadd.f32 %v4970, %v4840
    %v4972 = vadd.f32 %v4971, %v4848
    %v4973 = vadd.f32 %v4972, %v4856
    %v4974 = vadd.f32 %v4973, %v4864
    %v4975 = vadd.f32 %v4974, %v4872
    %v4976 = vadd.f32 %v4975, %v4880
    %v4977 = vadd.f32 %v4976, %v4888
    %v4978 = vadd.f32 %v4977, %v4896
    %v4979 = vadd.f32 %v4978, %v4904
    %v4980 = vadd.f32 %v4979, %v4912
    %v4981 = vadd.f32 %v4665, %v4673
    %v4982 = vadd.f32 %v4981, %v4681
    %v4983 = vadd.f32 %v4982, %v4689
    %v4984 = vadd.f32 %v4983, %v4697
    %v4985 = vadd.f32 %v4984, %v4705
    %v4986 = vadd.f32 %v4985, %v4713
    %v4987 = vadd.f32 %v4986, %v4721
    %v4988 = vadd.f32 %v4987, %v4729
    %v4989 = vadd.f32 %v4988, %v4737
    %v4990 = vadd.f32 %v4989, %v4745
    %v4991 = vadd.f32 %v4990, %v4753
    %v4992 = vadd.f32 %v4991, %v4761
    %v4993 = vadd.f32 %v4992, %v4769
    %v4994 = vadd.f32 %v4993, %v4777
    %v4995 = vadd.f32 %v4994, %v4785
    %v4996 = vadd.f32 %v4995, %v4793
    %v4997 = vadd.f32 %v4996, %v4801
    %v4998 = vadd.f32 %v4997, %v4809
    %v4999 = vadd.f32 %v4998, %v4817
    %v5000 = vadd.f32 %v4999, %v4825
    %v5001 = vadd.f32 %v5000, %v4833
    %v5002 = vadd.f32 %v5001, %v4841
    %v5003 = vadd.f32 %v5002, %v4849
    %v5004 = vadd.f32 %v5003, %v4857
    %v5005 = vadd.f32 %v5004, %v4865
    %v5006 = vadd.f32 %v5005, %v4873
    %v5007 = vadd.f32 %v5006, %v4881
    %v5008 = vadd.f32 %v5007, %v4889
    %v5009 = vadd.f32 %v5008, %v4897
    %v5010 = vadd.f32 %v5009, %v4905
    %v5011 = vadd.f32 %v5010, %v4913
    %v5012 = vadd.f32 %v4666, %v4674
    %v5013 = vadd.f32 %v5012, %v4682
    %v5014 = vadd.f32 %v5013, %v4690
    %v5015 = vadd.f32 %v5014, %v4698
    %v5016 = vadd.f32 %v5015, %v4706
    %v5017 = vadd.f32 %v5016, %v4714
    %v5018 = vadd.f32 %v5017, %v4722
    %v5019 = vadd.f32 %v5018, %v4730
    %v5020 = vadd.f32 %v5019, %v4738
    %v5021 = vadd.f32 %v5020, %v4746
    %v5022 = vadd.f32 %v5021, %v4754
    %v5023 = vadd.f32 %v5022, %v4762
    %v5024 = vadd.f32 %v5023, %v4770
    %v5025 = vadd.f32 %v5024, %v4778
    %v5026 = vadd.f32 %v5025, %v4786
    %v5027 = vadd.f32 %v5026, %v4794
    %v5028 = vadd.f32 %v5027, %v4802
    %v5029 = vadd.f32 %v5028, %v4810
    %v5030 = vadd.f32 %v5029, %v4818
    %v5031 = vadd.f32 %v5030, %v4826
    %v5032 = vadd.f32 %v5031, %v4834
    %v5033 = vadd.f32 %v5032, %v4842
    %v5034 = vadd.f32 %v5033, %v4850
    %v5035 = vadd.f32 %v5034, %v4858
    %v5036 = vadd.f32 %v5035, %v4866
    %v5037 = vadd.f32 %v5036, %v4874
    %v5038 = vadd.f32 %v5037, %v4882
    %v5039 = vadd.f32 %v5038, %v4890
    %v5040 = vadd.f32 %v5039, %v4898
    %v5041 = vadd.f32 %v5040, %v4906
    %v5042 = vadd.f32 %v5041, %v4914
    %v5043 = vadd.f32 %v4667, %v4675
    %v5044 = vadd.f32 %v5043, %v4683
    %v5045 = vadd.f32 %v5044, %v4691
    %v5046 = vadd.f32 %v5045, %v4699
    %v5047 = vadd.f32 %v5046, %v4707
    %v5048 = vadd.f32 %v5047, %v4715
    %v5049 = vadd.f32 %v5048, %v4723
    %v5050 = vadd.f32 %v5049, %v4731
    %v5051 = vadd.f32 %v5050, %v4739
    %v5052 = vadd.f32 %v5051, %v4747
    %v5053 = vadd.f32 %v5052, %v4755
    %v5054 = vadd.f32 %v5053, %v4763
    %v5055 = vadd.f32 %v5054, %v4771
    %v5056 = vadd.f32 %v5055, %v4779
    %v5057 = vadd.f32 %v5056, %v4787
    %v5058 = vadd.f32 %v5057, %v4795
    %v5059 = vadd.f32 %v5058, %v4803
    %v5060 = vadd.f32 %v5059, %v4811
    %v5061 = vadd.f32 %v5060, %v4819
    %v5062 = vadd.f32 %v5061, %v4827
    %v5063 = vadd.f32 %v5062, %v4835
    %v5064 = vadd.f32 %v5063, %v4843
    %v5065 = vadd.f32 %v5064, %v4851
    %v5066 = vadd.f32 %v5065, %v4859
    %v5067 = vadd.f32 %v5066, %v4867
    %v5068 = vadd.f32 %v5067, %v4875
    %v5069 = vadd.f32 %v5068, %v4883
    %v5070 = vadd.f32 %v5069, %v4891
    %v5071 = vadd.f32 %v5070, %v4899
    %v5072 = vadd.f32 %v5071, %v4907
    %v5073 = vadd.f32 %v5072, %v4915
    %v5074 = vadd.f32 %v4668, %v4676
    %v5075 = vadd.f32 %v5074, %v4684
    %v5076 = vadd.f32 %v5075, %v4692
    %v5077 = vadd.f32 %v5076, %v4700
    %v5078 = vadd.f32 %v5077, %v4708
    %v5079 = vadd.f32 %v5078, %v4716
    %v5080 = vadd.f32 %v5079, %v4724
    %v5081 = vadd.f32 %v5080, %v4732
    %v5082 = vadd.f32 %v5081, %v4740
    %v5083 = vadd.f32 %v5082, %v4748
    %v5084 = vadd.f32 %v5083, %v4756
    %v5085 = vadd.f32 %v5084, %v4764
    %v5086 = vadd.f32 %v5085, %v4772
    %v5087 = vadd.f32 %v5086, %v4780
    %v5088 = vadd.f32 %v5087, %v4788
    %v5089 = vadd.f32 %v5088, %v4796
    %v5090 = vadd.f32 %v5089, %v4804
    %v5091 = vadd.f32 %v5090, %v4812
    %v5092 = vadd.f32 %v5091, %v4820
    %v5093 = vadd.f32 %v5092, %v4828
    %v5094 = vadd.f32 %v5093, %v4836
    %v5095 = vadd.f32 %v5094, %v4844
    %v5096 = vadd.f32 %v5095, %v4852
    %v5097 = vadd.f32 %v5096, %v4860
    %v5098 = vadd.f32 %v5097, %v4868
    %v5099 = vadd.f32 %v5098, %v4876
    %v5100 = vadd.f32 %v5099, %v4884
    %v5101 = vadd.f32 %v5100, %v4892
    %v5102 = vadd.f32 %v5101, %v4900
    %v5103 = vadd.f32 %v5102, %v4908
    %v5104 = vadd.f32 %v5103, %v4916
    %v5105 = vadd.f32 %v4669, %v4677
    %v5106 = vadd.f32 %v5105, %v4685
    %v5107 = vadd.f32 %v5106, %v4693
    %v5108 = vadd.f32 %v5107, %v4701
    %v5109 = vadd.f32 %v5108, %v4709
    %v5110 = vadd.f32 %v5109, %v4717
    %v5111 = vadd.f32 %v5110, %v4725
    %v5112 = vadd.f32 %v5111, %v4733
    %v5113 = vadd.f32 %v5112, %v4741
    %v5114 = vadd.f32 %v5113, %v4749
    %v5115 = vadd.f32 %v5114, %v4757
    %v5116 = vadd.f32 %v5115, %v4765
    %v5117 = vadd.f32 %v5116, %v4773
    %v5118 = vadd.f32 %v5117, %v4781
    %v5119 = vadd.f32 %v5118, %v4789
    %v5120 = vadd.f32 %v5119, %v4797
    %v5121 = vadd.f32 %v5120, %v4805
    %v5122 = vadd.f32 %v5121, %v4813
    %v5123 = vadd.f32 %v5122, %v4821
    %v5124 = vadd.f32 %v5123, %v4829
    %v5125 = vadd.f32 %v5124, %v4837
    %v5126 = vadd.f32 %v5125, %v4845
    %v5127 = vadd.f32 %v5126, %v4853
    %v5128 = vadd.f32 %v5127, %v4861
    %v5129 = vadd.f32 %v5128, %v4869
    %v5130 = vadd.f32 %v5129, %v4877
    %v5131 = vadd.f32 %v5130, %v4885
    %v5132 = vadd.f32 %v5131, %v4893
    %v5133 = vadd.f32 %v5132, %v4901
    %v5134 = vadd.f32 %v5133, %v4909
    %v5135 = vadd.f32 %v5134, %v4917
    %v5136 = vadd.f32 %v4670, %v4678
    %v5137 = vadd.f32 %v5136, %v4686
    %v5138 = vadd.f32 %v5137, %v4694
    %v5139 = vadd.f32 %v5138, %v4702
    %v5140 = vadd.f32 %v5139, %v4710
    %v5141 = vadd.f32 %v5140, %v4718
    %v5142 = vadd.f32 %v5141, %v4726
    %v5143 = vadd.f32 %v5142, %v4734
    %v5144 = vadd.f32 %v5143, %v4742
    %v5145 = vadd.f32 %v5144, %v4750
    %v5146 = vadd.f32 %v5145, %v4758
    %v5147 = vadd.f32 %v5146, %v4766
    %v5148 = vadd.f32 %v5147, %v4774
    %v5149 = vadd.f32 %v5148, %v4782
    %v5150 = vadd.f32 %v5149, %v4790
    %v5151 = vadd.f32 %v5150, %v4798
    %v5152 = vadd.f32 %v5151, %v4806
    %v5153 = vadd.f32 %v5152, %v4814
    %v5154 = vadd.f32 %v5153, %v4822
    %v5155 = vadd.f32 %v5154, %v4830
    %v5156 = vadd.f32 %v5155, %v4838
    %v5157 = vadd.f32 %v5156, %v4846
    %v5158 = vadd.f32 %v5157, %v4854
    %v5159 = vadd.f32 %v5158, %v4862
    %v5160 = vadd.f32 %v5159, %v4870
    %v5161 = vadd.f32 %v5160, %v4878
    %v5162 = vadd.f32 %v5161, %v4886
    %v5163 = vadd.f32 %v5162, %v4894
    %v5164 = vadd.f32 %v5163, %v4902
    %v5165 = vadd.f32 %v5164, %v4910
    %v5166 = vadd.f32 %v5165, %v4918
    %v5167 = vadd.f32 %v4949, %v5011
    %v5168 = vadd.f32 %v5167, %v5073
    %v5169 = vadd.f32 %v5168, %v5135
    %v5170 = vrot.slane %v5169, 4
    %v5171 = vadd.f32 %v5169, %v5170
    %v5172 = vrot.slane %v5171, 2
    %v5173 = vadd.f32 %v5171, %v5172
    %v5174 = vrot.slane %v5173, 1
    %v5175 = vadd.f32 %v5173, %v5174
    %v5176 = vadd.f32 %v4980, %v5042
    %v5177 = vadd.f32 %v5176, %v5104
    %v5178 = vadd.f32 %v5177, %v5166
    %v5179 = vrot.slane %v5178, 4
    %v5180 = vadd.f32 %v5178, %v5179
    %v5181 = vrot.slane %v5180, 2
    %v5182 = vadd.f32 %v5180, %v5181
    %v5183 = vrot.slane %v5182, 1
    %v5184 = vadd.f32 %v5182, %v5183
    %v5185 = vmul.f32 %v5175, 0.0009765625
    %v5186 = vmul.f32 %v5184, 0.0009765625
    %v5187 = vmul.f32 %v3895, %v4407
    %v5188 = vmul.f32 %v3896, %v4408
    %v5189 = vmul.f32 %v3897, %v4409
    %v5190 = vmul.f32 %v3898, %v4410
    %v5191 = vmul.f32 %v3899, %v4411
    %v5192 = vmul.f32 %v3900, %v4412
    %v5193 = vmul.f32 %v3901, %v4413
    %v5194 = vmul.f32 %v3902, %v4414
    %v5195 = vmul.f32 %v3903, %v4415
    %v5196 = vmul.f32 %v3904, %v4416
    %v5197 = vmul.f32 %v3905, %v4417
    %v5198 = vmul.f32 %v3906, %v4418
    %v5199 = vmul.f32 %v3907, %v4419
    %v5200 = vmul.f32 %v3908, %v4420
    %v5201 = vmul.f32 %v3909, %v4421
    %v5202 = vmul.f32 %v3910, %v4422
    %v5203 = vmul.f32 %v3911, %v4423
    %v5204 = vmul.f32 %v3912, %v4424
    %v5205 = vmul.f32 %v3913, %v4425
    %v5206 = vmul.f32 %v3914, %v4426
    %v5207 = vmul.f32 %v3915, %v4427
    %v5208 = vmul.f32 %v3916, %v4428
    %v5209 = vmul.f32 %v3917, %v4429
    %v5210 = vmul.f32 %v3918, %v4430
    %v5211 = vmul.f32 %v3919, %v4431
    %v5212 = vmul.f32 %v3920, %v4432
    %v5213 = vmul.f32 %v3921, %v4433
    %v5214 = vmul.f32 %v3922, %v4434
    %v5215 = vmul.f32 %v3923, %v4435
    %v5216 = vmul.f32 %v3924, %v4436
    %v5217 = vmul.f32 %v3925, %v4437
    %v5218 = vmul.f32 %v3926, %v4438
    %v5219 = vmul.f32 %v3927, %v4439
    %v5220 = vmul.f32 %v3928, %v4440
    %v5221 = vmul.f32 %v3929, %v4441
    %v5222 = vmul.f32 %v3930, %v4442
    %v5223 = vmul.f32 %v3931, %v4443
    %v5224 = vmul.f32 %v3932, %v4444
    %v5225 = vmul.f32 %v3933, %v4445
    %v5226 = vmul.f32 %v3934, %v4446
    %v5227 = vmul.f32 %v3935, %v4447
    %v5228 = vmul.f32 %v3936, %v4448
    %v5229 = vmul.f32 %v3937, %v4449
    %v5230 = vmul.f32 %v3938, %v4450
    %v5231 = vmul.f32 %v3939, %v4451
    %v5232 = vmul.f32 %v3940, %v4452
    %v5233 = vmul.f32 %v3941, %v4453
    %v5234 = vmul.f32 %v3942, %v4454
    %v5235 = vmul.f32 %v3943, %v4455
    %v5236 = vmul.f32 %v3944, %v4456
    %v5237 = vmul.f32 %v3945, %v4457
    %v5238 = vmul.f32 %v3946, %v4458
    %v5239 = vmul.f32 %v3947, %v4459
    %v5240 = vmul.f32 %v3948, %v4460
    %v5241 = vmul.f32 %v3949, %v4461
    %v5242 = vmul.f32 %v3950, %v4462
    %v5243 = vmul.f32 %v3951, %v4463
    %v5244 = vmul.f32 %v3952, %v4464
    %v5245 = vmul.f32 %v3953, %v4465
    %v5246 = vmul.f32 %v3954, %v4466
    %v5247 = vmul.f32 %v3955, %v4467
    %v5248 = vmul.f32 %v3956, %v4468
    %v5249 = vmul.f32 %v3957, %v4469
    %v5250 = vmul.f32 %v3958, %v4470
    %v5251 = vmul.f32 %v3959, %v4471
    %v5252 = vmul.f32 %v3960, %v4472
    %v5253 = vmul.f32 %v3961, %v4473
    %v5254 = vmul.f32 %v3962, %v4474
    %v5255 = vmul.f32 %v3963, %v4475
    %v5256 = vmul.f32 %v3964, %v4476
    %v5257 = vmul.f32 %v3965, %v4477
    %v5258 = vmul.f32 %v3966, %v4478
    %v5259 = vmul.f32 %v3967, %v4479
    %v5260 = vmul.f32 %v3968, %v4480
    %v5261 = vmul.f32 %v3969, %v4481
    %v5262 = vmul.f32 %v3970, %v4482
    %v5263 = vmul.f32 %v3971, %v4483
    %v5264 = vmul.f32 %v3972, %v4484
    %v5265 = vmul.f32 %v3973, %v4485
    %v5266 = vmul.f32 %v3974, %v4486
    %v5267 = vmul.f32 %v3975, %v4487
    %v5268 = vmul.f32 %v3976, %v4488
    %v5269 = vmul.f32 %v3977, %v4489
    %v5270 = vmul.f32 %v3978, %v4490
    %v5271 = vmul.f32 %v3979, %v4491
    %v5272 = vmul.f32 %v3980, %v4492
    %v5273 = vmul.f32 %v3981, %v4493
    %v5274 = vmul.f32 %v3982, %v4494
    %v5275 = vmul.f32 %v3983, %v4495
    %v5276 = vmul.f32 %v3984, %v4496
    %v5277 = vmul.f32 %v3985, %v4497
    %v5278 = vmul.f32 %v3986, %v4498
    %v5279 = vmul.f32 %v3987, %v4499
    %v5280 = vmul.f32 %v3988, %v4500
    %v5281 = vmul.f32 %v3989, %v4501
    %v5282 = vmul.f32 %v3990, %v4502
    %v5283 = vmul.f32 %v3991, %v4503
    %v5284 = vmul.f32 %v3992, %v4504
    %v5285 = vmul.f32 %v3993, %v4505
    %v5286 = vmul.f32 %v3994, %v4506
    %v5287 = vmul.f32 %v3995, %v4507
    %v5288 = vmul.f32 %v3996, %v4508
    %v5289 = vmul.f32 %v3997, %v4509
    %v5290 = vmul.f32 %v3998, %v4510
    %v5291 = vmul.f32 %v3999, %v4511
    %v5292 = vmul.f32 %v4000, %v4512
    %v5293 = vmul.f32 %v4001, %v4513
    %v5294 = vmul.f32 %v4002, %v4514
    %v5295 = vmul.f32 %v4003, %v4515
    %v5296 = vmul.f32 %v4004, %v4516
    %v5297 = vmul.f32 %v4005, %v4517
    %v5298 = vmul.f32 %v4006, %v4518
    %v5299 = vmul.f32 %v4007, %v4519
    %v5300 = vmul.f32 %v4008, %v4520
    %v5301 = vmul.f32 %v4009, %v4521
    %v5302 = vmul.f32 %v4010, %v4522
    %v5303 = vmul.f32 %v4011, %v4523
    %v5304 = vmul.f32 %v4012, %v4524
    %v5305 = vmul.f32 %v4013, %v4525
    %v5306 = vmul.f32 %v4014, %v4526
    %v5307 = vmul.f32 %v4015, %v4527
    %v5308 = vmul.f32 %v4016, %v4528
    %v5309 = vmul.f32 %v4017, %v4529
    %v5310 = vmul.f32 %v4018, %v4530
    %v5311 = vmul.f32 %v4019, %v4531
    %v5312 = vmul.f32 %v4020, %v4532
    %v5313 = vmul.f32 %v4021, %v4533
    %v5314 = vmul.f32 %v4022, %v4534
    %v5315 = vmul.f32 %v4023, %v4535
    %v5316 = vmul.f32 %v4024, %v4536
    %v5317 = vmul.f32 %v4025, %v4537
    %v5318 = vmul.f32 %v4026, %v4538
    %v5319 = vmul.f32 %v4027, %v4539
    %v5320 = vmul.f32 %v4028, %v4540
    %v5321 = vmul.f32 %v4029, %v4541
    %v5322 = vmul.f32 %v4030, %v4542
    %v5323 = vmul.f32 %v4031, %v4543
    %v5324 = vmul.f32 %v4032, %v4544
    %v5325 = vmul.f32 %v4033, %v4545
    %v5326 = vmul.f32 %v4034, %v4546
    %v5327 = vmul.f32 %v4035, %v4547
    %v5328 = vmul.f32 %v4036, %v4548
    %v5329 = vmul.f32 %v4037, %v4549
    %v5330 = vmul.f32 %v4038, %v4550
    %v5331 = vmul.f32 %v4039, %v4551
    %v5332 = vmul.f32 %v4040, %v4552
    %v5333 = vmul.f32 %v4041, %v4553
    %v5334 = vmul.f32 %v4042, %v4554
    %v5335 = vmul.f32 %v4043, %v4555
    %v5336 = vmul.f32 %v4044, %v4556
    %v5337 = vmul.f32 %v4045, %v4557
    %v5338 = vmul.f32 %v4046, %v4558
    %v5339 = vmul.f32 %v4047, %v4559
    %v5340 = vmul.f32 %v4048, %v4560
    %v5341 = vmul.f32 %v4049, %v4561
    %v5342 = vmul.f32 %v4050, %v4562
    %v5343 = vmul.f32 %v4051, %v4563
    %v5344 = vmul.f32 %v4052, %v4564
    %v5345 = vmul.f32 %v4053, %v4565
    %v5346 = vmul.f32 %v4054, %v4566
    %v5347 = vmul.f32 %v4055, %v4567
    %v5348 = vmul.f32 %v4056, %v4568
    %v5349 = vmul.f32 %v4057, %v4569
    %v5350 = vmul.f32 %v4058, %v4570
    %v5351 = vmul.f32 %v4059, %v4571
    %v5352 = vmul.f32 %v4060, %v4572
    %v5353 = vmul.f32 %v4061, %v4573
    %v5354 = vmul.f32 %v4062, %v4574
    %v5355 = vmul.f32 %v4063, %v4575
    %v5356 = vmul.f32 %v4064, %v4576
    %v5357 = vmul.f32 %v4065, %v4577
    %v5358 = vmul.f32 %v4066, %v4578
    %v5359 = vmul.f32 %v4067, %v4579
    %v5360 = vmul.f32 %v4068, %v4580
    %v5361 = vmul.f32 %v4069, %v4581
    %v5362 = vmul.f32 %v4070, %v4582
    %v5363 = vmul.f32 %v4071, %v4583
    %v5364 = vmul.f32 %v4072, %v4584
    %v5365 = vmul.f32 %v4073, %v4585
    %v5366 = vmul.f32 %v4074, %v4586
    %v5367 = vmul.f32 %v4075, %v4587
    %v5368 = vmul.f32 %v4076, %v4588
    %v5369 = vmul.f32 %v4077, %v4589
    %v5370 = vmul.f32 %v4078, %v4590
    %v5371 = vmul.f32 %v4079, %v4591
    %v5372 = vmul.f32 %v4080, %v4592
    %v5373 = vmul.f32 %v4081, %v4593
    %v5374 = vmul.f32 %v4082, %v4594
    %v5375 = vmul.f32 %v4083, %v4595
    %v5376 = vmul.f32 %v4084, %v4596
    %v5377 = vmul.f32 %v4085, %v4597
    %v5378 = vmul.f32 %v4086, %v4598
    %v5379 = vmul.f32 %v4087, %v4599
    %v5380 = vmul.f32 %v4088, %v4600
    %v5381 = vmul.f32 %v4089, %v4601
    %v5382 = vmul.f32 %v4090, %v4602
    %v5383 = vmul.f32 %v4091, %v4603
    %v5384 = vmul.f32 %v4092, %v4604
    %v5385 = vmul.f32 %v4093, %v4605
    %v5386 = vmul.f32 %v4094, %v4606
    %v5387 = vmul.f32 %v4095, %v4607
    %v5388 = vmul.f32 %v4096, %v4608
    %v5389 = vmul.f32 %v4097, %v4609
    %v5390 = vmul.f32 %v4098, %v4610
    %v5391 = vmul.f32 %v4099, %v4611
    %v5392 = vmul.f32 %v4100, %v4612
    %v5393 = vmul.f32 %v4101, %v4613
    %v5394 = vmul.f32 %v4102, %v4614
    %v5395 = vmul.f32 %v4103, %v4615
    %v5396 = vmul.f32 %v4104, %v4616
    %v5397 = vmul.f32 %v4105, %v4617
    %v5398 = vmul.f32 %v4106, %v4618
    %v5399 = vmul.f32 %v4107, %v4619
    %v5400 = vmul.f32 %v4108, %v4620
    %v5401 = vmul.f32 %v4109, %v4621
    %v5402 = vmul.f32 %v4110, %v4622
    %v5403 = vmul.f32 %v4111, %v4623
    %v5404 = vmul.f32 %v4112, %v4624
    %v5405 = vmul.f32 %v4113, %v4625
    %v5406 = vmul.f32 %v4114, %v4626
    %v5407 = vmul.f32 %v4115, %v4627
    %v5408 = vmul.f32 %v4116, %v4628
    %v5409 = vmul.f32 %v4117, %v4629
    %v5410 = vmul.f32 %v4118, %v4630
    %v5411 = vmul.f32 %v4119, %v4631
    %v5412 = vmul.f32 %v4120, %v4632
    %v5413 = vmul.f32 %v4121, %v4633
    %v5414 = vmul.f32 %v4122, %v4634
    %v5415 = vmul.f32 %v4123, %v4635
    %v5416 = vmul.f32 %v4124, %v4636
    %v5417 = vmul.f32 %v4125, %v4637
    %v5418 = vmul.f32 %v4126, %v4638
    %v5419 = vmul.f32 %v4127, %v4639
    %v5420 = vmul.f32 %v4128, %v4640
    %v5421 = vmul.f32 %v4129, %v4641
    %v5422 = vmul.f32 %v4130, %v4642
    %v5423 = vmul.f32 %v4131, %v4643
    %v5424 = vmul.f32 %v4132, %v4644
    %v5425 = vmul.f32 %v4133, %v4645
    %v5426 = vmul.f32 %v4134, %v4646
    %v5427 = vmul.f32 %v4135, %v4647
    %v5428 = vmul.f32 %v4136, %v4648
    %v5429 = vmul.f32 %v4137, %v4649
    %v5430 = vmul.f32 %v4138, %v4650
    %v5431 = vmul.f32 %v4139, %v4651
    %v5432 = vmul.f32 %v4140, %v4652
    %v5433 = vmul.f32 %v4141, %v4653
    %v5434 = vmul.f32 %v4142, %v4654
    %v5435 = vmul.f32 %v4143, %v4655
    %v5436 = vmul.f32 %v4144, %v4656
    %v5437 = vmul.f32 %v4145, %v4657
    %v5438 = vmul.f32 %v4146, %v4658
    %v5439 = vmul.f32 %v4147, %v4659
    %v5440 = vmul.f32 %v4148, %v4660
    %v5441 = vmul.f32 %v4149, %v4661
    %v5442 = vmul.f32 %v4150, %v4662
    %v5443 = vadd.f32 %v5187, %v5195
    %v5444 = vadd.f32 %v5443, %v5203
    %v5445 = vadd.f32 %v5444, %v5211
    %v5446 = vadd.f32 %v5445, %v5219
    %v5447 = vadd.f32 %v5446, %v5227
    %v5448 = vadd.f32 %v5447, %v5235
    %v5449 = vadd.f32 %v5448, %v5243
    %v5450 = vadd.f32 %v5449, %v5251
    %v5451 = vadd.f32 %v5450, %v5259
    %v5452 = vadd.f32 %v5451, %v5267
    %v5453 = vadd.f32 %v5452, %v5275
    %v5454 = vadd.f32 %v5453, %v5283
    %v5455 = vadd.f32 %v5454, %v5291
    %v5456 = vadd.f32 %v5455, %v5299
    %v5457 = vadd.f32 %v5456, %v5307
    %v5458 = vadd.f32 %v5457, %v5315
    %v5459 = vadd.f32 %v5458, %v5323
    %v5460 = vadd.f32 %v5459, %v5331
    %v5461 = vadd.f32 %v5460, %v5339
    %v5462 = vadd.f32 %v5461, %v5347
    %v5463 = vadd.f32 %v5462, %v5355
    %v5464 = vadd.f32 %v5463, %v5363
    %v5465 = vadd.f32 %v5464, %v5371
    %v5466 = vadd.f32 %v5465, %v5379
    %v5467 = vadd.f32 %v5466, %v5387
    %v5468 = vadd.f32 %v5467, %v5395
    %v5469 = vadd.f32 %v5468, %v5403
    %v5470 = vadd.f32 %v5469, %v5411
    %v5471 = vadd.f32 %v5470, %v5419
    %v5472 = vadd.f32 %v5471, %v5427
    %v5473 = vadd.f32 %v5472, %v5435
    %v5474 = vadd.f32 %v5188, %v5196
    %v5475 = vadd.f32 %v5474, %v5204
    %v5476 = vadd.f32 %v5475, %v5212
    %v5477 = vadd.f32 %v5476, %v5220
    %v5478 = vadd.f32 %v5477, %v5228
    %v5479 = vadd.f32 %v5478, %v5236
    %v5480 = vadd.f32 %v5479, %v5244
    %v5481 = vadd.f32 %v5480, %v5252
    %v5482 = vadd.f32 %v5481, %v5260
    %v5483 = vadd.f32 %v5482, %v5268
    %v5484 = vadd.f32 %v5483, %v5276
    %v5485 = vadd.f32 %v5484, %v5284
    %v5486 = vadd.f32 %v5485, %v5292
    %v5487 = vadd.f32 %v5486, %v5300
    %v5488 = vadd.f32 %v5487, %v5308
    %v5489 = vadd.f32 %v5488, %v5316
    %v5490 = vadd.f32 %v5489, %v5324
    %v5491 = vadd.f32 %v5490, %v5332
    %v5492 = vadd.f32 %v5491, %v5340
    %v5493 = vadd.f32 %v5492, %v5348
    %v5494 = vadd.f32 %v5493, %v5356
    %v5495 = vadd.f32 %v5494, %v5364
    %v5496 = vadd.f32 %v5495, %v5372
    %v5497 = vadd.f32 %v5496, %v5380
    %v5498 = vadd.f32 %v5497, %v5388
    %v5499 = vadd.f32 %v5498, %v5396
    %v5500 = vadd.f32 %v5499, %v5404
    %v5501 = vadd.f32 %v5500, %v5412
    %v5502 = vadd.f32 %v5501, %v5420
    %v5503 = vadd.f32 %v5502, %v5428
    %v5504 = vadd.f32 %v5503, %v5436
    %v5505 = vadd.f32 %v5189, %v5197
    %v5506 = vadd.f32 %v5505, %v5205
    %v5507 = vadd.f32 %v5506, %v5213
    %v5508 = vadd.f32 %v5507, %v5221
    %v5509 = vadd.f32 %v5508, %v5229
    %v5510 = vadd.f32 %v5509, %v5237
    %v5511 = vadd.f32 %v5510, %v5245
    %v5512 = vadd.f32 %v5511, %v5253
    %v5513 = vadd.f32 %v5512, %v5261
    %v5514 = vadd.f32 %v5513, %v5269
    %v5515 = vadd.f32 %v5514, %v5277
    %v5516 = vadd.f32 %v5515, %v5285
    %v5517 = vadd.f32 %v5516, %v5293
    %v5518 = vadd.f32 %v5517, %v5301
    %v5519 = vadd.f32 %v5518, %v5309
    %v5520 = vadd.f32 %v5519, %v5317
    %v5521 = vadd.f32 %v5520, %v5325
    %v5522 = vadd.f32 %v5521, %v5333
    %v5523 = vadd.f32 %v5522, %v5341
    %v5524 = vadd.f32 %v5523, %v5349
    %v5525 = vadd.f32 %v5524, %v5357
    %v5526 = vadd.f32 %v5525, %v5365
    %v5527 = vadd.f32 %v5526, %v5373
    %v5528 = vadd.f32 %v5527, %v5381
    %v5529 = vadd.f32 %v5528, %v5389
    %v5530 = vadd.f32 %v5529, %v5397
    %v5531 = vadd.f32 %v5530, %v5405
    %v5532 = vadd.f32 %v5531, %v5413
    %v5533 = vadd.f32 %v5532, %v5421
    %v5534 = vadd.f32 %v5533, %v5429
    %v5535 = vadd.f32 %v5534, %v5437
    %v5536 = vadd.f32 %v5190, %v5198
    %v5537 = vadd.f32 %v5536, %v5206
    %v5538 = vadd.f32 %v5537, %v5214
    %v5539 = vadd.f32 %v5538, %v5222
    %v5540 = vadd.f32 %v5539, %v5230
    %v5541 = vadd.f32 %v5540, %v5238
    %v5542 = vadd.f32 %v5541, %v5246
    %v5543 = vadd.f32 %v5542, %v5254
    %v5544 = vadd.f32 %v5543, %v5262
    %v5545 = vadd.f32 %v5544, %v5270
    %v5546 = vadd.f32 %v5545, %v5278
    %v5547 = vadd.f32 %v5546, %v5286
    %v5548 = vadd.f32 %v5547, %v5294
    %v5549 = vadd.f32 %v5548, %v5302
    %v5550 = vadd.f32 %v5549, %v5310
    %v5551 = vadd.f32 %v5550, %v5318
    %v5552 = vadd.f32 %v5551, %v5326
    %v5553 = vadd.f32 %v5552, %v5334
    %v5554 = vadd.f32 %v5553, %v5342
    %v5555 = vadd.f32 %v5554, %v5350
    %v5556 = vadd.f32 %v5555, %v5358
    %v5557 = vadd.f32 %v5556, %v5366
    %v5558 = vadd.f32 %v5557, %v5374
    %v5559 = vadd.f32 %v5558, %v5382
    %v5560 = vadd.f32 %v5559, %v5390
    %v5561 = vadd.f32 %v5560, %v5398
    %v5562 = vadd.f32 %v5561, %v5406
    %v5563 = vadd.f32 %v5562, %v5414
    %v5564 = vadd.f32 %v5563, %v5422
    %v5565 = vadd.f32 %v5564, %v5430
    %v5566 = vadd.f32 %v5565, %v5438
    %v5567 = vadd.f32 %v5191, %v5199
    %v5568 = vadd.f32 %v5567, %v5207
    %v5569 = vadd.f32 %v5568, %v5215
    %v5570 = vadd.f32 %v5569, %v5223
    %v5571 = vadd.f32 %v5570, %v5231
    %v5572 = vadd.f32 %v5571, %v5239
    %v5573 = vadd.f32 %v5572, %v5247
    %v5574 = vadd.f32 %v5573, %v5255
    %v5575 = vadd.f32 %v5574, %v5263
    %v5576 = vadd.f32 %v5575, %v5271
    %v5577 = vadd.f32 %v5576, %v5279
    %v5578 = vadd.f32 %v5577, %v5287
    %v5579 = vadd.f32 %v5578, %v5295
    %v5580 = vadd.f32 %v5579, %v5303
    %v5581 = vadd.f32 %v5580, %v5311
    %v5582 = vadd.f32 %v5581, %v5319
    %v5583 = vadd.f32 %v5582, %v5327
    %v5584 = vadd.f32 %v5583, %v5335
    %v5585 = vadd.f32 %v5584, %v5343
    %v5586 = vadd.f32 %v5585, %v5351
    %v5587 = vadd.f32 %v5586, %v5359
    %v5588 = vadd.f32 %v5587, %v5367
    %v5589 = vadd.f32 %v5588, %v5375
    %v5590 = vadd.f32 %v5589, %v5383
    %v5591 = vadd.f32 %v5590, %v5391
    %v5592 = vadd.f32 %v5591, %v5399
    %v5593 = vadd.f32 %v5592, %v5407
    %v5594 = vadd.f32 %v5593, %v5415
    %v5595 = vadd.f32 %v5594, %v5423
    %v5596 = vadd.f32 %v5595, %v5431
    %v5597 = vadd.f32 %v5596, %v5439
    %v5598 = vadd.f32 %v5192, %v5200
    %v5599 = vadd.f32 %v5598, %v5208
    %v5600 = vadd.f32 %v5599, %v5216
    %v5601 = vadd.f32 %v5600, %v5224
    %v5602 = vadd.f32 %v5601, %v5232
    %v5603 = vadd.f32 %v5602, %v5240
    %v5604 = vadd.f32 %v5603, %v5248
    %v5605 = vadd.f32 %v5604, %v5256
    %v5606 = vadd.f32 %v5605, %v5264
    %v5607 = vadd.f32 %v5606, %v5272
    %v5608 = vadd.f32 %v5607, %v5280
    %v5609 = vadd.f32 %v5608, %v5288
    %v5610 = vadd.f32 %v5609, %v5296
    %v5611 = vadd.f32 %v5610, %v5304
    %v5612 = vadd.f32 %v5611, %v5312
    %v5613 = vadd.f32 %v5612, %v5320
    %v5614 = vadd.f32 %v5613, %v5328
    %v5615 = vadd.f32 %v5614, %v5336
    %v5616 = vadd.f32 %v5615, %v5344
    %v5617 = vadd.f32 %v5616, %v5352
    %v5618 = vadd.f32 %v5617, %v5360
    %v5619 = vadd.f32 %v5618, %v5368
    %v5620 = vadd.f32 %v5619, %v5376
    %v5621 = vadd.f32 %v5620, %v5384
    %v5622 = vadd.f32 %v5621, %v5392
    %v5623 = vadd.f32 %v5622, %v5400
    %v5624 = vadd.f32 %v5623, %v5408
    %v5625 = vadd.f32 %v5624, %v5416
    %v5626 = vadd.f32 %v5625, %v5424
    %v5627 = vadd.f32 %v5626, %v5432
    %v5628 = vadd.f32 %v5627, %v5440
    %v5629 = vadd.f32 %v5193, %v5201
    %v5630 = vadd.f32 %v5629, %v5209
    %v5631 = vadd.f32 %v5630, %v5217
    %v5632 = vadd.f32 %v5631, %v5225
    %v5633 = vadd.f32 %v5632, %v5233
    %v5634 = vadd.f32 %v5633, %v5241
    %v5635 = vadd.f32 %v5634, %v5249
    %v5636 = vadd.f32 %v5635, %v5257
    %v5637 = vadd.f32 %v5636, %v5265
    %v5638 = vadd.f32 %v5637, %v5273
    %v5639 = vadd.f32 %v5638, %v5281
    %v5640 = vadd.f32 %v5639, %v5289
    %v5641 = vadd.f32 %v5640, %v5297
    %v5642 = vadd.f32 %v5641, %v5305
    %v5643 = vadd.f32 %v5642, %v5313
    %v5644 = vadd.f32 %v5643, %v5321
    %v5645 = vadd.f32 %v5644, %v5329
    %v5646 = vadd.f32 %v5645, %v5337
    %v5647 = vadd.f32 %v5646, %v5345
    %v5648 = vadd.f32 %v5647, %v5353
    %v5649 = vadd.f32 %v5648, %v5361
    %v5650 = vadd.f32 %v5649, %v5369
    %v5651 = vadd.f32 %v5650, %v5377
    %v5652 = vadd.f32 %v5651, %v5385
    %v5653 = vadd.f32 %v5652, %v5393
    %v5654 = vadd.f32 %v5653, %v5401
    %v5655 = vadd.f32 %v5654, %v5409
    %v5656 = vadd.f32 %v5655, %v5417
    %v5657 = vadd.f32 %v5656, %v5425
    %v5658 = vadd.f32 %v5657, %v5433
    %v5659 = vadd.f32 %v5658, %v5441
    %v5660 = vadd.f32 %v5194, %v5202
    %v5661 = vadd.f32 %v5660, %v5210
    %v5662 = vadd.f32 %v5661, %v5218
    %v5663 = vadd.f32 %v5662, %v5226
    %v5664 = vadd.f32 %v5663, %v5234
    %v5665 = vadd.f32 %v5664, %v5242
    %v5666 = vadd.f32 %v5665, %v5250
    %v5667 = vadd.f32 %v5666, %v5258
    %v5668 = vadd.f32 %v5667, %v5266
    %v5669 = vadd.f32 %v5668, %v5274
    %v5670 = vadd.f32 %v5669, %v5282
    %v5671 = vadd.f32 %v5670, %v5290
    %v5672 = vadd.f32 %v5671, %v5298
    %v5673 = vadd.f32 %v5672, %v5306
    %v5674 = vadd.f32 %v5673, %v5314
    %v5675 = vadd.f32 %v5674, %v5322
    %v5676 = vadd.f32 %v5675, %v5330
    %v5677 = vadd.f32 %v5676, %v5338
    %v5678 = vadd.f32 %v5677, %v5346
    %v5679 = vadd.f32 %v5678, %v5354
    %v5680 = vadd.f32 %v5679, %v5362
    %v5681 = vadd.f32 %v5680, %v5370
    %v5682 = vadd.f32 %v5681, %v5378
    %v5683 = vadd.f32 %v5682, %v5386
    %v5684 = vadd.f32 %v5683, %v5394
    %v5685 = vadd.f32 %v5684, %v5402
    %v5686 = vadd.f32 %v5685, %v5410
    %v5687 = vadd.f32 %v5686, %v5418
    %v5688 = vadd.f32 %v5687, %v5426
    %v5689 = vadd.f32 %v5688, %v5434
    %v5690 = vadd.f32 %v5689, %v5442
    %v5691 = vadd.f32 %v5473, %v5535
    %v5692 = vadd.f32 %v5691, %v5597
    %v5693 = vadd.f32 %v5692, %v5659
    %v5694 = vrot.slane %v5693, 4
    %v5695 = vadd.f32 %v5693, %v5694
    %v5696 = vrot.slane %v5695, 2
    %v5697 = vadd.f32 %v5695, %v5696
    %v5698 = vrot.slane %v5697, 1
    %v5699 = vadd.f32 %v5697, %v5698
    %v5700 = vadd.f32 %v5504, %v5566
    %v5701 = vadd.f32 %v5700, %v5628
    %v5702 = vadd.f32 %v5701, %v5690
    %v5703 = vrot.slane %v5702, 4
    %v5704 = vadd.f32 %v5702, %v5703
    %v5705 = vrot.slane %v5704, 2
    %v5706 = vadd.f32 %v5704, %v5705
    %v5707 = vrot.slane %v5706, 1
    %v5708 = vadd.f32 %v5706, %v5707
    %v5709 = vmul.f32 %v5699, 0.0009765625
    %v5710 = vmul.f32 %v5708, 0.0009765625
    %v5711 = vmul.f32 %v4407, %v4407
    %v5712 = vmul.f32 %v4408, %v4408
    %v5713 = vmul.f32 %v4409, %v4409
    %v5714 = vmul.f32 %v4410, %v4410
    %v5715 = vmul.f32 %v4411, %v4411
    %v5716 = vmul.f32 %v4412, %v4412
    %v5717 = vmul.f32 %v4413, %v4413
    %v5718 = vmul.f32 %v4414, %v4414
    %v5719 = vmul.f32 %v4415, %v4415
    %v5720 = vmul.f32 %v4416, %v4416
    %v5721 = vmul.f32 %v4417, %v4417
    %v5722 = vmul.f32 %v4418, %v4418
    %v5723 = vmul.f32 %v4419, %v4419
    %v5724 = vmul.f32 %v4420, %v4420
    %v5725 = vmul.f32 %v4421, %v4421
    %v5726 = vmul.f32 %v4422, %v4422
    %v5727 = vmul.f32 %v4423, %v4423
    %v5728 = vmul.f32 %v4424, %v4424
    %v5729 = vmul.f32 %v4425, %v4425
    %v5730 = vmul.f32 %v4426, %v4426
    %v5731 = vmul.f32 %v4427, %v4427
    %v5732 = vmul.f32 %v4428, %v4428
    %v5733 = vmul.f32 %v4429, %v4429
    %v5734 = vmul.f32 %v4430, %v4430
    %v5735 = vmul.f32 %v4431, %v4431
    %v5736 = vmul.f32 %v4432, %v4432
    %v5737 = vmul.f32 %v4433, %v4433
    %v5738 = vmul.f32 %v4434, %v4434
    %v5739 = vmul.f32 %v4435, %v4435
    %v5740 = vmul.f32 %v4436, %v4436
    %v5741 = vmul.f32 %v4437, %v4437
    %v5742 = vmul.f32 %v4438, %v4438
    %v5743 = vmul.f32 %v4439, %v4439
    %v5744 = vmul.f32 %v4440, %v4440
    %v5745 = vmul.f32 %v4441, %v4441
    %v5746 = vmul.f32 %v4442, %v4442
    %v5747 = vmul.f32 %v4443, %v4443
    %v5748 = vmul.f32 %v4444, %v4444
    %v5749 = vmul.f32 %v4445, %v4445
    %v5750 = vmul.f32 %v4446, %v4446
    %v5751 = vmul.f32 %v4447, %v4447
    %v5752 = vmul.f32 %v4448, %v4448
    %v5753 = vmul.f32 %v4449, %v4449
    %v5754 = vmul.f32 %v4450, %v4450
    %v5755 = vmul.f32 %v4451, %v4451
    %v5756 = vmul.f32 %v4452, %v4452
    %v5757 = vmul.f32 %v4453, %v4453
    %v5758 = vmul.f32 %v4454, %v4454
    %v5759 = vmul.f32 %v4455, %v4455
    %v5760 = vmul.f32 %v4456, %v4456
    %v5761 = vmul.f32 %v4457, %v4457
    %v5762 = vmul.f32 %v4458, %v4458
    %v5763 = vmul.f32 %v4459, %v4459
    %v5764 = vmul.f32 %v4460, %v4460
    %v5765 = vmul.f32 %v4461, %v4461
    %v5766 = vmul.f32 %v4462, %v4462
    %v5767 = vmul.f32 %v4463, %v4463
    %v5768 = vmul.f32 %v4464, %v4464
    %v5769 = vmul.f32 %v4465, %v4465
    %v5770 = vmul.f32 %v4466, %v4466
    %v5771 = vmul.f32 %v4467, %v4467
    %v5772 = vmul.f32 %v4468, %v4468
    %v5773 = vmul.f32 %v4469, %v4469
    %v5774 = vmul.f32 %v4470, %v4470
    %v5775 = vmul.f32 %v4471, %v4471
    %v5776 = vmul.f32 %v4472, %v4472
    %v5777 = vmul.f32 %v4473, %v4473
    %v5778 = vmul.f32 %v4474, %v4474
    %v5779 = vmul.f32 %v4475, %v4475
    %v5780 = vmul.f32 %v4476, %v4476
    %v5781 = vmul.f32 %v4477, %v4477
    %v5782 = vmul.f32 %v4478, %v4478
    %v5783 = vmul.f32 %v4479, %v4479
    %v5784 = vmul.f32 %v4480, %v4480
    %v5785 = vmul.f32 %v4481, %v4481
    %v5786 = vmul.f32 %v4482, %v4482
    %v5787 = vmul.f32 %v4483, %v4483
    %v5788 = vmul.f32 %v4484, %v4484
    %v5789 = vmul.f32 %v4485, %v4485
    %v5790 = vmul.f32 %v4486, %v4486
    %v5791 = vmul.f32 %v4487, %v4487
    %v5792 = vmul.f32 %v4488, %v4488
    %v5793 = vmul.f32 %v4489, %v4489
    %v5794 = vmul.f32 %v4490, %v4490
    %v5795 = vmul.f32 %v4491, %v4491
    %v5796 = vmul.f32 %v4492, %v4492
    %v5797 = vmul.f32 %v4493, %v4493
    %v5798 = vmul.f32 %v4494, %v4494
    %v5799 = vmul.f32 %v4495, %v4495
    %v5800 = vmul.f32 %v4496, %v4496
    %v5801 = vmul.f32 %v4497, %v4497
    %v5802 = vmul.f32 %v4498, %v4498
    %v5803 = vmul.f32 %v4499, %v4499
    %v5804 = vmul.f32 %v4500, %v4500
    %v5805 = vmul.f32 %v4501, %v4501
    %v5806 = vmul.f32 %v4502, %v4502
    %v5807 = vmul.f32 %v4503, %v4503
    %v5808 = vmul.f32 %v4504, %v4504
    %v5809 = vmul.f32 %v4505, %v4505
    %v5810 = vmul.f32 %v4506, %v4506
    %v5811 = vmul.f32 %v4507, %v4507
    %v5812 = vmul.f32 %v4508, %v4508
    %v5813 = vmul.f32 %v4509, %v4509
    %v5814 = vmul.f32 %v4510, %v4510
    %v5815 = vmul.f32 %v4511, %v4511
    %v5816 = vmul.f32 %v4512, %v4512
    %v5817 = vmul.f32 %v4513, %v4513
    %v5818 = vmul.f32 %v4514, %v4514
    %v5819 = vmul.f32 %v4515, %v4515
    %v5820 = vmul.f32 %v4516, %v4516
    %v5821 = vmul.f32 %v4517, %v4517
    %v5822 = vmul.f32 %v4518, %v4518
    %v5823 = vmul.f32 %v4519, %v4519
    %v5824 = vmul.f32 %v4520, %v4520
    %v5825 = vmul.f32 %v4521, %v4521
    %v5826 = vmul.f32 %v4522, %v4522
    %v5827 = vmul.f32 %v4523, %v4523
    %v5828 = vmul.f32 %v4524, %v4524
    %v5829 = vmul.f32 %v4525, %v4525
    %v5830 = vmul.f32 %v4526, %v4526
    %v5831 = vmul.f32 %v4527, %v4527
    %v5832 = vmul.f32 %v4528, %v4528
    %v5833 = vmul.f32 %v4529, %v4529
    %v5834 = vmul.f32 %v4530, %v4530
    %v5835 = vmul.f32 %v4531, %v4531
    %v5836 = vmul.f32 %v4532, %v4532
    %v5837 = vmul.f32 %v4533, %v4533
    %v5838 = vmul.f32 %v4534, %v4534
    %v5839 = vmul.f32 %v4535, %v4535
    %v5840 = vmul.f32 %v4536, %v4536
    %v5841 = vmul.f32 %v4537, %v4537
    %v5842 = vmul.f32 %v4538, %v4538
    %v5843 = vmul.f32 %v4539, %v4539
    %v5844 = vmul.f32 %v4540, %v4540
    %v5845 = vmul.f32 %v4541, %v4541
    %v5846 = vmul.f32 %v4542, %v4542
    %v5847 = vmul.f32 %v4543, %v4543
    %v5848 = vmul.f32 %v4544, %v4544
    %v5849 = vmul.f32 %v4545, %v4545
    %v5850 = vmul.f32 %v4546, %v4546
    %v5851 = vmul.f32 %v4547, %v4547
    %v5852 = vmul.f32 %v4548, %v4548
    %v5853 = vmul.f32 %v4549, %v4549
    %v5854 = vmul.f32 %v4550, %v4550
    %v5855 = vmul.f32 %v4551, %v4551
    %v5856 = vmul.f32 %v4552, %v4552
    %v5857 = vmul.f32 %v4553, %v4553
    %v5858 = vmul.f32 %v4554, %v4554
    %v5859 = vmul.f32 %v4555, %v4555
    %v5860 = vmul.f32 %v4556, %v4556
    %v5861 = vmul.f32 %v4557, %v4557
    %v5862 = vmul.f32 %v4558, %v4558
    %v5863 = vmul.f32 %v4559, %v4559
    %v5864 = vmul.f32 %v4560, %v4560
    %v5865 = vmul.f32 %v4561, %v4561
    %v5866 = vmul.f32 %v4562, %v4562
    %v5867 = vmul.f32 %v4563, %v4563
    %v5868 = vmul.f32 %v4564, %v4564
    %v5869 = vmul.f32 %v4565, %v4565
    %v5870 = vmul.f32 %v4566, %v4566
    %v5871 = vmul.f32 %v4567, %v4567
    %v5872 = vmul.f32 %v4568, %v4568
    %v5873 = vmul.f32 %v4569, %v4569
    %v5874 = vmul.f32 %v4570, %v4570
    %v5875 = vmul.f32 %v4571, %v4571
    %v5876 = vmul.f32 %v4572, %v4572
    %v5877 = vmul.f32 %v4573, %v4573
    %v5878 = vmul.f32 %v4574, %v4574
    %v5879 = vmul.f32 %v4575, %v4575
    %v5880 = vmul.f32 %v4576, %v4576
    %v5881 = vmul.f32 %v4577, %v4577
    %v5882 = vmul.f32 %v4578, %v4578
    %v5883 = vmul.f32 %v4579, %v4579
    %v5884 = vmul.f32 %v4580, %v4580
    %v5885 = vmul.f32 %v4581, %v4581
    %v5886 = vmul.f32 %v4582, %v4582
    %v5887 = vmul.f32 %v4583, %v4583
    %v5888 = vmul.f32 %v4584, %v4584
    %v5889 = vmul.f32 %v4585, %v4585
    %v5890 = vmul.f32 %v4586, %v4586
    %v5891 = vmul.f32 %v4587, %v4587
    %v5892 = vmul.f32 %v4588, %v4588
    %v5893 = vmul.f32 %v4589, %v4589
    %v5894 = vmul.f32 %v4590, %v4590
    %v5895 = vmul.f32 %v4591, %v4591
    %v5896 = vmul.f32 %v4592, %v4592
    %v5897 = vmul.f32 %v4593, %v4593
    %v5898 = vmul.f32 %v4594, %v4594
    %v5899 = vmul.f32 %v4595, %v4595
    %v5900 = vmul.f32 %v4596, %v4596
    %v5901 = vmul.f32 %v4597, %v4597
    %v5902 = vmul.f32 %v4598, %v4598
    %v5903 = vmul.f32 %v4599, %v4599
    %v5904 = vmul.f32 %v4600, %v4600
    %v5905 = vmul.f32 %v4601, %v4601
    %v5906 = vmul.f32 %v4602, %v4602
    %v5907 = vmul.f32 %v4603, %v4603
    %v5908 = vmul.f32 %v4604, %v4604
    %v5909 = vmul.f32 %v4605, %v4605
    %v5910 = vmul.f32 %v4606, %v4606
    %v5911 = vmul.f32 %v4607, %v4607
    %v5912 = vmul.f32 %v4608, %v4608
    %v5913 = vmul.f32 %v4609, %v4609
    %v5914 = vmul.f32 %v4610, %v4610
    %v5915 = vmul.f32 %v4611, %v4611
    %v5916 = vmul.f32 %v4612, %v4612
    %v5917 = vmul.f32 %v4613, %v4613
    %v5918 = vmul.f32 %v4614, %v4614
    %v5919 = vmul.f32 %v4615, %v4615
    %v5920 = vmul.f32 %v4616, %v4616
    %v5921 = vmul.f32 %v4617, %v4617
    %v5922 = vmul.f32 %v4618, %v4618
    %v5923 = vmul.f32 %v4619, %v4619
    %v5924 = vmul.f32 %v4620, %v4620
    %v5925 = vmul.f32 %v4621, %v4621
    %v5926 = vmul.f32 %v4622, %v4622
    %v5927 = vmul.f32 %v4623, %v4623
    %v5928 = vmul.f32 %v4624, %v4624
    %v5929 = vmul.f32 %v4625, %v4625
    %v5930 = vmul.f32 %v4626, %v4626
    %v5931 = vmul.f32 %v4627, %v4627
    %v5932 = vmul.f32 %v4628, %v4628
    %v5933 = vmul.f32 %v4629, %v4629
    %v5934 = vmul.f32 %v4630, %v4630
    %v5935 = vmul.f32 %v4631, %v4631
    %v5936 = vmul.f32 %v4632, %v4632
    %v5937 = vmul.f32 %v4633, %v4633
    %v5938 = vmul.f32 %v4634, %v4634
    %v5939 = vmul.f32 %v4635, %v4635
    %v5940 = vmul.f32 %v4636, %v4636
    %v5941 = vmul.f32 %v4637, %v4637
    %v5942 = vmul.f32 %v4638, %v4638
    %v5943 = vmul.f32 %v4639, %v4639
    %v5944 = vmul.f32 %v4640, %v4640
    %v5945 = vmul.f32 %v4641, %v4641
    %v5946 = vmul.f32 %v4642, %v4642
    %v5947 = vmul.f32 %v4643, %v4643
    %v5948 = vmul.f32 %v4644, %v4644
    %v5949 = vmul.f32 %v4645, %v4645
    %v5950 = vmul.f32 %v4646, %v4646
    %v5951 = vmul.f32 %v4647, %v4647
    %v5952 = vmul.f32 %v4648, %v4648
    %v5953 = vmul.f32 %v4649, %v4649
    %v5954 = vmul.f32 %v4650, %v4650
    %v5955 = vmul.f32 %v4651, %v4651
    %v5956 = vmul.f32 %v4652, %v4652
    %v5957 = vmul.f32 %v4653, %v4653
    %v5958 = vmul.f32 %v4654, %v4654
    %v5959 = vmul.f32 %v4655, %v4655
    %v5960 = vmul.f32 %v4656, %v4656
    %v5961 = vmul.f32 %v4657, %v4657
    %v5962 = vmul.f32 %v4658, %v4658
    %v5963 = vmul.f32 %v4659, %v4659
    %v5964 = vmul.f32 %v4660, %v4660
    %v5965 = vmul.f32 %v4661, %v4661
    %v5966 = vmul.f32 %v4662, %v4662
    %v5967 = vadd.f32 %v5711, %v5719
    %v5968 = vadd.f32 %v5967, %v5727
    %v5969 = vadd.f32 %v5968, %v5735
    %v5970 = vadd.f32 %v5969, %v5743
    %v5971 = vadd.f32 %v5970, %v5751
    %v5972 = vadd.f32 %v5971, %v5759
    %v5973 = vadd.f32 %v5972, %v5767
    %v5974 = vadd.f32 %v5973, %v5775
    %v5975 = vadd.f32 %v5974, %v5783
    %v5976 = vadd.f32 %v5975, %v5791
    %v5977 = vadd.f32 %v5976, %v5799
    %v5978 = vadd.f32 %v5977, %v5807
    %v5979 = vadd.f32 %v5978, %v5815
    %v5980 = vadd.f32 %v5979, %v5823
    %v5981 = vadd.f32 %v5980, %v5831
    %v5982 = vadd.f32 %v5981, %v5839
    %v5983 = vadd.f32 %v5982, %v5847
    %v5984 = vadd.f32 %v5983, %v5855
    %v5985 = vadd.f32 %v5984, %v5863
    %v5986 = vadd.f32 %v5985, %v5871
    %v5987 = vadd.f32 %v5986, %v5879
    %v5988 = vadd.f32 %v5987, %v5887
    %v5989 = vadd.f32 %v5988, %v5895
    %v5990 = vadd.f32 %v5989, %v5903
    %v5991 = vadd.f32 %v5990, %v5911
    %v5992 = vadd.f32 %v5991, %v5919
    %v5993 = vadd.f32 %v5992, %v5927
    %v5994 = vadd.f32 %v5993, %v5935
    %v5995 = vadd.f32 %v5994, %v5943
    %v5996 = vadd.f32 %v5995, %v5951
    %v5997 = vadd.f32 %v5996, %v5959
    %v5998 = vadd.f32 %v5712, %v5720
    %v5999 = vadd.f32 %v5998, %v5728
    %v6000 = vadd.f32 %v5999, %v5736
    %v6001 = vadd.f32 %v6000, %v5744
    %v6002 = vadd.f32 %v6001, %v5752
    %v6003 = vadd.f32 %v6002, %v5760
    %v6004 = vadd.f32 %v6003, %v5768
    %v6005 = vadd.f32 %v6004, %v5776
    %v6006 = vadd.f32 %v6005, %v5784
    %v6007 = vadd.f32 %v6006, %v5792
    %v6008 = vadd.f32 %v6007, %v5800
    %v6009 = vadd.f32 %v6008, %v5808
    %v6010 = vadd.f32 %v6009, %v5816
    %v6011 = vadd.f32 %v6010, %v5824
    %v6012 = vadd.f32 %v6011, %v5832
    %v6013 = vadd.f32 %v6012, %v5840
    %v6014 = vadd.f32 %v6013, %v5848
    %v6015 = vadd.f32 %v6014, %v5856
    %v6016 = vadd.f32 %v6015, %v5864
    %v6017 = vadd.f32 %v6016, %v5872
    %v6018 = vadd.f32 %v6017, %v5880
    %v6019 = vadd.f32 %v6018, %v5888
    %v6020 = vadd.f32 %v6019, %v5896
    %v6021 = vadd.f32 %v6020, %v5904
    %v6022 = vadd.f32 %v6021, %v5912
    %v6023 = vadd.f32 %v6022, %v5920
    %v6024 = vadd.f32 %v6023, %v5928
    %v6025 = vadd.f32 %v6024, %v5936
    %v6026 = vadd.f32 %v6025, %v5944
    %v6027 = vadd.f32 %v6026, %v5952
    %v6028 = vadd.f32 %v6027, %v5960
    %v6029 = vadd.f32 %v5713, %v5721
    %v6030 = vadd.f32 %v6029, %v5729
    %v6031 = vadd.f32 %v6030, %v5737
    %v6032 = vadd.f32 %v6031, %v5745
    %v6033 = vadd.f32 %v6032, %v5753
    %v6034 = vadd.f32 %v6033, %v5761
    %v6035 = vadd.f32 %v6034, %v5769
    %v6036 = vadd.f32 %v6035, %v5777
    %v6037 = vadd.f32 %v6036, %v5785
    %v6038 = vadd.f32 %v6037, %v5793
    %v6039 = vadd.f32 %v6038, %v5801
    %v6040 = vadd.f32 %v6039, %v5809
    %v6041 = vadd.f32 %v6040, %v5817
    %v6042 = vadd.f32 %v6041, %v5825
    %v6043 = vadd.f32 %v6042, %v5833
    %v6044 = vadd.f32 %v6043, %v5841
    %v6045 = vadd.f32 %v6044, %v5849
    %v6046 = vadd.f32 %v6045, %v5857
    %v6047 = vadd.f32 %v6046, %v5865
    %v6048 = vadd.f32 %v6047, %v5873
    %v6049 = vadd.f32 %v6048, %v5881
    %v6050 = vadd.f32 %v6049, %v5889
    %v6051 = vadd.f32 %v6050, %v5897
    %v6052 = vadd.f32 %v6051, %v5905
    %v6053 = vadd.f32 %v6052, %v5913
    %v6054 = vadd.f32 %v6053, %v5921
    %v6055 = vadd.f32 %v6054, %v5929
    %v6056 = vadd.f32 %v6055, %v5937
    %v6057 = vadd.f32 %v6056, %v5945
    %v6058 = vadd.f32 %v6057, %v5953
    %v6059 = vadd.f32 %v6058, %v5961
    %v6060 = vadd.f32 %v5714, %v5722
    %v6061 = vadd.f32 %v6060, %v5730
    %v6062 = vadd.f32 %v6061, %v5738
    %v6063 = vadd.f32 %v6062, %v5746
    %v6064 = vadd.f32 %v6063, %v5754
    %v6065 = vadd.f32 %v6064, %v5762
    %v6066 = vadd.f32 %v6065, %v5770
    %v6067 = vadd.f32 %v6066, %v5778
    %v6068 = vadd.f32 %v6067, %v5786
    %v6069 = vadd.f32 %v6068, %v5794
    %v6070 = vadd.f32 %v6069, %v5802
    %v6071 = vadd.f32 %v6070, %v5810
    %v6072 = vadd.f32 %v6071, %v5818
    %v6073 = vadd.f32 %v6072, %v5826
    %v6074 = vadd.f32 %v6073, %v5834
    %v6075 = vadd.f32 %v6074, %v5842
    %v6076 = vadd.f32 %v6075, %v5850
    %v6077 = vadd.f32 %v6076, %v5858
    %v6078 = vadd.f32 %v6077, %v5866
    %v6079 = vadd.f32 %v6078, %v5874
    %v6080 = vadd.f32 %v6079, %v5882
    %v6081 = vadd.f32 %v6080, %v5890
    %v6082 = vadd.f32 %v6081, %v5898
    %v6083 = vadd.f32 %v6082, %v5906
    %v6084 = vadd.f32 %v6083, %v5914
    %v6085 = vadd.f32 %v6084, %v5922
    %v6086 = vadd.f32 %v6085, %v5930
    %v6087 = vadd.f32 %v6086, %v5938
    %v6088 = vadd.f32 %v6087, %v5946
    %v6089 = vadd.f32 %v6088, %v5954
    %v6090 = vadd.f32 %v6089, %v5962
    %v6091 = vadd.f32 %v5715, %v5723
    %v6092 = vadd.f32 %v6091, %v5731
    %v6093 = vadd.f32 %v6092, %v5739
    %v6094 = vadd.f32 %v6093, %v5747
    %v6095 = vadd.f32 %v6094, %v5755
    %v6096 = vadd.f32 %v6095, %v5763
    %v6097 = vadd.f32 %v6096, %v5771
    %v6098 = vadd.f32 %v6097, %v5779
    %v6099 = vadd.f32 %v6098, %v5787
    %v6100 = vadd.f32 %v6099, %v5795
    %v6101 = vadd.f32 %v6100, %v5803
    %v6102 = vadd.f32 %v6101, %v5811
    %v6103 = vadd.f32 %v6102, %v5819
    %v6104 = vadd.f32 %v6103, %v5827
    %v6105 = vadd.f32 %v6104, %v5835
    %v6106 = vadd.f32 %v6105, %v5843
    %v6107 = vadd.f32 %v6106, %v5851
    %v6108 = vadd.f32 %v6107, %v5859
    %v6109 = vadd.f32 %v6108, %v5867
    %v6110 = vadd.f32 %v6109, %v5875
    %v6111 = vadd.f32 %v6110, %v5883
    %v6112 = vadd.f32 %v6111, %v5891
    %v6113 = vadd.f32 %v6112, %v5899
    %v6114 = vadd.f32 %v6113, %v5907
    %v6115 = vadd.f32 %v6114, %v5915
    %v6116 = vadd.f32 %v6115, %v5923
    %v6117 = vadd.f32 %v6116, %v5931
    %v6118 = vadd.f32 %v6117, %v5939
    %v6119 = vadd.f32 %v6118, %v5947
    %v6120 = vadd.f32 %v6119, %v5955
    %v6121 = vadd.f32 %v6120, %v5963
    %v6122 = vadd.f32 %v5716, %v5724
    %v6123 = vadd.f32 %v6122, %v5732
    %v6124 = vadd.f32 %v6123, %v5740
    %v6125 = vadd.f32 %v6124, %v5748
    %v6126 = vadd.f32 %v6125, %v5756
    %v6127 = vadd.f32 %v6126, %v5764
    %v6128 = vadd.f32 %v6127, %v5772
    %v6129 = vadd.f32 %v6128, %v5780
    %v6130 = vadd.f32 %v6129, %v5788
    %v6131 = vadd.f32 %v6130, %v5796
    %v6132 = vadd.f32 %v6131, %v5804
    %v6133 = vadd.f32 %v6132, %v5812
    %v6134 = vadd.f32 %v6133, %v5820
    %v6135 = vadd.f32 %v6134, %v5828
    %v6136 = vadd.f32 %v6135, %v5836
    %v6137 = vadd.f32 %v6136, %v5844
    %v6138 = vadd.f32 %v6137, %v5852
    %v6139 = vadd.f32 %v6138, %v5860
    %v6140 = vadd.f32 %v6139, %v5868
    %v6141 = vadd.f32 %v6140, %v5876
    %v6142 = vadd.f32 %v6141, %v5884
    %v6143 = vadd.f32 %v6142, %v5892
    %v6144 = vadd.f32 %v6143, %v5900
    %v6145 = vadd.f32 %v6144, %v5908
    %v6146 = vadd.f32 %v6145, %v5916
    %v6147 = vadd.f32 %v6146, %v5924
    %v6148 = vadd.f32 %v6147, %v5932
    %v6149 = vadd.f32 %v6148, %v5940
    %v6150 = vadd.f32 %v6149, %v5948
    %v6151 = vadd.f32 %v6150, %v5956
    %v6152 = vadd.f32 %v6151, %v5964
    %v6153 = vadd.f32 %v5717, %v5725
    %v6154 = vadd.f32 %v6153, %v5733
    %v6155 = vadd.f32 %v6154, %v5741
    %v6156 = vadd.f32 %v6155, %v5749
    %v6157 = vadd.f32 %v6156, %v5757
    %v6158 = vadd.f32 %v6157, %v5765
    %v6159 = vadd.f32 %v6158, %v5773
    %v6160 = vadd.f32 %v6159, %v5781
    %v6161 = vadd.f32 %v6160, %v5789
    %v6162 = vadd.f32 %v6161, %v5797
    %v6163 = vadd.f32 %v6162, %v5805
    %v6164 = vadd.f32 %v6163, %v5813
    %v6165 = vadd.f32 %v6164, %v5821
    %v6166 = vadd.f32 %v6165, %v5829
    %v6167 = vadd.f32 %v6166, %v5837
    %v6168 = vadd.f32 %v6167, %v5845
    %v6169 = vadd.f32 %v6168, %v5853
    %v6170 = vadd.f32 %v6169, %v5861
    %v6171 = vadd.f32 %v6170, %v5869
    %v6172 = vadd.f32 %v6171, %v5877
    %v6173 = vadd.f32 %v6172, %v5885
    %v6174 = vadd.f32 %v6173, %v5893
    %v6175 = vadd.f32 %v6174, %v5901
    %v6176 = vadd.f32 %v6175, %v5909
    %v6177 = vadd.f32 %v6176, %v5917
    %v6178 = vadd.f32 %v6177, %v5925
    %v6179 = vadd.f32 %v6178, %v5933
    %v6180 = vadd.f32 %v6179, %v5941
    %v6181 = vadd.f32 %v6180, %v5949
    %v6182 = vadd.f32 %v6181, %v5957
    %v6183 = vadd.f32 %v6182, %v5965
    %v6184 = vadd.f32 %v5718, %v5726
    %v6185 = vadd.f32 %v6184, %v5734
    %v6186 = vadd.f32 %v6185, %v5742
    %v6187 = vadd.f32 %v6186, %v5750
    %v6188 = vadd.f32 %v6187, %v5758
    %v6189 = vadd.f32 %v6188, %v5766
    %v6190 = vadd.f32 %v6189, %v5774
    %v6191 = vadd.f32 %v6190, %v5782
    %v6192 = vadd.f32 %v6191, %v5790
    %v6193 = vadd.f32 %v6192, %v5798
    %v6194 = vadd.f32 %v6193, %v5806
    %v6195 = vadd.f32 %v6194, %v5814
    %v6196 = vadd.f32 %v6195, %v5822
    %v6197 = vadd.f32 %v6196, %v5830
    %v6198 = vadd.f32 %v6197, %v5838
    %v6199 = vadd.f32 %v6198, %v5846
    %v6200 = vadd.f32 %v6199, %v5854
    %v6201 = vadd.f32 %v6200, %v5862
    %v6202 = vadd.f32 %v6201, %v5870
    %v6203 = vadd.f32 %v6202, %v5878
    %v6204 = vadd.f32 %v6203, %v5886
    %v6205 = vadd.f32 %v6204, %v5894
    %v6206 = vadd.f32 %v6205, %v5902
    %v6207 = vadd.f32 %v6206, %v5910
    %v6208 = vadd.f32 %v6207, %v5918
    %v6209 = vadd.f32 %v6208, %v5926
    %v6210 = vadd.f32 %v6209, %v5934
    %v6211 = vadd.f32 %v6210, %v5942
    %v6212 = vadd.f32 %v6211, %v5950
    %v6213 = vadd.f32 %v6212, %v5958
    %v6214 = vadd.f32 %v6213, %v5966
    %v6215 = vadd.f32 %v5997, %v6059
    %v6216 = vadd.f32 %v6215, %v6121
    %v6217 = vadd.f32 %v6216, %v6183
    %v6218 = vrot.slane %v6217, 4
    %v6219 = vadd.f32 %v6217, %v6218
    %v6220 = vrot.slane %v6219, 2
    %v6221 = vadd.f32 %v6219, %v6220
    %v6222 = vrot.slane %v6221, 1
    %v6223 = vadd.f32 %v6221, %v6222
    %v6224 = vadd.f32 %v6028, %v6090
    %v6225 = vadd.f32 %v6224, %v6152
    %v6226 = vadd.f32 %v6225, %v6214
    %v6227 = vrot.slane %v6226, 4
    %v6228 = vadd.f32 %v6226, %v6227
    %v6229 = vrot.slane %v6228, 2
    %v6230 = vadd.f32 %v6228, %v6229
    %v6231 = vrot.slane %v6230, 1
    %v6232 = vadd.f32 %v6230, %v6231
    %v6233 = vmul.f32 %v6223, 0.0009765625
    %v6234 = vmul.f32 %v6232, 0.0009765625
    %vm6235 = vcmp.lt.f32.partialorder %v5185, 1e-10
    %vm6236 = vcmp.lt.f32.partialorder %v5186, 1e-10
    %v6237 = vsel %vm6235, 1, 0
    %v6238 = vsel %vm6236, 1, 0
    %v6239 = vcvt.s32.f32 %v6237
    %v6240 = vcvt.s32.f32 %v6238
    %vm6241 = vcmp.lt.f32.partialorder %v5709, 1e-10
    %vm6242 = vcmp.lt.f32.partialorder %v5710, 1e-10
    %v6243 = vsel %vm6241, 1, 0
    %v6244 = vsel %vm6242, 1, 0
    %v6245 = vcvt.s32.f32 %v6243
    %v6246 = vcvt.s32.f32 %v6244
    %v6247 = vadd.f32 %v6239, %v6245
    %v6248 = vadd.f32 %v6240, %v6246
    %vm6249 = vcmp.lt.f32.partialorder %v6233, 1e-10
    %vm6250 = vcmp.lt.f32.partialorder %v6234, 1e-10
    %v6251 = vsel %vm6249, 1, 0
    %v6252 = vsel %vm6250, 1, 0
    %v6253 = vcvt.s32.f32 %v6251
    %v6254 = vcvt.s32.f32 %v6252
    %v6255 = vadd.f32 %v6247, %v6253
    %v6256 = vadd.f32 %v6248, %v6254
    %vm6257 = vcmp.ge.f32.partialorder %v6255, 2.0
    %vm6258 = vcmp.ge.f32.partialorder %v6256, 2.0
    %v6259 = vsel %vm6257, 1, 0
    %v6260 = vsel %vm6258, 1, 0
    %v6261 = vcvt.s32.f32 %v6259
    %v6262 = vcvt.s32.f32 %v6260
    %v6263 = vsub.f32 1.0, %v6261
    %v6264 = vsub.f32 1.0, %v6262
    %v6265 = vmul.f32 %v5185, %v6263
    %v6266 = vmul.f32 %v5186, %v6264
    %v6267 = vadd.f32 %v6265, %v6261
    %v6268 = vadd.f32 %v6266, %v6262
    %v6269 = vmul.f32 %v5709, %v6263
    %v6270 = vmul.f32 %v5710, %v6264
    %v6271 = vmul.f32 %v6233, %v6263
    %v6272 = vmul.f32 %v6234, %v6264
    %v6273 = vadd.f32 %v6271, %v6261
    %v6274 = vadd.f32 %v6272, %v6262
    %v6275 = vmax.f32 %v6267, %v6269
    %v6276 = vmax.f32 %v6268, %v6270
    %v6277 = vmax.f32 %v6275, %v6273
    %v6278 = vmax.f32 %v6276, %v6274
    %v6279 = vrcp.pop %v6277
    %v6280 = vrcp.pop %v6278
    %v6281 = vmul.f32 %v6267, %v6279
    %v6282 = vmul.f32 %v6268, %v6280
    %v6283 = vmul.f32 %v6269, %v6279
    %v6284 = vmul.f32 %v6270, %v6280
    %v6285 = vmul.f32 %v6273, %v6279
    %v6286 = vmul.f32 %v6274, %v6280
    %vm6287 = vcmask 1040384
    %v6288 = vsel %vm6287, %v6281, %v6283
    %v6289 = vsel %vm6287, %v6282, %v6284
    %vm6290 = vcmask 1041408
    %v6291 = vsel %vm6290, %v6288, %v6285
    %v6292 = vsel %vm6290, %v6289, %v6286
    %v6295 = vcombine.low %v6291, %v6292
    %6297 = vst [vmem:[#allocation7] sm:$0x77] %v6295
    // Predicated region
    $region18: #{tpu_custom_call.1} parent=1 // pred_check
      _
    $region19: #{tpu_custom_call.1} parent=1 // pred_check_branch
      %6299 = sbr.rel (0) target = $region21
    $region20: #{tpu_custom_call.1} parent=1 // pred_region
      %s6301 = ssub.s32 128, 128
      %6302 = vsyncadd [#allocation4], %s6301
      %s6304 = sshll.u32 [#allocation7], 4
      %s6305 = int_to_ptr.vmem [resolvable:$true] %s6304
      %6307 = dma.vmem_to_hbm [thread:$0]  %s6305, 128, %s2, [#allocation4]
    $region21: #{tpu_custom_call.1} parent=1 // pred_fallthru
      _
    // Predicated region
    $region22: #{tpu_custom_call.1} parent=1 // pred_check
      _
    $region23: #{tpu_custom_call.1} parent=1 // pred_check_branch
      %6309 = sbr.rel (0) target = $region25
    $region24: #{tpu_custom_call.1} parent=1 // pred_region
      %6310 = dma.done [#allocation4], 128
    $region25: #{tpu_custom_call.1} parent=1 // pred_fallthru
      _
    %6311 = vsyncpa [#allocation3], 1
    %6312 = vsyncpa [#allocation6], 1
    %6313 = vsyncpa [#allocation4], 1

</llo_original>
